<compile_context>
chip_gen: v6e
topology: v6e:2x2x1
jax: 0.10.0
libtpu: 0.0.40
codegen_flags: <defaults>
</compile_context>

<pallas_src>
import math
import functools

import jax
import jax.numpy as jnp
from jax.experimental import pallas as pl
from jax.experimental.pallas import tpu as pltpu

NEG_INF = -1e30
MXU_DTYPE = jnp.bfloat16  # MXU operand dtype; accumulation stays float32
VMEM = pl.BlockSpec(memory_space=pltpu.MemorySpace.VMEM)


# ------------------------------ in-kernel helpers ------------------------------

def _ln(x, g, b, eps=1e-5):
    # LayerNorm statistics kept in f32 (v5e has no bf16 VPU; avoids drift).
    mu = jnp.mean(x, axis=-1, keepdims=True)
    var = jnp.mean(jnp.square(x - mu), axis=-1, keepdims=True)
    return (x - mu) * jax.lax.rsqrt(var + eps) * g + b


def _dot(a, b):
    # bf16 MXU operands, f32 accumulation.
    return jnp.dot(a.astype(MXU_DTYPE), b.astype(MXU_DTYPE),
                   preferred_element_type=jnp.float32)


# ------------------------------ fused sub-layer kernels ------------------------------

def _attn_sublayer_kernel(xq_ref, xkv_ref, kpad_ref,
                          ln_g_ref, ln_b_ref,
                          wq_ref, bq_ref, wkv_ref, bkv_ref, wo_ref, bo_ref,
                          o_ref, *, n_head, causal, self_attn):
    """out = xq + Wo(MHA(LN(xq), kv_src)) ; kv_src = LN(xq) if self_attn else xkv."""
    B, Sq, D = xq_ref.shape
    Sk = xkv_ref.shape[1]
    Dh = D // n_head

    xq = xq_ref[...]                                   # (B, Sq, D) residual, f32
    n = _ln(xq.reshape(B * Sq, D), ln_g_ref[...], ln_b_ref[...])

    # q projection (softmax 1/sqrt(Dh) folded into wq / bq at init time)
    q = _dot(n, wq_ref[...]) + bq_ref[...]             # (B*Sq, D)

    if self_attn:
        kv_src = n                                     # Sk == Sq
    else:
        kv_src = xkv_ref[...].reshape(B * Sk, D)
    kv = _dot(kv_src, wkv_ref[...]) + bkv_ref[...]     # (B*Sk, 2D) fused K|V
    k = kv[:, :D].reshape(B, Sk, D)
    v = kv[:, D:].reshape(B, Sk, D)
    q = q.reshape(B, Sq, D)

    # additive attention bias built in-kernel from the key-padding mask
    bias = kpad_ref[...][:, None, :] * NEG_INF         # (B, 1, Sk)
    if causal:
        r = jax.lax.broadcasted_iota(jnp.int32, (Sq, Sk), 0)
        c = jax.lax.broadcasted_iota(jnp.int32, (Sq, Sk), 1)
        bias = bias + jnp.where(c > r, NEG_INF, 0.0)[None, :, :]   # (B, Sq, Sk)
    else:
        bias = jnp.broadcast_to(bias, (B, Sq, Sk))     # hoist broadcast out of loop

    # all B*H heads in this single invocation; Wo accumulated per head
    acc = jnp.zeros((B * Sq, D), dtype=jnp.float32)
    for h in range(n_head):                            # static unroll (H small)
        sl = slice(h * Dh, (h + 1) * Dh)
        s = jnp.einsum('bqd,bkd->bqk',
                       q[:, :, sl].astype(MXU_DTYPE), k[:, :, sl].astype(MXU_DTYPE),
                       preferred_element_type=jnp.float32) + bias
        m = jnp.max(s, axis=-1, keepdims=True)
        p = jnp.exp(s - m)                             # softmax math in f32
        l = jnp.sum(p, axis=-1, keepdims=True)
        oh = jnp.einsum('bqk,bkd->bqd',
                        p.astype(MXU_DTYPE), v[:, :, sl].astype(MXU_DTYPE),
                        preferred_element_type=jnp.float32)
        # defer the divide: scale the small (Sq, Dh) output, reciprocal on the EUP
        oh = (oh * pl.reciprocal(l, approx=True)).reshape(B * Sq, Dh)
        acc = acc + _dot(oh, wo_ref[sl, :])            # Wo fused into the head loop

    o_ref[...] = xq + (acc + bo_ref[...]).reshape(B, Sq, D)


def _ffn_sublayer_kernel(x_ref, ln_g_ref, ln_b_ref,
                         w1_ref, b1_ref, w2_ref, b2_ref, o_ref):
    """out = x + W2(relu(W1(LN(x))))."""
    B, S, D = x_ref.shape
    x = x_ref[...]
    n = _ln(x.reshape(B * S, D), ln_g_ref[...], ln_b_ref[...])
    h = jnp.maximum(_dot(n, w1_ref[...]) + b1_ref[...], 0.0)
    y = _dot(h, w2_ref[...]) + b2_ref[...]
    o_ref[...] = x + y.reshape(B, S, D)


def _linear_kernel(x_ref, w_ref, b_ref, o_ref):
    o_ref[...] = _dot(x_ref[...], w_ref[...]) + b_ref[...]


# ------------------------------ kernel wrappers ------------------------------

def attn_sublayer(xq, xkv, kpad, p, prefix, *, n_head, causal, self_attn):
    B, Sq, D = xq.shape
    kernel = functools.partial(_attn_sublayer_kernel,
                               n_head=n_head, causal=causal, self_attn=self_attn)
    return pl.pallas_call(
        kernel,
        out_shape=jax.ShapeDtypeStruct((B, Sq, D), jnp.float32),
        in_specs=[VMEM] * 11,
        out_specs=VMEM,
    )(xq, xkv, kpad,
      p[prefix + "ln_g"], p[prefix + "ln_b"],
      p[prefix + "wq"], p[prefix + "bq"],
      p[prefix + "wkv"], p[prefix + "bkv"],
      p[prefix + "wo"], p[prefix + "bo"])


def ffn_sublayer(x, p, prefix="ff_"):
    B, S, D = x.shape
    return pl.pallas_call(
        _ffn_sublayer_kernel,
        out_shape=jax.ShapeDtypeStruct((B, S, D), jnp.float32),
        in_specs=[VMEM] * 7,
        out_specs=VMEM,
    )(x, p[prefix + "ln_g"], p[prefix + "ln_b"],
      p[prefix + "w1"], p[prefix + "b1"], p[prefix + "w2"], p[prefix + "b2"])


def tiled_linear(x, w, b):
    """x: (M, K), w: (K, N), b: (1, N) -> (M, N). Tiled over (M, N), both parallel."""
    M, K = x.shape
    N = w.shape[1]
    tm = M if M <= 256 else 256          # fits VMEM comfortably on v7x's 64 MiB too
    tn = N if N <= 512 else 512
    assert M % tm == 0 and N % tn == 0 and tm % 8 == 0 and tn % 128 == 0
    grid = (M // tm, N // tn)
    return pl.pallas_call(
        _linear_kernel,
        out_shape=jax.ShapeDtypeStruct((M, N), jnp.float32),
        grid=grid,
        in_specs=[
            pl.BlockSpec((tm, K), lambda i, j: (i, 0)),
            pl.BlockSpec((K, tn), lambda i, j: (0, j)),
            pl.BlockSpec((1, tn), lambda i, j: (0, j)),
        ],
        out_specs=pl.BlockSpec((tm, tn), lambda i, j: (i, j)),
        compiler_params=pltpu.CompilerParams(
            dimension_semantics=("parallel", "parallel")),
    )(x, w, b)


# ------------------------------ model ------------------------------

def encoder_layer(x, p, kpad_x, n_head):
    x = attn_sublayer(x, x, kpad_x, p, "sa_", n_head=n_head, causal=False, self_attn=True)
    x = ffn_sublayer(x, p)
    return x


def decoder_layer(y, memory, p, kpad_y, kpad_x, n_head):
    y = attn_sublayer(y, y, kpad_y, p, "sa_", n_head=n_head, causal=True, self_attn=True)
    y = attn_sublayer(y, memory, kpad_x, p, "ca_", n_head=n_head, causal=False, self_attn=False)
    y = ffn_sublayer(y, p)
    return y


def encoder_decoder_forward(params, x_tok, y_tok, *, n_head, vocab_size):
    x_tok = x_tok.astype(jnp.int32)
    y_tok = y_tok.astype(jnp.int32)
    B, Sx = x_tok.shape
    Sy = y_tok.shape[1]
    D = params["embed"].shape[1]

    kpad_x = (x_tok == 0).astype(jnp.float32)   # (B, Sx): 1.0 where key is padding
    kpad_y = (y_tok == 0).astype(jnp.float32)   # (B, Sy)

    # embeddings (gather is glue, stays in plain JAX)
    hx = params["embed"][x_tok] + params["pos"][:Sx][None, :, :]
    hy = params["embed"][y_tok] + params["pos"][:Sy][None, :, :]

    for lp in params["enc_layers"]:
        hx = encoder_layer(hx, lp, kpad_x, n_head)
    for lp in params["dec_layers"]:
        hy = decoder_layer(hy, hx, lp, kpad_y, kpad_x, n_head)

    logits = tiled_linear(hy.reshape(B * Sy, D), params["fc_w"], params["fc_b"])
    return logits.reshape(B, Sy, -1)[:, :, :vocab_size]   # drop lane-padding columns


# ------------------------------ parameter init ------------------------------

def _w(key, shape, scale=0.02):
    return (scale * jax.random.normal(key, shape)).astype(jnp.float32)


def init_attn(keys, prefix, d, n_head):
    scale = 1.0 / math.sqrt(d // n_head)
    ki = iter(keys)
    wq = _w(next(ki), (d, d)) * scale               # softmax scale folded into wq/bq
    wk = _w(next(ki), (d, d))
    wv = _w(next(ki), (d, d))
    wo = _w(next(ki), (d, d))
    return {
        prefix + "ln_g": jnp.ones((1, d), jnp.float32),
        prefix + "ln_b": jnp.zeros((1, d), jnp.float32),
        prefix + "wq": wq,
        prefix + "bq": jnp.zeros((1, d), jnp.float32),          # (0 * scale)
        prefix + "wkv": jnp.concatenate([wk, wv], axis=1),      # fused K|V (D, 2D)
        prefix + "bkv": jnp.zeros((1, 2 * d), jnp.float32),
        prefix + "wo": wo,
        prefix + "bo": jnp.zeros((1, d), jnp.float32),
    }


def init_ff(keys, d, dff):
    return {
        "ff_ln_g": jnp.ones((1, d), jnp.float32),
        "ff_ln_b": jnp.zeros((1, d), jnp.float32),
        "ff_w1": _w(keys[0], (d, dff)),
        "ff_b1": jnp.zeros((1, dff), jnp.float32),
        "ff_w2": _w(keys[1], (dff, d)),
        "ff_b2": jnp.zeros((1, d), jnp.float32),
    }


def init_params(key, h_dim, embed_dim, n_head, n_layer, vocab_size, max_seq_len):
    assert embed_dim == h_dim, "d_model of encoder/decoder must equal embed_dim"
    dff = h_dim  # dim_feedforward = h_dim in the PyTorch module
    keys = jax.random.split(key, 3 + 6 * n_layer + 10 * n_layer)
    ki = iter(keys)

    embed = _w(next(ki), (vocab_size, embed_dim)).at[0].set(0.0)   # padding_idx=0
    pos = _w(next(ki), (max_seq_len, embed_dim))

    enc_layers = []
    for _ in range(n_layer):
        lp = {}
        lp.update(init_attn([next(ki) for _ in range(4)], "sa_", h_dim, n_head))
        lp.update(init_ff([next(ki), next(ki)], h_dim, dff))
        enc_layers.append(lp)

    dec_layers = []
    for _ in range(n_layer):
        lp = {}
        lp.update(init_attn([next(ki) for _ in range(4)], "sa_", h_dim, n_head))
        lp.update(init_attn([next(ki) for _ in range(4)], "ca_", h_dim, n_head))
        lp.update(init_ff([next(ki), next(ki)], h_dim, dff))
        dec_layers.append(lp)

    # final projection: pad vocab to a lane-dense multiple of 128 (logits sliced after)
    vocab_padded = ((vocab_size + 127) // 128) * 128
    fc_w = jnp.zeros((h_dim, vocab_padded), jnp.float32)
    fc_w = fc_w.at[:, :vocab_size].set(_w(next(ki), (h_dim, vocab_size)))
    fc_b = jnp.zeros((1, vocab_padded), jnp.float32)

    return {"embed": embed, "pos": pos,
            "enc_layers": enc_layers, "dec_layers": dec_layers,
            "fc_w": fc_w, "fc_b": fc_b}


# ---------------------------------- main ----------------------------------

if __name__ == "__main__":
    h_dim = 32
    embed_dim = 32
    n_head = 4
    n_layer = 2
    vocab_size = 16
    max_seq_len = 16
    B, Sx, Sy = 2, 8, 8

    key = jax.random.PRNGKey(0)
    kp, kx, ky = jax.random.split(key, 3)
    params = init_params(kp, h_dim, embed_dim, n_head, n_layer, vocab_size, max_seq_len)

    # token ids; 0 is the padding token (pad the tails)
    x_tok = jax.random.randint(kx, (B, Sx), 1, vocab_size, dtype=jnp.int32)
    y_tok = jax.random.randint(ky, (B, Sy), 1, vocab_size, dtype=jnp.int32)
    x_tok = x_tok.at[:, -2:].set(0)
    y_tok = y_tok.at[:, -1:].set(0)

    fwd = jax.jit(functools.partial(encoder_decoder_forward,
                                    n_head=n_head, vocab_size=vocab_size))
    logits = jax.block_until_ready(fwd(params, x_tok, y_tok))

    assert logits.shape == (B, Sy, vocab_size)
    assert bool(jnp.all(jnp.isfinite(logits)))
    print("KERNEL_OK")
</pallas_src>

<mosaic_0001>
module attributes {stable_mosaic.version = 11 : i64} {
  func.func @_attn_sublayer_kernel(%arg0: memref<2x8x32xf32, #tpu.memory_space<vmem>>, %arg1: memref<2x8x32xf32, #tpu.memory_space<vmem>>, %arg2: memref<2x8xf32, #tpu.memory_space<vmem>>, %arg3: memref<1x32xf32, #tpu.memory_space<vmem>>, %arg4: memref<1x32xf32, #tpu.memory_space<vmem>>, %arg5: memref<32x32xf32, #tpu.memory_space<vmem>>, %arg6: memref<1x32xf32, #tpu.memory_space<vmem>>, %arg7: memref<32x64xf32, #tpu.memory_space<vmem>>, %arg8: memref<1x64xf32, #tpu.memory_space<vmem>>, %arg9: memref<32x32xf32, #tpu.memory_space<vmem>>, %arg10: memref<1x32xf32, #tpu.memory_space<vmem>>, %arg11: memref<2x8x32xf32, #tpu.memory_space<vmem>>) attributes {dimension_semantics = [], scalar_prefetch = 0 : i64, scratch_operands = 0 : i64, tpu.core_type = #tpu.core_type<tc>} {
    %c0 = arith.constant 0 : index
    %c0_0 = arith.constant 0 : index
    %c0_1 = arith.constant 0 : index
    %0 = vector.load %arg0[%c0, %c0_0, %c0_1] : memref<2x8x32xf32, #tpu.memory_space<vmem>>, vector<2x8x32xf32>
    %1 = vector.shape_cast %0 : vector<2x8x32xf32> to vector<16x32xf32>
    %c0_2 = arith.constant 0 : index
    %c0_3 = arith.constant 0 : index
    %2 = vector.load %arg3[%c0_2, %c0_3] : memref<1x32xf32, #tpu.memory_space<vmem>>, vector<1x32xf32>
    %c0_4 = arith.constant 0 : index
    %c0_5 = arith.constant 0 : index
    %3 = vector.load %arg4[%c0_4, %c0_5] : memref<1x32xf32, #tpu.memory_space<vmem>>, vector<1x32xf32>
    %cst = arith.constant dense<0.000000e+00> : vector<16xf32>
    %4 = vector.multi_reduction <add>, %1, %cst [1] : vector<16x32xf32> to vector<16xf32>
    %5 = vector.shape_cast %4 : vector<16xf32> to vector<16x1xf32>
    %cst_6 = arith.constant 3.200000e+01 : f32
    %6 = vector.broadcast %cst_6 : f32 to vector<16x1xf32>
    %7 = arith.divf %5, %6 : vector<16x1xf32>
    %8 = vector.broadcast %7 : vector<16x1xf32> to vector<16x32xf32>
    %9 = arith.subf %1, %8 : vector<16x32xf32>
    %10 = arith.mulf %9, %9 : vector<16x32xf32>
    %cst_7 = arith.constant dense<0.000000e+00> : vector<16xf32>
    %11 = vector.multi_reduction <add>, %10, %cst_7 [1] : vector<16x32xf32> to vector<16xf32>
    %12 = vector.shape_cast %11 : vector<16xf32> to vector<16x1xf32>
    %cst_8 = arith.constant 3.200000e+01 : f32
    %13 = vector.broadcast %cst_8 : f32 to vector<16x1xf32>
    %14 = arith.divf %12, %13 : vector<16x1xf32>
    %15 = vector.broadcast %7 : vector<16x1xf32> to vector<16x32xf32>
    %16 = arith.subf %1, %15 : vector<16x32xf32>
    %cst_9 = arith.constant 9.99999974E-6 : f32
    %17 = vector.broadcast %cst_9 : f32 to vector<16x1xf32>
    %18 = arith.addf %14, %17 : vector<16x1xf32>
    %19 = math.rsqrt %18 : vector<16x1xf32>
    %20 = vector.broadcast %19 : vector<16x1xf32> to vector<16x32xf32>
    %21 = arith.mulf %16, %20 : vector<16x32xf32>
    %22 = vector.broadcast %2 : vector<1x32xf32> to vector<16x32xf32>
    %23 = arith.mulf %21, %22 : vector<16x32xf32>
    %24 = vector.broadcast %3 : vector<1x32xf32> to vector<16x32xf32>
    %25 = arith.addf %23, %24 : vector<16x32xf32>
    %c0_10 = arith.constant 0 : index
    %c0_11 = arith.constant 0 : index
    %26 = vector.load %arg5[%c0_10, %c0_11] : memref<32x32xf32, #tpu.memory_space<vmem>>, vector<32x32xf32>
    %27 = arith.truncf %25 : vector<16x32xf32> to vector<16x32xbf16>
    %28 = arith.truncf %26 : vector<32x32xf32> to vector<32x32xbf16>
    %cst_12 = arith.constant dense<0.000000e+00> : vector<16x32xf32>
    %29 = tpu.matmul %27, %28, %cst_12 {dimension_numbers = #tpu.dot_dimension_numbers<[1], [0], [0], [1], [0, 0, 1, 1], [], []>} : vector<16x32xbf16>, vector<32x32xbf16>, vector<16x32xf32> -> vector<16x32xf32>
    %c0_13 = arith.constant 0 : index
    %c0_14 = arith.constant 0 : index
    %30 = vector.load %arg6[%c0_13, %c0_14] : memref<1x32xf32, #tpu.memory_space<vmem>>, vector<1x32xf32>
    %31 = vector.broadcast %30 : vector<1x32xf32> to vector<16x32xf32>
    %32 = arith.addf %29, %31 : vector<16x32xf32>
    %c0_15 = arith.constant 0 : index
    %c0_16 = arith.constant 0 : index
    %c0_17 = arith.constant 0 : index
    %33 = vector.load %arg1[%c0_15, %c0_16, %c0_17] : memref<2x8x32xf32, #tpu.memory_space<vmem>>, vector<2x8x32xf32>
    %34 = vector.shape_cast %33 : vector<2x8x32xf32> to vector<16x32xf32>
    %c0_18 = arith.constant 0 : index
    %c0_19 = arith.constant 0 : index
    %35 = vector.load %arg7[%c0_18, %c0_19] : memref<32x64xf32, #tpu.memory_space<vmem>>, vector<32x64xf32>
    %36 = arith.truncf %34 : vector<16x32xf32> to vector<16x32xbf16>
    %37 = arith.truncf %35 : vector<32x64xf32> to vector<32x64xbf16>
    %cst_20 = arith.constant dense<0.000000e+00> : vector<16x64xf32>
    %38 = tpu.matmul %36, %37, %cst_20 {dimension_numbers = #tpu.dot_dimension_numbers<[1], [0], [0], [1], [0, 0, 1, 1], [], []>} : vector<16x32xbf16>, vector<32x64xbf16>, vector<16x64xf32> -> vector<16x64xf32>
    %c0_21 = arith.constant 0 : index
    %c0_22 = arith.constant 0 : index
    %39 = vector.load %arg8[%c0_21, %c0_22] : memref<1x64xf32, #tpu.memory_space<vmem>>, vector<1x64xf32>
    %40 = vector.broadcast %39 : vector<1x64xf32> to vector<16x64xf32>
    %41 = arith.addf %38, %40 : vector<16x64xf32>
    %42 = vector.extract_strided_slice %41 {offsets = [0, 0], sizes = [16, 32], strides = [1, 1]} : vector<16x64xf32> to vector<16x32xf32>
    %43 = vector.shape_cast %42 : vector<16x32xf32> to vector<2x8x32xf32>
    %44 = vector.extract_strided_slice %41 {offsets = [0, 32], sizes = [16, 32], strides = [1, 1]} : vector<16x64xf32> to vector<16x32xf32>
    %45 = vector.shape_cast %44 : vector<16x32xf32> to vector<2x8x32xf32>
    %46 = vector.shape_cast %32 : vector<16x32xf32> to vector<2x8x32xf32>
    %c0_23 = arith.constant 0 : index
    %c0_24 = arith.constant 0 : index
    %47 = vector.load %arg2[%c0_23, %c0_24] : memref<2x8xf32, #tpu.memory_space<vmem>>, vector<2x8xf32>
    %48 = vector.shape_cast %47 : vector<2x8xf32> to vector<2x1x8xf32>
    %cst_25 = arith.constant -1.000000e+30 : f32
    %49 = vector.broadcast %cst_25 : f32 to vector<2x1x8xf32>
    %50 = arith.mulf %48, %49 : vector<2x1x8xf32>
    %51 = vector.shape_cast %50 : vector<2x1x8xf32> to vector<2x1x8xf32>
    %52 = vector.broadcast %51 : vector<2x1x8xf32> to vector<2x8x8xf32>
    %cst_26 = arith.constant 0.000000e+00 : f32
    %53 = vector.broadcast %cst_26 : f32 to vector<16x32xf32>
    %54 = vector.extract_strided_slice %46 {offsets = [0, 0, 0], sizes = [2, 8, 8], strides = [1, 1, 1]} : vector<2x8x32xf32> to vector<2x8x8xf32>
    %55 = arith.truncf %54 : vector<2x8x8xf32> to vector<2x8x8xbf16>
    %56 = vector.extract_strided_slice %43 {offsets = [0, 0, 0], sizes = [2, 8, 8], strides = [1, 1, 1]} : vector<2x8x32xf32> to vector<2x8x8xf32>
    %57 = arith.truncf %56 : vector<2x8x8xf32> to vector<2x8x8xbf16>
    "tpu.trace_start"() <{level = 10 : i32, message = "bqd,bkd->bqk"}> : () -> ()
    %cst_27 = arith.constant dense<0.000000e+00> : vector<2x8x8xf32>
    %58 = tpu.matmul %55, %57, %cst_27 {dimension_numbers = #tpu.dot_dimension_numbers<[2], [2], [1], [1], [0, 0, 0, 1, 1, 1], [0], [0]>} : vector<2x8x8xbf16>, vector<2x8x8xbf16>, vector<2x8x8xf32> -> vector<2x8x8xf32>
    "tpu.trace_stop"() : () -> ()
    %59 = arith.addf %58, %52 : vector<2x8x8xf32>
    %cst_28 = arith.constant dense<0xFF800000> : vector<2x8xf32>
    %60 = vector.multi_reduction <maximumf>, %59, %cst_28 [2] : vector<2x8x8xf32> to vector<2x8xf32>
    %61 = vector.shape_cast %60 : vector<2x8xf32> to vector<2x8x1xf32>
    %62 = vector.broadcast %61 : vector<2x8x1xf32> to vector<2x8x8xf32>
    %63 = arith.subf %59, %62 : vector<2x8x8xf32>
    %64 = math.exp %63 : vector<2x8x8xf32>
    %cst_29 = arith.constant dense<0.000000e+00> : vector<2x8xf32>
    %65 = vector.multi_reduction <add>, %64, %cst_29 [2] : vector<2x8x8xf32> to vector<2x8xf32>
    %66 = vector.shape_cast %65 : vector<2x8xf32> to vector<2x8x1xf32>
    %67 = arith.truncf %64 : vector<2x8x8xf32> to vector<2x8x8xbf16>
    %68 = vector.extract_strided_slice %45 {offsets = [0, 0, 0], sizes = [2, 8, 8], strides = [1, 1, 1]} : vector<2x8x32xf32> to vector<2x8x8xf32>
    %69 = arith.truncf %68 : vector<2x8x8xf32> to vector<2x8x8xbf16>
    "tpu.trace_start"() <{level = 10 : i32, message = "bqk,bkd->bqd"}> : () -> ()
    %cst_30 = arith.constant dense<0.000000e+00> : vector<2x8x8xf32>
    %70 = tpu.matmul %67, %69, %cst_30 {dimension_numbers = #tpu.dot_dimension_numbers<[2], [1], [1], [2], [0, 0, 0, 1, 1, 2], [0], [0]>} : vector<2x8x8xbf16>, vector<2x8x8xbf16>, vector<2x8x8xf32> -> vector<2x8x8xf32>
    "tpu.trace_stop"() : () -> ()
    %71 = tpu.reciprocal %66 {approx = true} : vector<2x8x1xf32> -> vector<2x8x1xf32>
    %72 = vector.broadcast %71 : vector<2x8x1xf32> to vector<2x8x8xf32>
    %73 = arith.mulf %70, %72 : vector<2x8x8xf32>
    %74 = vector.shape_cast %73 : vector<2x8x8xf32> to vector<16x8xf32>
    %c0_31 = arith.constant 0 : index
    %c0_32 = arith.constant 0 : index
    %75 = vector.load %arg9[%c0_31, %c0_32] : memref<32x32xf32, #tpu.memory_space<vmem>>, vector<8x32xf32>
    %76 = arith.truncf %74 : vector<16x8xf32> to vector<16x8xbf16>
    %77 = arith.truncf %75 : vector<8x32xf32> to vector<8x32xbf16>
    %cst_33 = arith.constant dense<0.000000e+00> : vector<16x32xf32>
    %78 = tpu.matmul %76, %77, %cst_33 {dimension_numbers = #tpu.dot_dimension_numbers<[1], [0], [0], [1], [0, 0, 1, 1], [], []>} : vector<16x8xbf16>, vector<8x32xbf16>, vector<16x32xf32> -> vector<16x32xf32>
    %79 = arith.addf %53, %78 : vector<16x32xf32>
    %80 = vector.extract_strided_slice %46 {offsets = [0, 0, 8], sizes = [2, 8, 8], strides = [1, 1, 1]} : vector<2x8x32xf32> to vector<2x8x8xf32>
    %81 = arith.truncf %80 : vector<2x8x8xf32> to vector<2x8x8xbf16>
    %82 = vector.extract_strided_slice %43 {offsets = [0, 0, 8], sizes = [2, 8, 8], strides = [1, 1, 1]} : vector<2x8x32xf32> to vector<2x8x8xf32>
    %83 = arith.truncf %82 : vector<2x8x8xf32> to vector<2x8x8xbf16>
    "tpu.trace_start"() <{level = 10 : i32, message = "bqd,bkd->bqk"}> : () -> ()
    %cst_34 = arith.constant dense<0.000000e+00> : vector<2x8x8xf32>
    %84 = tpu.matmul %81, %83, %cst_34 {dimension_numbers = #tpu.dot_dimension_numbers<[2], [2], [1], [1], [0, 0, 0, 1, 1, 1], [0], [0]>} : vector<2x8x8xbf16>, vector<2x8x8xbf16>, vector<2x8x8xf32> -> vector<2x8x8xf32>
    "tpu.trace_stop"() : () -> ()
    %85 = arith.addf %84, %52 : vector<2x8x8xf32>
    %cst_35 = arith.constant dense<0xFF800000> : vector<2x8xf32>
    %86 = vector.multi_reduction <maximumf>, %85, %cst_35 [2] : vector<2x8x8xf32> to vector<2x8xf32>
    %87 = vector.shape_cast %86 : vector<2x8xf32> to vector<2x8x1xf32>
    %88 = vector.broadcast %87 : vector<2x8x1xf32> to vector<2x8x8xf32>
    %89 = arith.subf %85, %88 : vector<2x8x8xf32>
    %90 = math.exp %89 : vector<2x8x8xf32>
    %cst_36 = arith.constant dense<0.000000e+00> : vector<2x8xf32>
    %91 = vector.multi_reduction <add>, %90, %cst_36 [2] : vector<2x8x8xf32> to vector<2x8xf32>
    %92 = vector.shape_cast %91 : vector<2x8xf32> to vector<2x8x1xf32>
    %93 = arith.truncf %90 : vector<2x8x8xf32> to vector<2x8x8xbf16>
    %94 = vector.extract_strided_slice %45 {offsets = [0, 0, 8], sizes = [2, 8, 8], strides = [1, 1, 1]} : vector<2x8x32xf32> to vector<2x8x8xf32>
    %95 = arith.truncf %94 : vector<2x8x8xf32> to vector<2x8x8xbf16>
    "tpu.trace_start"() <{level = 10 : i32, message = "bqk,bkd->bqd"}> : () -> ()
    %cst_37 = arith.constant dense<0.000000e+00> : vector<2x8x8xf32>
    %96 = tpu.matmul %93, %95, %cst_37 {dimension_numbers = #tpu.dot_dimension_numbers<[2], [1], [1], [2], [0, 0, 0, 1, 1, 2], [0], [0]>} : vector<2x8x8xbf16>, vector<2x8x8xbf16>, vector<2x8x8xf32> -> vector<2x8x8xf32>
    "tpu.trace_stop"() : () -> ()
    %97 = tpu.reciprocal %92 {approx = true} : vector<2x8x1xf32> -> vector<2x8x1xf32>
    %98 = vector.broadcast %97 : vector<2x8x1xf32> to vector<2x8x8xf32>
    %99 = arith.mulf %96, %98 : vector<2x8x8xf32>
    %100 = vector.shape_cast %99 : vector<2x8x8xf32> to vector<16x8xf32>
    %c8 = arith.constant 8 : index
    %c0_38 = arith.constant 0 : index
    %101 = vector.load %arg9[%c8, %c0_38] : memref<32x32xf32, #tpu.memory_space<vmem>>, vector<8x32xf32>
    %102 = arith.truncf %100 : vector<16x8xf32> to vector<16x8xbf16>
    %103 = arith.truncf %101 : vector<8x32xf32> to vector<8x32xbf16>
    %cst_39 = arith.constant dense<0.000000e+00> : vector<16x32xf32>
    %104 = tpu.matmul %102, %103, %cst_39 {dimension_numbers = #tpu.dot_dimension_numbers<[1], [0], [0], [1], [0, 0, 1, 1], [], []>} : vector<16x8xbf16>, vector<8x32xbf16>, vector<16x32xf32> -> vector<16x32xf32>
    %105 = arith.addf %79, %104 : vector<16x32xf32>
    %106 = vector.extract_strided_slice %46 {offsets = [0, 0, 16], sizes = [2, 8, 8], strides = [1, 1, 1]} : vector<2x8x32xf32> to vector<2x8x8xf32>
    %107 = arith.truncf %106 : vector<2x8x8xf32> to vector<2x8x8xbf16>
    %108 = vector.extract_strided_slice %43 {offsets = [0, 0, 16], sizes = [2, 8, 8], strides = [1, 1, 1]} : vector<2x8x32xf32> to vector<2x8x8xf32>
    %109 = arith.truncf %108 : vector<2x8x8xf32> to vector<2x8x8xbf16>
    "tpu.trace_start"() <{level = 10 : i32, message = "bqd,bkd->bqk"}> : () -> ()
    %cst_40 = arith.constant dense<0.000000e+00> : vector<2x8x8xf32>
    %110 = tpu.matmul %107, %109, %cst_40 {dimension_numbers = #tpu.dot_dimension_numbers<[2], [2], [1], [1], [0, 0, 0, 1, 1, 1], [0], [0]>} : vector<2x8x8xbf16>, vector<2x8x8xbf16>, vector<2x8x8xf32> -> vector<2x8x8xf32>
    "tpu.trace_stop"() : () -> ()
    %111 = arith.addf %110, %52 : vector<2x8x8xf32>
    %cst_41 = arith.constant dense<0xFF800000> : vector<2x8xf32>
    %112 = vector.multi_reduction <maximumf>, %111, %cst_41 [2] : vector<2x8x8xf32> to vector<2x8xf32>
    %113 = vector.shape_cast %112 : vector<2x8xf32> to vector<2x8x1xf32>
    %114 = vector.broadcast %113 : vector<2x8x1xf32> to vector<2x8x8xf32>
    %115 = arith.subf %111, %114 : vector<2x8x8xf32>
    %116 = math.exp %115 : vector<2x8x8xf32>
    %cst_42 = arith.constant dense<0.000000e+00> : vector<2x8xf32>
    %117 = vector.multi_reduction <add>, %116, %cst_42 [2] : vector<2x8x8xf32> to vector<2x8xf32>
    %118 = vector.shape_cast %117 : vector<2x8xf32> to vector<2x8x1xf32>
    %119 = arith.truncf %116 : vector<2x8x8xf32> to vector<2x8x8xbf16>
    %120 = vector.extract_strided_slice %45 {offsets = [0, 0, 16], sizes = [2, 8, 8], strides = [1, 1, 1]} : vector<2x8x32xf32> to vector<2x8x8xf32>
    %121 = arith.truncf %120 : vector<2x8x8xf32> to vector<2x8x8xbf16>
    "tpu.trace_start"() <{level = 10 : i32, message = "bqk,bkd->bqd"}> : () -> ()
    %cst_43 = arith.constant dense<0.000000e+00> : vector<2x8x8xf32>
    %122 = tpu.matmul %119, %121, %cst_43 {dimension_numbers = #tpu.dot_dimension_numbers<[2], [1], [1], [2], [0, 0, 0, 1, 1, 2], [0], [0]>} : vector<2x8x8xbf16>, vector<2x8x8xbf16>, vector<2x8x8xf32> -> vector<2x8x8xf32>
    "tpu.trace_stop"() : () -> ()
    %123 = tpu.reciprocal %118 {approx = true} : vector<2x8x1xf32> -> vector<2x8x1xf32>
    %124 = vector.broadcast %123 : vector<2x8x1xf32> to vector<2x8x8xf32>
    %125 = arith.mulf %122, %124 : vector<2x8x8xf32>
    %126 = vector.shape_cast %125 : vector<2x8x8xf32> to vector<16x8xf32>
    %c16 = arith.constant 16 : index
    %c0_44 = arith.constant 0 : index
    %127 = vector.load %arg9[%c16, %c0_44] : memref<32x32xf32, #tpu.memory_space<vmem>>, vector<8x32xf32>
    %128 = arith.truncf %126 : vector<16x8xf32> to vector<16x8xbf16>
    %129 = arith.truncf %127 : vector<8x32xf32> to vector<8x32xbf16>
    %cst_45 = arith.constant dense<0.000000e+00> : vector<16x32xf32>
    %130 = tpu.matmul %128, %129, %cst_45 {dimension_numbers = #tpu.dot_dimension_numbers<[1], [0], [0], [1], [0, 0, 1, 1], [], []>} : vector<16x8xbf16>, vector<8x32xbf16>, vector<16x32xf32> -> vector<16x32xf32>
    %131 = arith.addf %105, %130 : vector<16x32xf32>
    %132 = vector.extract_strided_slice %46 {offsets = [0, 0, 24], sizes = [2, 8, 8], strides = [1, 1, 1]} : vector<2x8x32xf32> to vector<2x8x8xf32>
    %133 = arith.truncf %132 : vector<2x8x8xf32> to vector<2x8x8xbf16>
    %134 = vector.extract_strided_slice %43 {offsets = [0, 0, 24], sizes = [2, 8, 8], strides = [1, 1, 1]} : vector<2x8x32xf32> to vector<2x8x8xf32>
    %135 = arith.truncf %134 : vector<2x8x8xf32> to vector<2x8x8xbf16>
    "tpu.trace_start"() <{level = 10 : i32, message = "bqd,bkd->bqk"}> : () -> ()
    %cst_46 = arith.constant dense<0.000000e+00> : vector<2x8x8xf32>
    %136 = tpu.matmul %133, %135, %cst_46 {dimension_numbers = #tpu.dot_dimension_numbers<[2], [2], [1], [1], [0, 0, 0, 1, 1, 1], [0], [0]>} : vector<2x8x8xbf16>, vector<2x8x8xbf16>, vector<2x8x8xf32> -> vector<2x8x8xf32>
    "tpu.trace_stop"() : () -> ()
    %137 = arith.addf %136, %52 : vector<2x8x8xf32>
    %cst_47 = arith.constant dense<0xFF800000> : vector<2x8xf32>
    %138 = vector.multi_reduction <maximumf>, %137, %cst_47 [2] : vector<2x8x8xf32> to vector<2x8xf32>
    %139 = vector.shape_cast %138 : vector<2x8xf32> to vector<2x8x1xf32>
    %140 = vector.broadcast %139 : vector<2x8x1xf32> to vector<2x8x8xf32>
    %141 = arith.subf %137, %140 : vector<2x8x8xf32>
    %142 = math.exp %141 : vector<2x8x8xf32>
    %cst_48 = arith.constant dense<0.000000e+00> : vector<2x8xf32>
    %143 = vector.multi_reduction <add>, %142, %cst_48 [2] : vector<2x8x8xf32> to vector<2x8xf32>
    %144 = vector.shape_cast %143 : vector<2x8xf32> to vector<2x8x1xf32>
    %145 = arith.truncf %142 : vector<2x8x8xf32> to vector<2x8x8xbf16>
    %146 = vector.extract_strided_slice %45 {offsets = [0, 0, 24], sizes = [2, 8, 8], strides = [1, 1, 1]} : vector<2x8x32xf32> to vector<2x8x8xf32>
    %147 = arith.truncf %146 : vector<2x8x8xf32> to vector<2x8x8xbf16>
    "tpu.trace_start"() <{level = 10 : i32, message = "bqk,bkd->bqd"}> : () -> ()
    %cst_49 = arith.constant dense<0.000000e+00> : vector<2x8x8xf32>
    %148 = tpu.matmul %145, %147, %cst_49 {dimension_numbers = #tpu.dot_dimension_numbers<[2], [1], [1], [2], [0, 0, 0, 1, 1, 2], [0], [0]>} : vector<2x8x8xbf16>, vector<2x8x8xbf16>, vector<2x8x8xf32> -> vector<2x8x8xf32>
    "tpu.trace_stop"() : () -> ()
    %149 = tpu.reciprocal %144 {approx = true} : vector<2x8x1xf32> -> vector<2x8x1xf32>
    %150 = vector.broadcast %149 : vector<2x8x1xf32> to vector<2x8x8xf32>
    %151 = arith.mulf %148, %150 : vector<2x8x8xf32>
    %152 = vector.shape_cast %151 : vector<2x8x8xf32> to vector<16x8xf32>
    %c24 = arith.constant 24 : index
    %c0_50 = arith.constant 0 : index
    %153 = vector.load %arg9[%c24, %c0_50] : memref<32x32xf32, #tpu.memory_space<vmem>>, vector<8x32xf32>
    %154 = arith.truncf %152 : vector<16x8xf32> to vector<16x8xbf16>
    %155 = arith.truncf %153 : vector<8x32xf32> to vector<8x32xbf16>
    %cst_51 = arith.constant dense<0.000000e+00> : vector<16x32xf32>
    %156 = tpu.matmul %154, %155, %cst_51 {dimension_numbers = #tpu.dot_dimension_numbers<[1], [0], [0], [1], [0, 0, 1, 1], [], []>} : vector<16x8xbf16>, vector<8x32xbf16>, vector<16x32xf32> -> vector<16x32xf32>
    %157 = arith.addf %131, %156 : vector<16x32xf32>
    %c0_52 = arith.constant 0 : index
    %c0_53 = arith.constant 0 : index
    %158 = vector.load %arg10[%c0_52, %c0_53] : memref<1x32xf32, #tpu.memory_space<vmem>>, vector<1x32xf32>
    %159 = vector.broadcast %158 : vector<1x32xf32> to vector<16x32xf32>
    %160 = arith.addf %157, %159 : vector<16x32xf32>
    %161 = vector.shape_cast %160 : vector<16x32xf32> to vector<2x8x32xf32>
    %162 = arith.addf %0, %161 : vector<2x8x32xf32>
    %c0_54 = arith.constant 0 : index
    %c0_55 = arith.constant 0 : index
    %c0_56 = arith.constant 0 : index
    %163 = vector.load %arg11[%c0_54, %c0_55, %c0_56] : memref<2x8x32xf32, #tpu.memory_space<vmem>>, vector<2x8x32xf32>
    tpu.vector_store %arg11[%c0_54, %c0_55, %c0_56], %162 {strides = array<i32>} : memref<2x8x32xf32, #tpu.memory_space<vmem>>, vector<2x8x32xf32>,
    return
  }
}

module attributes {stable_mosaic.version = 11 : i64} {
  func.func @_attn_sublayer_kernel(%arg0: memref<2x8x32xf32, #tpu.memory_space<vmem>>, %arg1: memref<2x8x32xf32, #tpu.memory_space<vmem>>, %arg2: memref<2x8xf32, #tpu.memory_space<vmem>>, %arg3: memref<1x32xf32, #tpu.memory_space<vmem>>, %arg4: memref<1x32xf32, #tpu.memory_space<vmem>>, %arg5: memref<32x32xf32, #tpu.memory_space<vmem>>, %arg6: memref<1x32xf32, #tpu.memory_space<vmem>>, %arg7: memref<32x64xf32, #tpu.memory_space<vmem>>, %arg8: memref<1x64xf32, #tpu.memory_space<vmem>>, %arg9: memref<32x32xf32, #tpu.memory_space<vmem>>, %arg10: memref<1x32xf32, #tpu.memory_space<vmem>>, %arg11: memref<2x8x32xf32, #tpu.memory_space<vmem>>) attributes {dimension_semantics = [], scalar_prefetch = 0 : i64, scratch_operands = 0 : i64, tpu.core_type = #tpu.core_type<tc>} {
    %c0 = arith.constant 0 : index
    %c0_0 = arith.constant 0 : index
    %c0_1 = arith.constant 0 : index
    %0 = vector.load %arg0[%c0, %c0_0, %c0_1] : memref<2x8x32xf32, #tpu.memory_space<vmem>>, vector<2x8x32xf32>
    %1 = vector.shape_cast %0 : vector<2x8x32xf32> to vector<16x32xf32>
    %c0_2 = arith.constant 0 : index
    %c0_3 = arith.constant 0 : index
    %2 = vector.load %arg3[%c0_2, %c0_3] : memref<1x32xf32, #tpu.memory_space<vmem>>, vector<1x32xf32>
    %c0_4 = arith.constant 0 : index
    %c0_5 = arith.constant 0 : index
    %3 = vector.load %arg4[%c0_4, %c0_5] : memref<1x32xf32, #tpu.memory_space<vmem>>, vector<1x32xf32>
    %cst = arith.constant dense<0.000000e+00> : vector<16xf32>
    %4 = vector.multi_reduction <add>, %1, %cst [1] : vector<16x32xf32> to vector<16xf32>
    %5 = vector.shape_cast %4 : vector<16xf32> to vector<16x1xf32>
    %cst_6 = arith.constant 3.200000e+01 : f32
    %6 = vector.broadcast %cst_6 : f32 to vector<16x1xf32>
    %7 = arith.divf %5, %6 : vector<16x1xf32>
    %8 = vector.broadcast %7 : vector<16x1xf32> to vector<16x32xf32>
    %9 = arith.subf %1, %8 : vector<16x32xf32>
    %10 = arith.mulf %9, %9 : vector<16x32xf32>
    %cst_7 = arith.constant dense<0.000000e+00> : vector<16xf32>
    %11 = vector.multi_reduction <add>, %10, %cst_7 [1] : vector<16x32xf32> to vector<16xf32>
    %12 = vector.shape_cast %11 : vector<16xf32> to vector<16x1xf32>
    %cst_8 = arith.constant 3.200000e+01 : f32
    %13 = vector.broadcast %cst_8 : f32 to vector<16x1xf32>
    %14 = arith.divf %12, %13 : vector<16x1xf32>
    %15 = vector.broadcast %7 : vector<16x1xf32> to vector<16x32xf32>
    %16 = arith.subf %1, %15 : vector<16x32xf32>
    %cst_9 = arith.constant 9.99999974E-6 : f32
    %17 = vector.broadcast %cst_9 : f32 to vector<16x1xf32>
    %18 = arith.addf %14, %17 : vector<16x1xf32>
    %19 = math.rsqrt %18 : vector<16x1xf32>
    %20 = vector.broadcast %19 : vector<16x1xf32> to vector<16x32xf32>
    %21 = arith.mulf %16, %20 : vector<16x32xf32>
    %22 = vector.broadcast %2 : vector<1x32xf32> to vector<16x32xf32>
    %23 = arith.mulf %21, %22 : vector<16x32xf32>
    %24 = vector.broadcast %3 : vector<1x32xf32> to vector<16x32xf32>
    %25 = arith.addf %23, %24 : vector<16x32xf32>
    %c0_10 = arith.constant 0 : index
    %c0_11 = arith.constant 0 : index
    %26 = vector.load %arg5[%c0_10, %c0_11] : memref<32x32xf32, #tpu.memory_space<vmem>>, vector<32x32xf32>
    %27 = arith.truncf %25 : vector<16x32xf32> to vector<16x32xbf16>
    %28 = arith.truncf %26 : vector<32x32xf32> to vector<32x32xbf16>
    %cst_12 = arith.constant dense<0.000000e+00> : vector<16x32xf32>
    %29 = tpu.matmul %27, %28, %cst_12 {dimension_numbers = #tpu.dot_dimension_numbers<[1], [0], [0], [1], [0, 0, 1, 1], [], []>} : vector<16x32xbf16>, vector<32x32xbf16>, vector<16x32xf32> -> vector<16x32xf32>
    %c0_13 = arith.constant 0 : index
    %c0_14 = arith.constant 0 : index
    %30 = vector.load %arg6[%c0_13, %c0_14] : memref<1x32xf32, #tpu.memory_space<vmem>>, vector<1x32xf32>
    %31 = vector.broadcast %30 : vector<1x32xf32> to vector<16x32xf32>
    %32 = arith.addf %29, %31 : vector<16x32xf32>
    %c0_15 = arith.constant 0 : index
    %c0_16 = arith.constant 0 : index
    %33 = vector.load %arg7[%c0_15, %c0_16] : memref<32x64xf32, #tpu.memory_space<vmem>>, vector<32x64xf32>
    %34 = arith.truncf %25 : vector<16x32xf32> to vector<16x32xbf16>
    %35 = arith.truncf %33 : vector<32x64xf32> to vector<32x64xbf16>
    %cst_17 = arith.constant dense<0.000000e+00> : vector<16x64xf32>
    %36 = tpu.matmul %34, %35, %cst_17 {dimension_numbers = #tpu.dot_dimension_numbers<[1], [0], [0], [1], [0, 0, 1, 1], [], []>} : vector<16x32xbf16>, vector<32x64xbf16>, vector<16x64xf32> -> vector<16x64xf32>
    %c0_18 = arith.constant 0 : index
    %c0_19 = arith.constant 0 : index
    %37 = vector.load %arg8[%c0_18, %c0_19] : memref<1x64xf32, #tpu.memory_space<vmem>>, vector<1x64xf32>
    %38 = vector.broadcast %37 : vector<1x64xf32> to vector<16x64xf32>
    %39 = arith.addf %36, %38 : vector<16x64xf32>
    %40 = vector.extract_strided_slice %39 {offsets = [0, 0], sizes = [16, 32], strides = [1, 1]} : vector<16x64xf32> to vector<16x32xf32>
    %41 = vector.shape_cast %40 : vector<16x32xf32> to vector<2x8x32xf32>
    %42 = vector.extract_strided_slice %39 {offsets = [0, 32], sizes = [16, 32], strides = [1, 1]} : vector<16x64xf32> to vector<16x32xf32>
    %43 = vector.shape_cast %42 : vector<16x32xf32> to vector<2x8x32xf32>
    %44 = vector.shape_cast %32 : vector<16x32xf32> to vector<2x8x32xf32>
    %c0_20 = arith.constant 0 : index
    %c0_21 = arith.constant 0 : index
    %45 = vector.load %arg2[%c0_20, %c0_21] : memref<2x8xf32, #tpu.memory_space<vmem>>, vector<2x8xf32>
    %46 = vector.shape_cast %45 : vector<2x8xf32> to vector<2x1x8xf32>
    %cst_22 = arith.constant -1.000000e+30 : f32
    %47 = vector.broadcast %cst_22 : f32 to vector<2x1x8xf32>
    %48 = arith.mulf %46, %47 : vector<2x1x8xf32>
    %49 = vector.shape_cast %48 : vector<2x1x8xf32> to vector<2x1x8xf32>
    %50 = vector.broadcast %49 : vector<2x1x8xf32> to vector<2x8x8xf32>
    %cst_23 = arith.constant 0.000000e+00 : f32
    %51 = vector.broadcast %cst_23 : f32 to vector<16x32xf32>
    %52 = vector.extract_strided_slice %44 {offsets = [0, 0, 0], sizes = [2, 8, 8], strides = [1, 1, 1]} : vector<2x8x32xf32> to vector<2x8x8xf32>
    %53 = arith.truncf %52 : vector<2x8x8xf32> to vector<2x8x8xbf16>
    %54 = vector.extract_strided_slice %41 {offsets = [0, 0, 0], sizes = [2, 8, 8], strides = [1, 1, 1]} : vector<2x8x32xf32> to vector<2x8x8xf32>
    %55 = arith.truncf %54 : vector<2x8x8xf32> to vector<2x8x8xbf16>
    "tpu.trace_start"() <{level = 10 : i32, message = "bqd,bkd->bqk"}> : () -> ()
    %cst_24 = arith.constant dense<0.000000e+00> : vector<2x8x8xf32>
    %56 = tpu.matmul %53, %55, %cst_24 {dimension_numbers = #tpu.dot_dimension_numbers<[2], [2], [1], [1], [0, 0, 0, 1, 1, 1], [0], [0]>} : vector<2x8x8xbf16>, vector<2x8x8xbf16>, vector<2x8x8xf32> -> vector<2x8x8xf32>
    "tpu.trace_stop"() : () -> ()
    %57 = arith.addf %56, %50 : vector<2x8x8xf32>
    %cst_25 = arith.constant dense<0xFF800000> : vector<2x8xf32>
    %58 = vector.multi_reduction <maximumf>, %57, %cst_25 [2] : vector<2x8x8xf32> to vector<2x8xf32>
    %59 = vector.shape_cast %58 : vector<2x8xf32> to vector<2x8x1xf32>
    %60 = vector.broadcast %59 : vector<2x8x1xf32> to vector<2x8x8xf32>
    %61 = arith.subf %57, %60 : vector<2x8x8xf32>
    %62 = math.exp %61 : vector<2x8x8xf32>
    %cst_26 = arith.constant dense<0.000000e+00> : vector<2x8xf32>
    %63 = vector.multi_reduction <add>, %62, %cst_26 [2] : vector<2x8x8xf32> to vector<2x8xf32>
    %64 = vector.shape_cast %63 : vector<2x8xf32> to vector<2x8x1xf32>
    %65 = arith.truncf %62 : vector<2x8x8xf32> to vector<2x8x8xbf16>
    %66 = vector.extract_strided_slice %43 {offsets = [0, 0, 0], sizes = [2, 8, 8], strides = [1, 1, 1]} : vector<2x8x32xf32> to vector<2x8x8xf32>
    %67 = arith.truncf %66 : vector<2x8x8xf32> to vector<2x8x8xbf16>
    "tpu.trace_start"() <{level = 10 : i32, message = "bqk,bkd->bqd"}> : () -> ()
    %cst_27 = arith.constant dense<0.000000e+00> : vector<2x8x8xf32>
    %68 = tpu.matmul %65, %67, %cst_27 {dimension_numbers = #tpu.dot_dimension_numbers<[2], [1], [1], [2], [0, 0, 0, 1, 1, 2], [0], [0]>} : vector<2x8x8xbf16>, vector<2x8x8xbf16>, vector<2x8x8xf32> -> vector<2x8x8xf32>
    "tpu.trace_stop"() : () -> ()
    %69 = tpu.reciprocal %64 {approx = true} : vector<2x8x1xf32> -> vector<2x8x1xf32>
    %70 = vector.broadcast %69 : vector<2x8x1xf32> to vector<2x8x8xf32>
    %71 = arith.mulf %68, %70 : vector<2x8x8xf32>
    %72 = vector.shape_cast %71 : vector<2x8x8xf32> to vector<16x8xf32>
    %c0_28 = arith.constant 0 : index
    %c0_29 = arith.constant 0 : index
    %73 = vector.load %arg9[%c0_28, %c0_29] : memref<32x32xf32, #tpu.memory_space<vmem>>, vector<8x32xf32>
    %74 = arith.truncf %72 : vector<16x8xf32> to vector<16x8xbf16>
    %75 = arith.truncf %73 : vector<8x32xf32> to vector<8x32xbf16>
    %cst_30 = arith.constant dense<0.000000e+00> : vector<16x32xf32>
    %76 = tpu.matmul %74, %75, %cst_30 {dimension_numbers = #tpu.dot_dimension_numbers<[1], [0], [0], [1], [0, 0, 1, 1], [], []>} : vector<16x8xbf16>, vector<8x32xbf16>, vector<16x32xf32> -> vector<16x32xf32>
    %77 = arith.addf %51, %76 : vector<16x32xf32>
    %78 = vector.extract_strided_slice %44 {offsets = [0, 0, 8], sizes = [2, 8, 8], strides = [1, 1, 1]} : vector<2x8x32xf32> to vector<2x8x8xf32>
    %79 = arith.truncf %78 : vector<2x8x8xf32> to vector<2x8x8xbf16>
    %80 = vector.extract_strided_slice %41 {offsets = [0, 0, 8], sizes = [2, 8, 8], strides = [1, 1, 1]} : vector<2x8x32xf32> to vector<2x8x8xf32>
    %81 = arith.truncf %80 : vector<2x8x8xf32> to vector<2x8x8xbf16>
    "tpu.trace_start"() <{level = 10 : i32, message = "bqd,bkd->bqk"}> : () -> ()
    %cst_31 = arith.constant dense<0.000000e+00> : vector<2x8x8xf32>
    %82 = tpu.matmul %79, %81, %cst_31 {dimension_numbers = #tpu.dot_dimension_numbers<[2], [2], [1], [1], [0, 0, 0, 1, 1, 1], [0], [0]>} : vector<2x8x8xbf16>, vector<2x8x8xbf16>, vector<2x8x8xf32> -> vector<2x8x8xf32>
    "tpu.trace_stop"() : () -> ()
    %83 = arith.addf %82, %50 : vector<2x8x8xf32>
    %cst_32 = arith.constant dense<0xFF800000> : vector<2x8xf32>
    %84 = vector.multi_reduction <maximumf>, %83, %cst_32 [2] : vector<2x8x8xf32> to vector<2x8xf32>
    %85 = vector.shape_cast %84 : vector<2x8xf32> to vector<2x8x1xf32>
    %86 = vector.broadcast %85 : vector<2x8x1xf32> to vector<2x8x8xf32>
    %87 = arith.subf %83, %86 : vector<2x8x8xf32>
    %88 = math.exp %87 : vector<2x8x8xf32>
    %cst_33 = arith.constant dense<0.000000e+00> : vector<2x8xf32>
    %89 = vector.multi_reduction <add>, %88, %cst_33 [2] : vector<2x8x8xf32> to vector<2x8xf32>
    %90 = vector.shape_cast %89 : vector<2x8xf32> to vector<2x8x1xf32>
    %91 = arith.truncf %88 : vector<2x8x8xf32> to vector<2x8x8xbf16>
    %92 = vector.extract_strided_slice %43 {offsets = [0, 0, 8], sizes = [2, 8, 8], strides = [1, 1, 1]} : vector<2x8x32xf32> to vector<2x8x8xf32>
    %93 = arith.truncf %92 : vector<2x8x8xf32> to vector<2x8x8xbf16>
    "tpu.trace_start"() <{level = 10 : i32, message = "bqk,bkd->bqd"}> : () -> ()
    %cst_34 = arith.constant dense<0.000000e+00> : vector<2x8x8xf32>
    %94 = tpu.matmul %91, %93, %cst_34 {dimension_numbers = #tpu.dot_dimension_numbers<[2], [1], [1], [2], [0, 0, 0, 1, 1, 2], [0], [0]>} : vector<2x8x8xbf16>, vector<2x8x8xbf16>, vector<2x8x8xf32> -> vector<2x8x8xf32>
    "tpu.trace_stop"() : () -> ()
    %95 = tpu.reciprocal %90 {approx = true} : vector<2x8x1xf32> -> vector<2x8x1xf32>
    %96 = vector.broadcast %95 : vector<2x8x1xf32> to vector<2x8x8xf32>
    %97 = arith.mulf %94, %96 : vector<2x8x8xf32>
    %98 = vector.shape_cast %97 : vector<2x8x8xf32> to vector<16x8xf32>
    %c8 = arith.constant 8 : index
    %c0_35 = arith.constant 0 : index
    %99 = vector.load %arg9[%c8, %c0_35] : memref<32x32xf32, #tpu.memory_space<vmem>>, vector<8x32xf32>
    %100 = arith.truncf %98 : vector<16x8xf32> to vector<16x8xbf16>
    %101 = arith.truncf %99 : vector<8x32xf32> to vector<8x32xbf16>
    %cst_36 = arith.constant dense<0.000000e+00> : vector<16x32xf32>
    %102 = tpu.matmul %100, %101, %cst_36 {dimension_numbers = #tpu.dot_dimension_numbers<[1], [0], [0], [1], [0, 0, 1, 1], [], []>} : vector<16x8xbf16>, vector<8x32xbf16>, vector<16x32xf32> -> vector<16x32xf32>
    %103 = arith.addf %77, %102 : vector<16x32xf32>
    %104 = vector.extract_strided_slice %44 {offsets = [0, 0, 16], sizes = [2, 8, 8], strides = [1, 1, 1]} : vector<2x8x32xf32> to vector<2x8x8xf32>
    %105 = arith.truncf %104 : vector<2x8x8xf32> to vector<2x8x8xbf16>
    %106 = vector.extract_strided_slice %41 {offsets = [0, 0, 16], sizes = [2, 8, 8], strides = [1, 1, 1]} : vector<2x8x32xf32> to vector<2x8x8xf32>
    %107 = arith.truncf %106 : vector<2x8x8xf32> to vector<2x8x8xbf16>
    "tpu.trace_start"() <{level = 10 : i32, message = "bqd,bkd->bqk"}> : () -> ()
    %cst_37 = arith.constant dense<0.000000e+00> : vector<2x8x8xf32>
    %108 = tpu.matmul %105, %107, %cst_37 {dimension_numbers = #tpu.dot_dimension_numbers<[2], [2], [1], [1], [0, 0, 0, 1, 1, 1], [0], [0]>} : vector<2x8x8xbf16>, vector<2x8x8xbf16>, vector<2x8x8xf32> -> vector<2x8x8xf32>
    "tpu.trace_stop"() : () -> ()
    %109 = arith.addf %108, %50 : vector<2x8x8xf32>
    %cst_38 = arith.constant dense<0xFF800000> : vector<2x8xf32>
    %110 = vector.multi_reduction <maximumf>, %109, %cst_38 [2] : vector<2x8x8xf32> to vector<2x8xf32>
    %111 = vector.shape_cast %110 : vector<2x8xf32> to vector<2x8x1xf32>
    %112 = vector.broadcast %111 : vector<2x8x1xf32> to vector<2x8x8xf32>
    %113 = arith.subf %109, %112 : vector<2x8x8xf32>
    %114 = math.exp %113 : vector<2x8x8xf32>
    %cst_39 = arith.constant dense<0.000000e+00> : vector<2x8xf32>
    %115 = vector.multi_reduction <add>, %114, %cst_39 [2] : vector<2x8x8xf32> to vector<2x8xf32>
    %116 = vector.shape_cast %115 : vector<2x8xf32> to vector<2x8x1xf32>
    %117 = arith.truncf %114 : vector<2x8x8xf32> to vector<2x8x8xbf16>
    %118 = vector.extract_strided_slice %43 {offsets = [0, 0, 16], sizes = [2, 8, 8], strides = [1, 1, 1]} : vector<2x8x32xf32> to vector<2x8x8xf32>
    %119 = arith.truncf %118 : vector<2x8x8xf32> to vector<2x8x8xbf16>
    "tpu.trace_start"() <{level = 10 : i32, message = "bqk,bkd->bqd"}> : () -> ()
    %cst_40 = arith.constant dense<0.000000e+00> : vector<2x8x8xf32>
    %120 = tpu.matmul %117, %119, %cst_40 {dimension_numbers = #tpu.dot_dimension_numbers<[2], [1], [1], [2], [0, 0, 0, 1, 1, 2], [0], [0]>} : vector<2x8x8xbf16>, vector<2x8x8xbf16>, vector<2x8x8xf32> -> vector<2x8x8xf32>
    "tpu.trace_stop"() : () -> ()
    %121 = tpu.reciprocal %116 {approx = true} : vector<2x8x1xf32> -> vector<2x8x1xf32>
    %122 = vector.broadcast %121 : vector<2x8x1xf32> to vector<2x8x8xf32>
    %123 = arith.mulf %120, %122 : vector<2x8x8xf32>
    %124 = vector.shape_cast %123 : vector<2x8x8xf32> to vector<16x8xf32>
    %c16 = arith.constant 16 : index
    %c0_41 = arith.constant 0 : index
    %125 = vector.load %arg9[%c16, %c0_41] : memref<32x32xf32, #tpu.memory_space<vmem>>, vector<8x32xf32>
    %126 = arith.truncf %124 : vector<16x8xf32> to vector<16x8xbf16>
    %127 = arith.truncf %125 : vector<8x32xf32> to vector<8x32xbf16>
    %cst_42 = arith.constant dense<0.000000e+00> : vector<16x32xf32>
    %128 = tpu.matmul %126, %127, %cst_42 {dimension_numbers = #tpu.dot_dimension_numbers<[1], [0], [0], [1], [0, 0, 1, 1], [], []>} : vector<16x8xbf16>, vector<8x32xbf16>, vector<16x32xf32> -> vector<16x32xf32>
    %129 = arith.addf %103, %128 : vector<16x32xf32>
    %130 = vector.extract_strided_slice %44 {offsets = [0, 0, 24], sizes = [2, 8, 8], strides = [1, 1, 1]} : vector<2x8x32xf32> to vector<2x8x8xf32>
    %131 = arith.truncf %130 : vector<2x8x8xf32> to vector<2x8x8xbf16>
    %132 = vector.extract_strided_slice %41 {offsets = [0, 0, 24], sizes = [2, 8, 8], strides = [1, 1, 1]} : vector<2x8x32xf32> to vector<2x8x8xf32>
    %133 = arith.truncf %132 : vector<2x8x8xf32> to vector<2x8x8xbf16>
    "tpu.trace_start"() <{level = 10 : i32, message = "bqd,bkd->bqk"}> : () -> ()
    %cst_43 = arith.constant dense<0.000000e+00> : vector<2x8x8xf32>
    %134 = tpu.matmul %131, %133, %cst_43 {dimension_numbers = #tpu.dot_dimension_numbers<[2], [2], [1], [1], [0, 0, 0, 1, 1, 1], [0], [0]>} : vector<2x8x8xbf16>, vector<2x8x8xbf16>, vector<2x8x8xf32> -> vector<2x8x8xf32>
    "tpu.trace_stop"() : () -> ()
    %135 = arith.addf %134, %50 : vector<2x8x8xf32>
    %cst_44 = arith.constant dense<0xFF800000> : vector<2x8xf32>
    %136 = vector.multi_reduction <maximumf>, %135, %cst_44 [2] : vector<2x8x8xf32> to vector<2x8xf32>
    %137 = vector.shape_cast %136 : vector<2x8xf32> to vector<2x8x1xf32>
    %138 = vector.broadcast %137 : vector<2x8x1xf32> to vector<2x8x8xf32>
    %139 = arith.subf %135, %138 : vector<2x8x8xf32>
    %140 = math.exp %139 : vector<2x8x8xf32>
    %cst_45 = arith.constant dense<0.000000e+00> : vector<2x8xf32>
    %141 = vector.multi_reduction <add>, %140, %cst_45 [2] : vector<2x8x8xf32> to vector<2x8xf32>
    %142 = vector.shape_cast %141 : vector<2x8xf32> to vector<2x8x1xf32>
    %143 = arith.truncf %140 : vector<2x8x8xf32> to vector<2x8x8xbf16>
    %144 = vector.extract_strided_slice %43 {offsets = [0, 0, 24], sizes = [2, 8, 8], strides = [1, 1, 1]} : vector<2x8x32xf32> to vector<2x8x8xf32>
    %145 = arith.truncf %144 : vector<2x8x8xf32> to vector<2x8x8xbf16>
    "tpu.trace_start"() <{level = 10 : i32, message = "bqk,bkd->bqd"}> : () -> ()
    %cst_46 = arith.constant dense<0.000000e+00> : vector<2x8x8xf32>
    %146 = tpu.matmul %143, %145, %cst_46 {dimension_numbers = #tpu.dot_dimension_numbers<[2], [1], [1], [2], [0, 0, 0, 1, 1, 2], [0], [0]>} : vector<2x8x8xbf16>, vector<2x8x8xbf16>, vector<2x8x8xf32> -> vector<2x8x8xf32>
    "tpu.trace_stop"() : () -> ()
    %147 = tpu.reciprocal %142 {approx = true} : vector<2x8x1xf32> -> vector<2x8x1xf32>
    %148 = vector.broadcast %147 : vector<2x8x1xf32> to vector<2x8x8xf32>
    %149 = arith.mulf %146, %148 : vector<2x8x8xf32>
    %150 = vector.shape_cast %149 : vector<2x8x8xf32> to vector<16x8xf32>
    %c24 = arith.constant 24 : index
    %c0_47 = arith.constant 0 : index
    %151 = vector.load %arg9[%c24, %c0_47] : memref<32x32xf32, #tpu.memory_space<vmem>>, vector<8x32xf32>
    %152 = arith.truncf %150 : vector<16x8xf32> to vector<16x8xbf16>
    %153 = arith.truncf %151 : vector<8x32xf32> to vector<8x32xbf16>
    %cst_48 = arith.constant dense<0.000000e+00> : vector<16x32xf32>
    %154 = tpu.matmul %152, %153, %cst_48 {dimension_numbers = #tpu.dot_dimension_numbers<[1], [0], [0], [1], [0, 0, 1, 1], [], []>} : vector<16x8xbf16>, vector<8x32xbf16>, vector<16x32xf32> -> vector<16x32xf32>
    %155 = arith.addf %129, %154 : vector<16x32xf32>
    %c0_49 = arith.constant 0 : index
    %c0_50 = arith.constant 0 : index
    %156 = vector.load %arg10[%c0_49, %c0_50] : memref<1x32xf32, #tpu.memory_space<vmem>>, vector<1x32xf32>
    %157 = vector.broadcast %156 : vector<1x32xf32> to vector<16x32xf32>
    %158 = arith.addf %155, %157 : vector<16x32xf32>
    %159 = vector.shape_cast %158 : vector<16x32xf32> to vector<2x8x32xf32>
    %160 = arith.addf %0, %159 : vector<2x8x32xf32>
    %c0_51 = arith.constant 0 : index
    %c0_52 = arith.constant 0 : index
    %c0_53 = arith.constant 0 : index
    %161 = vector.load %arg11[%c0_51, %c0_52, %c0_53] : memref<2x8x32xf32, #tpu.memory_space<vmem>>, vector<2x8x32xf32>
    tpu.vector_store %arg11[%c0_51, %c0_52, %c0_53], %160 {strides = array<i32>} : memref<2x8x32xf32, #tpu.memory_space<vmem>>, vector<2x8x32xf32>,
    return
  }
}

module attributes {stable_mosaic.version = 11 : i64} {
  func.func @_ffn_sublayer_kernel(%arg0: memref<2x8x32xf32, #tpu.memory_space<vmem>>, %arg1: memref<1x32xf32, #tpu.memory_space<vmem>>, %arg2: memref<1x32xf32, #tpu.memory_space<vmem>>, %arg3: memref<32x32xf32, #tpu.memory_space<vmem>>, %arg4: memref<1x32xf32, #tpu.memory_space<vmem>>, %arg5: memref<32x32xf32, #tpu.memory_space<vmem>>, %arg6: memref<1x32xf32, #tpu.memory_space<vmem>>, %arg7: memref<2x8x32xf32, #tpu.memory_space<vmem>>) attributes {dimension_semantics = [], scalar_prefetch = 0 : i64, scratch_operands = 0 : i64, tpu.core_type = #tpu.core_type<tc>} {
    %c0 = arith.constant 0 : index
    %c0_0 = arith.constant 0 : index
    %c0_1 = arith.constant 0 : index
    %0 = vector.load %arg0[%c0, %c0_0, %c0_1] : memref<2x8x32xf32, #tpu.memory_space<vmem>>, vector<2x8x32xf32>
    %1 = vector.shape_cast %0 : vector<2x8x32xf32> to vector<16x32xf32>
    %c0_2 = arith.constant 0 : index
    %c0_3 = arith.constant 0 : index
    %2 = vector.load %arg1[%c0_2, %c0_3] : memref<1x32xf32, #tpu.memory_space<vmem>>, vector<1x32xf32>
    %c0_4 = arith.constant 0 : index
    %c0_5 = arith.constant 0 : index
    %3 = vector.load %arg2[%c0_4, %c0_5] : memref<1x32xf32, #tpu.memory_space<vmem>>, vector<1x32xf32>
    %cst = arith.constant dense<0.000000e+00> : vector<16xf32>
    %4 = vector.multi_reduction <add>, %1, %cst [1] : vector<16x32xf32> to vector<16xf32>
    %5 = vector.shape_cast %4 : vector<16xf32> to vector<16x1xf32>
    %cst_6 = arith.constant 3.200000e+01 : f32
    %6 = vector.broadcast %cst_6 : f32 to vector<16x1xf32>
    %7 = arith.divf %5, %6 : vector<16x1xf32>
    %8 = vector.broadcast %7 : vector<16x1xf32> to vector<16x32xf32>
    %9 = arith.subf %1, %8 : vector<16x32xf32>
    %10 = arith.mulf %9, %9 : vector<16x32xf32>
    %cst_7 = arith.constant dense<0.000000e+00> : vector<16xf32>
    %11 = vector.multi_reduction <add>, %10, %cst_7 [1] : vector<16x32xf32> to vector<16xf32>
    %12 = vector.shape_cast %11 : vector<16xf32> to vector<16x1xf32>
    %cst_8 = arith.constant 3.200000e+01 : f32
    %13 = vector.broadcast %cst_8 : f32 to vector<16x1xf32>
    %14 = arith.divf %12, %13 : vector<16x1xf32>
    %15 = vector.broadcast %7 : vector<16x1xf32> to vector<16x32xf32>
    %16 = arith.subf %1, %15 : vector<16x32xf32>
    %cst_9 = arith.constant 9.99999974E-6 : f32
    %17 = vector.broadcast %cst_9 : f32 to vector<16x1xf32>
    %18 = arith.addf %14, %17 : vector<16x1xf32>
    %19 = math.rsqrt %18 : vector<16x1xf32>
    %20 = vector.broadcast %19 : vector<16x1xf32> to vector<16x32xf32>
    %21 = arith.mulf %16, %20 : vector<16x32xf32>
    %22 = vector.broadcast %2 : vector<1x32xf32> to vector<16x32xf32>
    %23 = arith.mulf %21, %22 : vector<16x32xf32>
    %24 = vector.broadcast %3 : vector<1x32xf32> to vector<16x32xf32>
    %25 = arith.addf %23, %24 : vector<16x32xf32>
    %c0_10 = arith.constant 0 : index
    %c0_11 = arith.constant 0 : index
    %26 = vector.load %arg3[%c0_10, %c0_11] : memref<32x32xf32, #tpu.memory_space<vmem>>, vector<32x32xf32>
    %27 = arith.truncf %25 : vector<16x32xf32> to vector<16x32xbf16>
    %28 = arith.truncf %26 : vector<32x32xf32> to vector<32x32xbf16>
    %cst_12 = arith.constant dense<0.000000e+00> : vector<16x32xf32>
    %29 = tpu.matmul %27, %28, %cst_12 {dimension_numbers = #tpu.dot_dimension_numbers<[1], [0], [0], [1], [0, 0, 1, 1], [], []>} : vector<16x32xbf16>, vector<32x32xbf16>, vector<16x32xf32> -> vector<16x32xf32>
    %c0_13 = arith.constant 0 : index
    %c0_14 = arith.constant 0 : index
    %30 = vector.load %arg4[%c0_13, %c0_14] : memref<1x32xf32, #tpu.memory_space<vmem>>, vector<1x32xf32>
    %31 = vector.broadcast %30 : vector<1x32xf32> to vector<16x32xf32>
    %32 = arith.addf %29, %31 : vector<16x32xf32>
    %cst_15 = arith.constant 0.000000e+00 : f32
    %33 = vector.broadcast %cst_15 : f32 to vector<16x32xf32>
    %34 = arith.maximumf %32, %33 : vector<16x32xf32>
    %c0_16 = arith.constant 0 : index
    %c0_17 = arith.constant 0 : index
    %35 = vector.load %arg5[%c0_16, %c0_17] : memref<32x32xf32, #tpu.memory_space<vmem>>, vector<32x32xf32>
    %36 = arith.truncf %34 : vector<16x32xf32> to vector<16x32xbf16>
    %37 = arith.truncf %35 : vector<32x32xf32> to vector<32x32xbf16>
    %cst_18 = arith.constant dense<0.000000e+00> : vector<16x32xf32>
    %38 = tpu.matmul %36, %37, %cst_18 {dimension_numbers = #tpu.dot_dimension_numbers<[1], [0], [0], [1], [0, 0, 1, 1], [], []>} : vector<16x32xbf16>, vector<32x32xbf16>, vector<16x32xf32> -> vector<16x32xf32>
    %c0_19 = arith.constant 0 : index
    %c0_20 = arith.constant 0 : index
    %39 = vector.load %arg6[%c0_19, %c0_20] : memref<1x32xf32, #tpu.memory_space<vmem>>, vector<1x32xf32>
    %40 = vector.broadcast %39 : vector<1x32xf32> to vector<16x32xf32>
    %41 = arith.addf %38, %40 : vector<16x32xf32>
    %42 = vector.shape_cast %41 : vector<16x32xf32> to vector<2x8x32xf32>
    %43 = arith.addf %0, %42 : vector<2x8x32xf32>
    %c0_21 = arith.constant 0 : index
    %c0_22 = arith.constant 0 : index
    %c0_23 = arith.constant 0 : index
    %44 = vector.load %arg7[%c0_21, %c0_22, %c0_23] : memref<2x8x32xf32, #tpu.memory_space<vmem>>, vector<2x8x32xf32>
    tpu.vector_store %arg7[%c0_21, %c0_22, %c0_23], %43 {strides = array<i32>} : memref<2x8x32xf32, #tpu.memory_space<vmem>>, vector<2x8x32xf32>,
    return
  }
}

module attributes {stable_mosaic.version = 11 : i64} {
  func.func @_attn_sublayer_kernel(%arg0: memref<2x8x32xf32, #tpu.memory_space<vmem>>, %arg1: memref<2x8x32xf32, #tpu.memory_space<vmem>>, %arg2: memref<2x8xf32, #tpu.memory_space<vmem>>, %arg3: memref<1x32xf32, #tpu.memory_space<vmem>>, %arg4: memref<1x32xf32, #tpu.memory_space<vmem>>, %arg5: memref<32x32xf32, #tpu.memory_space<vmem>>, %arg6: memref<1x32xf32, #tpu.memory_space<vmem>>, %arg7: memref<32x64xf32, #tpu.memory_space<vmem>>, %arg8: memref<1x64xf32, #tpu.memory_space<vmem>>, %arg9: memref<32x32xf32, #tpu.memory_space<vmem>>, %arg10: memref<1x32xf32, #tpu.memory_space<vmem>>, %arg11: memref<2x8x32xf32, #tpu.memory_space<vmem>>) attributes {dimension_semantics = [], scalar_prefetch = 0 : i64, scratch_operands = 0 : i64, tpu.core_type = #tpu.core_type<tc>} {
    %c0 = arith.constant 0 : index
    %c0_0 = arith.constant 0 : index
    %c0_1 = arith.constant 0 : index
    %0 = vector.load %arg0[%c0, %c0_0, %c0_1] : memref<2x8x32xf32, #tpu.memory_space<vmem>>, vector<2x8x32xf32>
    %1 = vector.shape_cast %0 : vector<2x8x32xf32> to vector<16x32xf32>
    %c0_2 = arith.constant 0 : index
    %c0_3 = arith.constant 0 : index
    %2 = vector.load %arg3[%c0_2, %c0_3] : memref<1x32xf32, #tpu.memory_space<vmem>>, vector<1x32xf32>
    %c0_4 = arith.constant 0 : index
    %c0_5 = arith.constant 0 : index
    %3 = vector.load %arg4[%c0_4, %c0_5] : memref<1x32xf32, #tpu.memory_space<vmem>>, vector<1x32xf32>
    %cst = arith.constant dense<0.000000e+00> : vector<16xf32>
    %4 = vector.multi_reduction <add>, %1, %cst [1] : vector<16x32xf32> to vector<16xf32>
    %5 = vector.shape_cast %4 : vector<16xf32> to vector<16x1xf32>
    %cst_6 = arith.constant 3.200000e+01 : f32
    %6 = vector.broadcast %cst_6 : f32 to vector<16x1xf32>
    %7 = arith.divf %5, %6 : vector<16x1xf32>
    %8 = vector.broadcast %7 : vector<16x1xf32> to vector<16x32xf32>
    %9 = arith.subf %1, %8 : vector<16x32xf32>
    %10 = arith.mulf %9, %9 : vector<16x32xf32>
    %cst_7 = arith.constant dense<0.000000e+00> : vector<16xf32>
    %11 = vector.multi_reduction <add>, %10, %cst_7 [1] : vector<16x32xf32> to vector<16xf32>
    %12 = vector.shape_cast %11 : vector<16xf32> to vector<16x1xf32>
    %cst_8 = arith.constant 3.200000e+01 : f32
    %13 = vector.broadcast %cst_8 : f32 to vector<16x1xf32>
    %14 = arith.divf %12, %13 : vector<16x1xf32>
    %15 = vector.broadcast %7 : vector<16x1xf32> to vector<16x32xf32>
    %16 = arith.subf %1, %15 : vector<16x32xf32>
    %cst_9 = arith.constant 9.99999974E-6 : f32
    %17 = vector.broadcast %cst_9 : f32 to vector<16x1xf32>
    %18 = arith.addf %14, %17 : vector<16x1xf32>
    %19 = math.rsqrt %18 : vector<16x1xf32>
    %20 = vector.broadcast %19 : vector<16x1xf32> to vector<16x32xf32>
    %21 = arith.mulf %16, %20 : vector<16x32xf32>
    %22 = vector.broadcast %2 : vector<1x32xf32> to vector<16x32xf32>
    %23 = arith.mulf %21, %22 : vector<16x32xf32>
    %24 = vector.broadcast %3 : vector<1x32xf32> to vector<16x32xf32>
    %25 = arith.addf %23, %24 : vector<16x32xf32>
    %c0_10 = arith.constant 0 : index
    %c0_11 = arith.constant 0 : index
    %26 = vector.load %arg5[%c0_10, %c0_11] : memref<32x32xf32, #tpu.memory_space<vmem>>, vector<32x32xf32>
    %27 = arith.truncf %25 : vector<16x32xf32> to vector<16x32xbf16>
    %28 = arith.truncf %26 : vector<32x32xf32> to vector<32x32xbf16>
    %cst_12 = arith.constant dense<0.000000e+00> : vector<16x32xf32>
    %29 = tpu.matmul %27, %28, %cst_12 {dimension_numbers = #tpu.dot_dimension_numbers<[1], [0], [0], [1], [0, 0, 1, 1], [], []>} : vector<16x32xbf16>, vector<32x32xbf16>, vector<16x32xf32> -> vector<16x32xf32>
    %c0_13 = arith.constant 0 : index
    %c0_14 = arith.constant 0 : index
    %30 = vector.load %arg6[%c0_13, %c0_14] : memref<1x32xf32, #tpu.memory_space<vmem>>, vector<1x32xf32>
    %31 = vector.broadcast %30 : vector<1x32xf32> to vector<16x32xf32>
    %32 = arith.addf %29, %31 : vector<16x32xf32>
    %c0_15 = arith.constant 0 : index
    %c0_16 = arith.constant 0 : index
    %33 = vector.load %arg7[%c0_15, %c0_16] : memref<32x64xf32, #tpu.memory_space<vmem>>, vector<32x64xf32>
    %34 = arith.truncf %25 : vector<16x32xf32> to vector<16x32xbf16>
    %35 = arith.truncf %33 : vector<32x64xf32> to vector<32x64xbf16>
    %cst_17 = arith.constant dense<0.000000e+00> : vector<16x64xf32>
    %36 = tpu.matmul %34, %35, %cst_17 {dimension_numbers = #tpu.dot_dimension_numbers<[1], [0], [0], [1], [0, 0, 1, 1], [], []>} : vector<16x32xbf16>, vector<32x64xbf16>, vector<16x64xf32> -> vector<16x64xf32>
    %c0_18 = arith.constant 0 : index
    %c0_19 = arith.constant 0 : index
    %37 = vector.load %arg8[%c0_18, %c0_19] : memref<1x64xf32, #tpu.memory_space<vmem>>, vector<1x64xf32>
    %38 = vector.broadcast %37 : vector<1x64xf32> to vector<16x64xf32>
    %39 = arith.addf %36, %38 : vector<16x64xf32>
    %40 = vector.extract_strided_slice %39 {offsets = [0, 0], sizes = [16, 32], strides = [1, 1]} : vector<16x64xf32> to vector<16x32xf32>
    %41 = vector.shape_cast %40 : vector<16x32xf32> to vector<2x8x32xf32>
    %42 = vector.extract_strided_slice %39 {offsets = [0, 32], sizes = [16, 32], strides = [1, 1]} : vector<16x64xf32> to vector<16x32xf32>
    %43 = vector.shape_cast %42 : vector<16x32xf32> to vector<2x8x32xf32>
    %44 = vector.shape_cast %32 : vector<16x32xf32> to vector<2x8x32xf32>
    %c0_20 = arith.constant 0 : index
    %c0_21 = arith.constant 0 : index
    %45 = vector.load %arg2[%c0_20, %c0_21] : memref<2x8xf32, #tpu.memory_space<vmem>>, vector<2x8xf32>
    %46 = vector.shape_cast %45 : vector<2x8xf32> to vector<2x1x8xf32>
    %cst_22 = arith.constant -1.000000e+30 : f32
    %47 = vector.broadcast %cst_22 : f32 to vector<2x1x8xf32>
    %48 = arith.mulf %46, %47 : vector<2x1x8xf32>
    %49 = tpu.iota {dimensions = array<i32: 0>} : vector<8x8xi32>
    %50 = tpu.iota {dimensions = array<i32: 1>} : vector<8x8xi32>
    %51 = arith.cmpi sgt, %50, %49 : vector<8x8xi32>
    %cst_23 = arith.constant -1.000000e+30 : f32
    %cst_24 = arith.constant 0.000000e+00 : f32
    %52 = vector.broadcast %cst_23 : f32 to vector<8x8xf32>
    %53 = vector.broadcast %cst_24 : f32 to vector<8x8xf32>
    %54 = arith.select %51, %52, %53 : vector<8x8xi1>, vector<8x8xf32>
    %55 = vector.shape_cast %54 : vector<8x8xf32> to vector<1x8x8xf32>
    %56 = vector.broadcast %48 : vector<2x1x8xf32> to vector<2x8x8xf32>
    %57 = vector.broadcast %55 : vector<1x8x8xf32> to vector<2x8x8xf32>
    %58 = arith.addf %56, %57 : vector<2x8x8xf32>
    %cst_25 = arith.constant 0.000000e+00 : f32
    %59 = vector.broadcast %cst_25 : f32 to vector<16x32xf32>
    %60 = vector.extract_strided_slice %44 {offsets = [0, 0, 0], sizes = [2, 8, 8], strides = [1, 1, 1]} : vector<2x8x32xf32> to vector<2x8x8xf32>
    %61 = arith.truncf %60 : vector<2x8x8xf32> to vector<2x8x8xbf16>
    %62 = vector.extract_strided_slice %41 {offsets = [0, 0, 0], sizes = [2, 8, 8], strides = [1, 1, 1]} : vector<2x8x32xf32> to vector<2x8x8xf32>
    %63 = arith.truncf %62 : vector<2x8x8xf32> to vector<2x8x8xbf16>
    "tpu.trace_start"() <{level = 10 : i32, message = "bqd,bkd->bqk"}> : () -> ()
    %cst_26 = arith.constant dense<0.000000e+00> : vector<2x8x8xf32>
    %64 = tpu.matmul %61, %63, %cst_26 {dimension_numbers = #tpu.dot_dimension_numbers<[2], [2], [1], [1], [0, 0, 0, 1, 1, 1], [0], [0]>} : vector<2x8x8xbf16>, vector<2x8x8xbf16>, vector<2x8x8xf32> -> vector<2x8x8xf32>
    "tpu.trace_stop"() : () -> ()
    %65 = arith.addf %64, %58 : vector<2x8x8xf32>
    %cst_27 = arith.constant dense<0xFF800000> : vector<2x8xf32>
    %66 = vector.multi_reduction <maximumf>, %65, %cst_27 [2] : vector<2x8x8xf32> to vector<2x8xf32>
    %67 = vector.shape_cast %66 : vector<2x8xf32> to vector<2x8x1xf32>
    %68 = vector.broadcast %67 : vector<2x8x1xf32> to vector<2x8x8xf32>
    %69 = arith.subf %65, %68 : vector<2x8x8xf32>
    %70 = math.exp %69 : vector<2x8x8xf32>
    %cst_28 = arith.constant dense<0.000000e+00> : vector<2x8xf32>
    %71 = vector.multi_reduction <add>, %70, %cst_28 [2] : vector<2x8x8xf32> to vector<2x8xf32>
    %72 = vector.shape_cast %71 : vector<2x8xf32> to vector<2x8x1xf32>
    %73 = arith.truncf %70 : vector<2x8x8xf32> to vector<2x8x8xbf16>
    %74 = vector.extract_strided_slice %43 {offsets = [0, 0, 0], sizes = [2, 8, 8], strides = [1, 1, 1]} : vector<2x8x32xf32> to vector<2x8x8xf32>
    %75 = arith.truncf %74 : vector<2x8x8xf32> to vector<2x8x8xbf16>
    "tpu.trace_start"() <{level = 10 : i32, message = "bqk,bkd->bqd"}> : () -> ()
    %cst_29 = arith.constant dense<0.000000e+00> : vector<2x8x8xf32>
    %76 = tpu.matmul %73, %75, %cst_29 {dimension_numbers = #tpu.dot_dimension_numbers<[2], [1], [1], [2], [0, 0, 0, 1, 1, 2], [0], [0]>} : vector<2x8x8xbf16>, vector<2x8x8xbf16>, vector<2x8x8xf32> -> vector<2x8x8xf32>
    "tpu.trace_stop"() : () -> ()
    %77 = tpu.reciprocal %72 {approx = true} : vector<2x8x1xf32> -> vector<2x8x1xf32>
    %78 = vector.broadcast %77 : vector<2x8x1xf32> to vector<2x8x8xf32>
    %79 = arith.mulf %76, %78 : vector<2x8x8xf32>
    %80 = vector.shape_cast %79 : vector<2x8x8xf32> to vector<16x8xf32>
    %c0_30 = arith.constant 0 : index
    %c0_31 = arith.constant 0 : index
    %81 = vector.load %arg9[%c0_30, %c0_31] : memref<32x32xf32, #tpu.memory_space<vmem>>, vector<8x32xf32>
    %82 = arith.truncf %80 : vector<16x8xf32> to vector<16x8xbf16>
    %83 = arith.truncf %81 : vector<8x32xf32> to vector<8x32xbf16>
    %cst_32 = arith.constant dense<0.000000e+00> : vector<16x32xf32>
    %84 = tpu.matmul %82, %83, %cst_32 {dimension_numbers = #tpu.dot_dimension_numbers<[1], [0], [0], [1], [0, 0, 1, 1], [], []>} : vector<16x8xbf16>, vector<8x32xbf16>, vector<16x32xf32> -> vector<16x32xf32>
    %85 = arith.addf %59, %84 : vector<16x32xf32>
    %86 = vector.extract_strided_slice %44 {offsets = [0, 0, 8], sizes = [2, 8, 8], strides = [1, 1, 1]} : vector<2x8x32xf32> to vector<2x8x8xf32>
    %87 = arith.truncf %86 : vector<2x8x8xf32> to vector<2x8x8xbf16>
    %88 = vector.extract_strided_slice %41 {offsets = [0, 0, 8], sizes = [2, 8, 8], strides = [1, 1, 1]} : vector<2x8x32xf32> to vector<2x8x8xf32>
    %89 = arith.truncf %88 : vector<2x8x8xf32> to vector<2x8x8xbf16>
    "tpu.trace_start"() <{level = 10 : i32, message = "bqd,bkd->bqk"}> : () -> ()
    %cst_33 = arith.constant dense<0.000000e+00> : vector<2x8x8xf32>
    %90 = tpu.matmul %87, %89, %cst_33 {dimension_numbers = #tpu.dot_dimension_numbers<[2], [2], [1], [1], [0, 0, 0, 1, 1, 1], [0], [0]>} : vector<2x8x8xbf16>, vector<2x8x8xbf16>, vector<2x8x8xf32> -> vector<2x8x8xf32>
    "tpu.trace_stop"() : () -> ()
    %91 = arith.addf %90, %58 : vector<2x8x8xf32>
    %cst_34 = arith.constant dense<0xFF800000> : vector<2x8xf32>
    %92 = vector.multi_reduction <maximumf>, %91, %cst_34 [2] : vector<2x8x8xf32> to vector<2x8xf32>
    %93 = vector.shape_cast %92 : vector<2x8xf32> to vector<2x8x1xf32>
    %94 = vector.broadcast %93 : vector<2x8x1xf32> to vector<2x8x8xf32>
    %95 = arith.subf %91, %94 : vector<2x8x8xf32>
    %96 = math.exp %95 : vector<2x8x8xf32>
    %cst_35 = arith.constant dense<0.000000e+00> : vector<2x8xf32>
    %97 = vector.multi_reduction <add>, %96, %cst_35 [2] : vector<2x8x8xf32> to vector<2x8xf32>
    %98 = vector.shape_cast %97 : vector<2x8xf32> to vector<2x8x1xf32>
    %99 = arith.truncf %96 : vector<2x8x8xf32> to vector<2x8x8xbf16>
    %100 = vector.extract_strided_slice %43 {offsets = [0, 0, 8], sizes = [2, 8, 8], strides = [1, 1, 1]} : vector<2x8x32xf32> to vector<2x8x8xf32>
    %101 = arith.truncf %100 : vector<2x8x8xf32> to vector<2x8x8xbf16>
    "tpu.trace_start"() <{level = 10 : i32, message = "bqk,bkd->bqd"}> : () -> ()
    %cst_36 = arith.constant dense<0.000000e+00> : vector<2x8x8xf32>
    %102 = tpu.matmul %99, %101, %cst_36 {dimension_numbers = #tpu.dot_dimension_numbers<[2], [1], [1], [2], [0, 0, 0, 1, 1, 2], [0], [0]>} : vector<2x8x8xbf16>, vector<2x8x8xbf16>, vector<2x8x8xf32> -> vector<2x8x8xf32>
    "tpu.trace_stop"() : () -> ()
    %103 = tpu.reciprocal %98 {approx = true} : vector<2x8x1xf32> -> vector<2x8x1xf32>
    %104 = vector.broadcast %103 : vector<2x8x1xf32> to vector<2x8x8xf32>
    %105 = arith.mulf %102, %104 : vector<2x8x8xf32>
    %106 = vector.shape_cast %105 : vector<2x8x8xf32> to vector<16x8xf32>
    %c8 = arith.constant 8 : index
    %c0_37 = arith.constant 0 : index
    %107 = vector.load %arg9[%c8, %c0_37] : memref<32x32xf32, #tpu.memory_space<vmem>>, vector<8x32xf32>
    %108 = arith.truncf %106 : vector<16x8xf32> to vector<16x8xbf16>
    %109 = arith.truncf %107 : vector<8x32xf32> to vector<8x32xbf16>
    %cst_38 = arith.constant dense<0.000000e+00> : vector<16x32xf32>
    %110 = tpu.matmul %108, %109, %cst_38 {dimension_numbers = #tpu.dot_dimension_numbers<[1], [0], [0], [1], [0, 0, 1, 1], [], []>} : vector<16x8xbf16>, vector<8x32xbf16>, vector<16x32xf32> -> vector<16x32xf32>
    %111 = arith.addf %85, %110 : vector<16x32xf32>
    %112 = vector.extract_strided_slice %44 {offsets = [0, 0, 16], sizes = [2, 8, 8], strides = [1, 1, 1]} : vector<2x8x32xf32> to vector<2x8x8xf32>
    %113 = arith.truncf %112 : vector<2x8x8xf32> to vector<2x8x8xbf16>
    %114 = vector.extract_strided_slice %41 {offsets = [0, 0, 16], sizes = [2, 8, 8], strides = [1, 1, 1]} : vector<2x8x32xf32> to vector<2x8x8xf32>
    %115 = arith.truncf %114 : vector<2x8x8xf32> to vector<2x8x8xbf16>
    "tpu.trace_start"() <{level = 10 : i32, message = "bqd,bkd->bqk"}> : () -> ()
    %cst_39 = arith.constant dense<0.000000e+00> : vector<2x8x8xf32>
    %116 = tpu.matmul %113, %115, %cst_39 {dimension_numbers = #tpu.dot_dimension_numbers<[2], [2], [1], [1], [0, 0, 0, 1, 1, 1], [0], [0]>} : vector<2x8x8xbf16>, vector<2x8x8xbf16>, vector<2x8x8xf32> -> vector<2x8x8xf32>
    "tpu.trace_stop"() : () -> ()
    %117 = arith.addf %116, %58 : vector<2x8x8xf32>
    %cst_40 = arith.constant dense<0xFF800000> : vector<2x8xf32>
    %118 = vector.multi_reduction <maximumf>, %117, %cst_40 [2] : vector<2x8x8xf32> to vector<2x8xf32>
    %119 = vector.shape_cast %118 : vector<2x8xf32> to vector<2x8x1xf32>
    %120 = vector.broadcast %119 : vector<2x8x1xf32> to vector<2x8x8xf32>
    %121 = arith.subf %117, %120 : vector<2x8x8xf32>
    %122 = math.exp %121 : vector<2x8x8xf32>
    %cst_41 = arith.constant dense<0.000000e+00> : vector<2x8xf32>
    %123 = vector.multi_reduction <add>, %122, %cst_41 [2] : vector<2x8x8xf32> to vector<2x8xf32>
    %124 = vector.shape_cast %123 : vector<2x8xf32> to vector<2x8x1xf32>
    %125 = arith.truncf %122 : vector<2x8x8xf32> to vector<2x8x8xbf16>
    %126 = vector.extract_strided_slice %43 {offsets = [0, 0, 16], sizes = [2, 8, 8], strides = [1, 1, 1]} : vector<2x8x32xf32> to vector<2x8x8xf32>
    %127 = arith.truncf %126 : vector<2x8x8xf32> to vector<2x8x8xbf16>
    "tpu.trace_start"() <{level = 10 : i32, message = "bqk,bkd->bqd"}> : () -> ()
    %cst_42 = arith.constant dense<0.000000e+00> : vector<2x8x8xf32>
    %128 = tpu.matmul %125, %127, %cst_42 {dimension_numbers = #tpu.dot_dimension_numbers<[2], [1], [1], [2], [0, 0, 0, 1, 1, 2], [0], [0]>} : vector<2x8x8xbf16>, vector<2x8x8xbf16>, vector<2x8x8xf32> -> vector<2x8x8xf32>
    "tpu.trace_stop"() : () -> ()
    %129 = tpu.reciprocal %124 {approx = true} : vector<2x8x1xf32> -> vector<2x8x1xf32>
    %130 = vector.broadcast %129 : vector<2x8x1xf32> to vector<2x8x8xf32>
    %131 = arith.mulf %128, %130 : vector<2x8x8xf32>
    %132 = vector.shape_cast %131 : vector<2x8x8xf32> to vector<16x8xf32>
    %c16 = arith.constant 16 : index
    %c0_43 = arith.constant 0 : index
    %133 = vector.load %arg9[%c16, %c0_43] : memref<32x32xf32, #tpu.memory_space<vmem>>, vector<8x32xf32>
    %134 = arith.truncf %132 : vector<16x8xf32> to vector<16x8xbf16>
    %135 = arith.truncf %133 : vector<8x32xf32> to vector<8x32xbf16>
    %cst_44 = arith.constant dense<0.000000e+00> : vector<16x32xf32>
    %136 = tpu.matmul %134, %135, %cst_44 {dimension_numbers = #tpu.dot_dimension_numbers<[1], [0], [0], [1], [0, 0, 1, 1], [], []>} : vector<16x8xbf16>, vector<8x32xbf16>, vector<16x32xf32> -> vector<16x32xf32>
    %137 = arith.addf %111, %136 : vector<16x32xf32>
    %138 = vector.extract_strided_slice %44 {offsets = [0, 0, 24], sizes = [2, 8, 8], strides = [1, 1, 1]} : vector<2x8x32xf32> to vector<2x8x8xf32>
    %139 = arith.truncf %138 : vector<2x8x8xf32> to vector<2x8x8xbf16>
    %140 = vector.extract_strided_slice %41 {offsets = [0, 0, 24], sizes = [2, 8, 8], strides = [1, 1, 1]} : vector<2x8x32xf32> to vector<2x8x8xf32>
    %141 = arith.truncf %140 : vector<2x8x8xf32> to vector<2x8x8xbf16>
    "tpu.trace_start"() <{level = 10 : i32, message = "bqd,bkd->bqk"}> : () -> ()
    %cst_45 = arith.constant dense<0.000000e+00> : vector<2x8x8xf32>
    %142 = tpu.matmul %139, %141, %cst_45 {dimension_numbers = #tpu.dot_dimension_numbers<[2], [2], [1], [1], [0, 0, 0, 1, 1, 1], [0], [0]>} : vector<2x8x8xbf16>, vector<2x8x8xbf16>, vector<2x8x8xf32> -> vector<2x8x8xf32>
    "tpu.trace_stop"() : () -> ()
    %143 = arith.addf %142, %58 : vector<2x8x8xf32>
    %cst_46 = arith.constant dense<0xFF800000> : vector<2x8xf32>
    %144 = vector.multi_reduction <maximumf>, %143, %cst_46 [2] : vector<2x8x8xf32> to vector<2x8xf32>
    %145 = vector.shape_cast %144 : vector<2x8xf32> to vector<2x8x1xf32>
    %146 = vector.broadcast %145 : vector<2x8x1xf32> to vector<2x8x8xf32>
    %147 = arith.subf %143, %146 : vector<2x8x8xf32>
    %148 = math.exp %147 : vector<2x8x8xf32>
    %cst_47 = arith.constant dense<0.000000e+00> : vector<2x8xf32>
    %149 = vector.multi_reduction <add>, %148, %cst_47 [2] : vector<2x8x8xf32> to vector<2x8xf32>
    %150 = vector.shape_cast %149 : vector<2x8xf32> to vector<2x8x1xf32>
    %151 = arith.truncf %148 : vector<2x8x8xf32> to vector<2x8x8xbf16>
    %152 = vector.extract_strided_slice %43 {offsets = [0, 0, 24], sizes = [2, 8, 8], strides = [1, 1, 1]} : vector<2x8x32xf32> to vector<2x8x8xf32>
    %153 = arith.truncf %152 : vector<2x8x8xf32> to vector<2x8x8xbf16>
    "tpu.trace_start"() <{level = 10 : i32, message = "bqk,bkd->bqd"}> : () -> ()
    %cst_48 = arith.constant dense<0.000000e+00> : vector<2x8x8xf32>
    %154 = tpu.matmul %151, %153, %cst_48 {dimension_numbers = #tpu.dot_dimension_numbers<[2], [1], [1], [2], [0, 0, 0, 1, 1, 2], [0], [0]>} : vector<2x8x8xbf16>, vector<2x8x8xbf16>, vector<2x8x8xf32> -> vector<2x8x8xf32>
    "tpu.trace_stop"() : () -> ()
    %155 = tpu.reciprocal %150 {approx = true} : vector<2x8x1xf32> -> vector<2x8x1xf32>
    %156 = vector.broadcast %155 : vector<2x8x1xf32> to vector<2x8x8xf32>
    %157 = arith.mulf %154, %156 : vector<2x8x8xf32>
    %158 = vector.shape_cast %157 : vector<2x8x8xf32> to vector<16x8xf32>
    %c24 = arith.constant 24 : index
    %c0_49 = arith.constant 0 : index
    %159 = vector.load %arg9[%c24, %c0_49] : memref<32x32xf32, #tpu.memory_space<vmem>>, vector<8x32xf32>
    %160 = arith.truncf %158 : vector<16x8xf32> to vector<16x8xbf16>
    %161 = arith.truncf %159 : vector<8x32xf32> to vector<8x32xbf16>
    %cst_50 = arith.constant dense<0.000000e+00> : vector<16x32xf32>
    %162 = tpu.matmul %160, %161, %cst_50 {dimension_numbers = #tpu.dot_dimension_numbers<[1], [0], [0], [1], [0, 0, 1, 1], [], []>} : vector<16x8xbf16>, vector<8x32xbf16>, vector<16x32xf32> -> vector<16x32xf32>
    %163 = arith.addf %137, %162 : vector<16x32xf32>
    %c0_51 = arith.constant 0 : index
    %c0_52 = arith.constant 0 : index
    %164 = vector.load %arg10[%c0_51, %c0_52] : memref<1x32xf32, #tpu.memory_space<vmem>>, vector<1x32xf32>
    %165 = vector.broadcast %164 : vector<1x32xf32> to vector<16x32xf32>
    %166 = arith.addf %163, %165 : vector<16x32xf32>
    %167 = vector.shape_cast %166 : vector<16x32xf32> to vector<2x8x32xf32>
    %168 = arith.addf %0, %167 : vector<2x8x32xf32>
    %c0_53 = arith.constant 0 : index
    %c0_54 = arith.constant 0 : index
    %c0_55 = arith.constant 0 : index
    %169 = vector.load %arg11[%c0_53, %c0_54, %c0_55] : memref<2x8x32xf32, #tpu.memory_space<vmem>>, vector<2x8x32xf32>
    tpu.vector_store %arg11[%c0_53, %c0_54, %c0_55], %168 {strides = array<i32>} : memref<2x8x32xf32, #tpu.memory_space<vmem>>, vector<2x8x32xf32>,
    return
  }
}

module attributes {stable_mosaic.version = 11 : i64} {
  func.func @_linear_kernel(%arg0: i32, %arg1: i32, %arg2: memref<16x32xf32, #tpu.memory_space<vmem>>, %arg3: memref<32x128xf32, #tpu.memory_space<vmem>>, %arg4: memref<1x128xf32, #tpu.memory_space<vmem>>, %arg5: memref<16x128xf32, #tpu.memory_space<vmem>>) attributes {dimension_semantics = [#tpu.dimension_semantics<parallel>, #tpu.dimension_semantics<parallel>], iteration_bounds = array<i64: 1, 1>, scalar_prefetch = 0 : i64, scratch_operands = 0 : i64, tpu.core_type = #tpu.core_type<tc>, window_params = [{transform_indices = @transform_0, window_bounds = array<i64: 16, 32>}, {transform_indices = @transform_1, window_bounds = array<i64: 32, 128>}, {transform_indices = @transform_2, window_bounds = array<i64: 1, 128>}, {transform_indices = @transform_3, window_bounds = array<i64: 16, 128>}]} {
    %c0 = arith.constant 0 : index
    %c0_0 = arith.constant 0 : index
    %0 = vector.load %arg2[%c0, %c0_0] : memref<16x32xf32, #tpu.memory_space<vmem>>, vector<16x32xf32>
    %c0_1 = arith.constant 0 : index
    %c0_2 = arith.constant 0 : index
    %1 = vector.load %arg3[%c0_1, %c0_2] : memref<32x128xf32, #tpu.memory_space<vmem>>, vector<32x128xf32>
    %2 = arith.truncf %0 : vector<16x32xf32> to vector<16x32xbf16>
    %3 = arith.truncf %1 : vector<32x128xf32> to vector<32x128xbf16>
    %cst = arith.constant dense<0.000000e+00> : vector<16x128xf32>
    %4 = tpu.matmul %2, %3, %cst {dimension_numbers = #tpu.dot_dimension_numbers<[1], [0], [0], [1], [0, 0, 1, 1], [], []>} : vector<16x32xbf16>, vector<32x128xbf16>, vector<16x128xf32> -> vector<16x128xf32>
    %c0_3 = arith.constant 0 : index
    %c0_4 = arith.constant 0 : index
    %5 = vector.load %arg4[%c0_3, %c0_4] : memref<1x128xf32, #tpu.memory_space<vmem>>, vector<1x128xf32>
    %6 = vector.broadcast %5 : vector<1x128xf32> to vector<16x128xf32>
    %7 = arith.addf %4, %6 : vector<16x128xf32>
    %c0_5 = arith.constant 0 : index
    %c0_6 = arith.constant 0 : index
    %8 = vector.load %arg5[%c0_5, %c0_6] : memref<16x128xf32, #tpu.memory_space<vmem>>, vector<16x128xf32>
    tpu.vector_store %arg5[%c0_5, %c0_6], %7 {strides = array<i32>} : memref<16x128xf32, #tpu.memory_space<vmem>>, vector<16x128xf32>,
    return
  }
  func.func @transform_0(%arg0: i32, %arg1: i32) -> (i32, i32) {
    %c0_i32 = arith.constant 0 : i32
    %c0_i32_0 = arith.constant 0 : i32
    return %arg0, %c0_i32 : i32, i32
  }
  func.func @transform_1(%arg0: i32, %arg1: i32) -> (i32, i32) {
    %c0_i32 = arith.constant 0 : i32
    %c0_i32_0 = arith.constant 0 : i32
    return %c0_i32, %arg1 : i32, i32
  }
  func.func @transform_2(%arg0: i32, %arg1: i32) -> (i32, i32) {
    %c0_i32 = arith.constant 0 : i32
    %c0_i32_0 = arith.constant 0 : i32
    return %c0_i32, %arg1 : i32, i32
  }
  func.func @transform_3(%arg0: i32, %arg1: i32) -> (i32, i32) {
    %c0_i32 = arith.constant 0 : i32
    return %arg0, %arg1 : i32, i32
  }
}

</mosaic_0001>

<llo_original>
// kernel: encoder_decoder_forward.12
$region0: #{encoder_decoder_forward.12}
  #allocation0 [shape = 'u32[]', space=smem, size = 0x4, offset = 0x4, fixed_abs, tag = 'smem constant byte address 0x4 - core index']
  #allocation1 [shape = 'u32[144,128]{1,0:T(1,128)}', space=vmem, size = 0x12000, scoped, tag = 'internal scratch']
  %s0 = inlined_call_operand.vmem [shape: f32[2,8,32], index: 0, kind: input, shape index: {}]
  %s1 = inlined_call_operand.vmem [shape: f32[1,32], index: 1, kind: input, shape index: {}]
  %s2 = inlined_call_operand.vmem [shape: f32[1,32], index: 2, kind: input, shape index: {}]
  %s3 = inlined_call_operand.vmem [shape: f32[32,32], index: 3, kind: input, shape index: {}]
  %s4 = inlined_call_operand.vmem [shape: f32[1,32], index: 4, kind: input, shape index: {}]
  %s5 = inlined_call_operand.vmem [shape: f32[32,32], index: 5, kind: input, shape index: {}]
  %s6 = inlined_call_operand.vmem [shape: f32[1,32], index: 6, kind: input, shape index: {}]
  %s7 = inlined_call_operand.vmem [shape: f32[2,8,32], index: 7, kind: output, shape index: {}]
  %s8 = sld [smem:[#allocation0]]
  $region38: #{encoder_decoder_forward.12} parent=0
    _
  %s10 = ssub.s32 1, %s8
  %s11 = scalar_select 0, %s10, %s8
  // Predicated region
  $region2: #{encoder_decoder_forward.12} parent=0 // pred_check
    _
  $region3: #{encoder_decoder_forward.12} parent=0 // pred_check_branch
    %13 = sbr.rel (0) target = $region5
  $region4: #{encoder_decoder_forward.12} parent=0 // pred_region
    _
  $region5: #{encoder_decoder_forward.12} parent=0 // pred_fallthru
    _
  // Predicated region
  $region6: #{encoder_decoder_forward.12} parent=0 // pred_check
    _
  $region7: #{encoder_decoder_forward.12} parent=0 // pred_check_branch
    %15 = sbr.rel (0) target = $region9
  $region8: #{encoder_decoder_forward.12} parent=0 // pred_region
    _
  $region9: #{encoder_decoder_forward.12} parent=0 // pred_fallthru
    _
  // Predicated region
  $region10: #{encoder_decoder_forward.12} parent=0 // pred_check
    _
  $region11: #{encoder_decoder_forward.12} parent=0 // pred_check_branch
    %17 = sbr.rel (0) target = $region13
  $region12: #{encoder_decoder_forward.12} parent=0 // pred_region
    _
  $region13: #{encoder_decoder_forward.12} parent=0 // pred_fallthru
    _
  // Predicated region
  $region14: #{encoder_decoder_forward.12} parent=0 // pred_check
    _
  $region15: #{encoder_decoder_forward.12} parent=0 // pred_check_branch
    %19 = sbr.rel (0) target = $region17
  $region16: #{encoder_decoder_forward.12} parent=0 // pred_region
    _
  $region17: #{encoder_decoder_forward.12} parent=0 // pred_fallthru
    _
  // Predicated region
  $region18: #{encoder_decoder_forward.12} parent=0 // pred_check
    _
  $region19: #{encoder_decoder_forward.12} parent=0 // pred_check_branch
    %21 = sbr.rel (0) target = $region21
  $region20: #{encoder_decoder_forward.12} parent=0 // pred_region
    _
  $region21: #{encoder_decoder_forward.12} parent=0 // pred_fallthru
    _
  // Predicated region
  $region22: #{encoder_decoder_forward.12} parent=0 // pred_check
    _
  $region23: #{encoder_decoder_forward.12} parent=0 // pred_check_branch
    %23 = sbr.rel (0) target = $region25
  $region24: #{encoder_decoder_forward.12} parent=0 // pred_region
    _
  $region25: #{encoder_decoder_forward.12} parent=0 // pred_fallthru
    _
  // Predicated region
  $region26: #{encoder_decoder_forward.12} parent=0 // pred_check
    _
  $region27: #{encoder_decoder_forward.12} parent=0 // pred_check_branch
    %25 = sbr.rel (0) target = $region29
  $region28: #{encoder_decoder_forward.12} parent=0 // pred_region
    _
  $region29: #{encoder_decoder_forward.12} parent=0 // pred_fallthru
    _
  %v27 = vld [vmem:[%s0] sm:$0xff]
  %v28 = vld [vmem:[%s0 + $0x8] sm:$0xff]
  %v29 = vld [vmem:[%s1] sm:$0x1]
  %v30 = vld [vmem:[%s2] sm:$0x1]
  %vm31 = vcmask 261120
  %v32 = vsel %vm31, %v27, 0.0
  %33 = vadd.xlane.f32.xlu0 %v32
  %v34 = vpop.xlane.xlu0 %33
  %v35 = vsel %vm31, %v28, 0.0
  %36 = vadd.xlane.f32.xlu0 %v35
  %v37 = vpop.xlane.xlu0 %36
  %v38 = vrcp.pop 32.0
  %v39 = vmul.f32 %v34, %v38
  %v40 = vmul.f32 %v37, %v38
  %v41 = vsub.f32 %v27, %v39
  %v42 = vsub.f32 %v28, %v40
  %v43 = vmul.f32 %v41, %v41
  %v44 = vmul.f32 %v42, %v42
  %v45 = vsel %vm31, %v43, 0.0
  %46 = vadd.xlane.f32.xlu0 %v45
  %v47 = vpop.xlane.xlu0 %46
  %v48 = vsel %vm31, %v44, 0.0
  %49 = vadd.xlane.f32.xlu0 %v48
  %v50 = vpop.xlane.xlu0 %49
  %v51 = vmul.f32 %v47, %v38
  %v52 = vmul.f32 %v50, %v38
  %v53 = vadd.f32 %v51, 1e-05
  %v54 = vadd.f32 %v52, 1e-05
  %v55 = vrsqrt.pop %v53
  %v56 = vrsqrt.pop %v54
  %v57 = vmul.f32 %v41, %v55
  %v58 = vmul.f32 %v42, %v56
  %v60 = vlaneseq
  %v61 = vshrl.u32 %v60, 7
  %v62 = vsub.s32 0, %v61
  %v63 = vrot.slane %v29, %v62
  %v65 = vmul.f32 %v57, %v63
  %v66 = vmul.f32 %v58, %v63
  %v68 = vlaneseq
  %v69 = vshrl.u32 %v68, 7
  %v70 = vsub.s32 0, %v69
  %v71 = vrot.slane %v30, %v70
  %v73 = vadd.f32 %v65, %v71
  %v74 = vadd.f32 %v66, %v71
  %v75 = vld [vmem:[%s3] sm:$0xff]
  %v76 = vld [vmem:[%s3 + $0x8] sm:$0xff]
  %v77 = vld [vmem:[%s3 + $0x10] sm:$0xff]
  %v78 = vld [vmem:[%s3 + $0x18] sm:$0xff]
  %v79 = vpack.c.bf16 %v74, %v73
  %v80 = vpack.c.bf16 %v76, %v75
  %v81 = vpack.c.bf16 %v78, %v77
  %v82 = vld [vmem:[%s4] sm:$0x1]
  %v84 = vlaneseq
  %v85 = vshrl.u32 %v84, 7
  %v86 = vsub.s32 0, %v85
  %v87 = vrot.slane %v82, %v86
  %v90 = vsel %vm31, %v79, 0
  %92 = vmatprep.subr.bf16.mxu0 0
  %93 = vmatpush1.bf16.msra.mxu0 0
  %94 = vmatprep.subr.bf16.mxu0 0
  %95 = vmatpush1.bf16.msra.mxu0 0
  %96 = vmatprep.subr.bf16.mxu0 0
  %97 = vmatpush1.bf16.msra.mxu0 0
  %98 = vmatprep.subr.bf16.mxu0 0
  %99 = vmatpush1.bf16.msra.mxu0 0
  %100 = vmatprep.subr.bf16.mxu0 0
  %101 = vmatpush1.bf16.msra.mxu0 0
  %102 = vmatprep.subr.bf16.mxu0 0
  %103 = vmatpush1.bf16.msra.mxu0 0
  %104 = vmatprep.subr.bf16.mxu0 0
  %105 = vmatpush1.bf16.msra.mxu0 %v81
  %106 = vmatprep.subr.bf16.mxu0 0
  %107 = vmatpush1.bf16.msra.mxu0 %v80
  %108 = vmatprep.subr.bf16.mxu0 0
  %109 = vmatpush2.bf16.msra.mxu0 0
  %110 = vmatprep.subr.bf16.mxu0 0
  %111 = vmatpush2.bf16.msra.mxu0 0
  %112 = vmatprep.subr.bf16.mxu0 0
  %113 = vmatpush2.bf16.msra.mxu0 0
  %114 = vmatprep.subr.bf16.mxu0 0
  %115 = vmatpush2.bf16.msra.mxu0 0
  %116 = vmatprep.subr.bf16.mxu0 0
  %117 = vmatpush2.bf16.msra.mxu0 0
  %118 = vmatprep.subr.bf16.mxu0 0
  %119 = vmatpush2.bf16.msra.mxu0 0
  %120 = vmatprep.subr.bf16.mxu0 0
  %121 = vmatpush2.bf16.msra.mxu0 0
  %122 = vmatprep.subr.bf16.mxu0 0
  %123 = vmatpush2.bf16.msra.mxu0 0
  %124 = vmatprep.mubr.bf16.mxu0 0
  %125 = vmatmul.mubr.bf16.gmra.mxu0 %v90
  %v126 = vpop.f32.mrf.mxu0
  %v127 = vadd.f32 %v87, %v126
  %v128 = vpop.f32.mrf.mxu0
  %v129 = vpop.f32.mrf.mxu0
  %v130 = vadd.f32 %v87, %v129
  %v131 = vpop.f32.mrf.mxu0
  %132 = vdwg.mxu0
  %v133 = vmax.f32 %v127, 0.0
  %v134 = vmax.f32 %v130, 0.0
  %v135 = vld [vmem:[%s5] sm:$0xff]
  %v136 = vld [vmem:[%s5 + $0x8] sm:$0xff]
  %v137 = vld [vmem:[%s5 + $0x10] sm:$0xff]
  %v138 = vld [vmem:[%s5 + $0x18] sm:$0xff]
  %v139 = vpack.c.bf16 %v134, %v133
  %v140 = vpack.c.bf16 %v136, %v135
  %v141 = vpack.c.bf16 %v138, %v137
  %v142 = vld [vmem:[%s6] sm:$0x1]
  %v144 = vlaneseq
  %v145 = vshrl.u32 %v144, 7
  %v146 = vsub.s32 0, %v145
  %v147 = vrot.slane %v142, %v146
  %v150 = vsel %vm31, %v139, 0
  %152 = vmatprep.subr.bf16.mxu0 0
  %153 = vmatpush1.bf16.msra.mxu0 0
  %154 = vmatprep.subr.bf16.mxu0 0
  %155 = vmatpush1.bf16.msra.mxu0 0
  %156 = vmatprep.subr.bf16.mxu0 0
  %157 = vmatpush1.bf16.msra.mxu0 0
  %158 = vmatprep.subr.bf16.mxu0 0
  %159 = vmatpush1.bf16.msra.mxu0 0
  %160 = vmatprep.subr.bf16.mxu0 0
  %161 = vmatpush1.bf16.msra.mxu0 0
  %162 = vmatprep.subr.bf16.mxu0 0
  %163 = vmatpush1.bf16.msra.mxu0 0
  %164 = vmatprep.subr.bf16.mxu0 0
  %165 = vmatpush1.bf16.msra.mxu0 %v141
  %166 = vmatprep.subr.bf16.mxu0 0
  %167 = vmatpush1.bf16.msra.mxu0 %v140
  %168 = vmatprep.subr.bf16.mxu0 0
  %169 = vmatpush2.bf16.msra.mxu0 0
  %170 = vmatprep.subr.bf16.mxu0 0
  %171 = vmatpush2.bf16.msra.mxu0 0
  %172 = vmatprep.subr.bf16.mxu0 0
  %173 = vmatpush2.bf16.msra.mxu0 0
  %174 = vmatprep.subr.bf16.mxu0 0
  %175 = vmatpush2.bf16.msra.mxu0 0
  %176 = vmatprep.subr.bf16.mxu0 0
  %177 = vmatpush2.bf16.msra.mxu0 0
  %178 = vmatprep.subr.bf16.mxu0 0
  %179 = vmatpush2.bf16.msra.mxu0 0
  %180 = vmatprep.subr.bf16.mxu0 0
  %181 = vmatpush2.bf16.msra.mxu0 0
  %182 = vmatprep.subr.bf16.mxu0 0
  %183 = vmatpush2.bf16.msra.mxu0 0
  %184 = vmatprep.mubr.bf16.mxu0 0
  %185 = vmatmul.mubr.bf16.gmra.mxu0 %v150
  %v186 = vpop.f32.mrf.mxu0
  %v187 = vadd.f32 %v147, %v186
  %v188 = vpop.f32.mrf.mxu0
  %v189 = vpop.f32.mrf.mxu0
  %v190 = vadd.f32 %v147, %v189
  %v191 = vpop.f32.mrf.mxu0
  %192 = vdwg.mxu0
  %v193 = vadd.f32 %v27, %v187
  %v194 = vadd.f32 %v28, %v190
  %195 = vst.msk [vmem:[%s7] sm:$0xff] %vm31, %v193
  %196 = vst.msk [vmem:[%s7 + $0x8] sm:$0xff] %vm31, %v194
  // Predicated region
  $region30: #{encoder_decoder_forward.12} parent=0 // pred_check
    _
  $region31: #{encoder_decoder_forward.12} parent=0 // pred_check_branch
    %198 = sbr.rel (0) target = $region33
  $region32: #{encoder_decoder_forward.12} parent=0 // pred_region
    _
  $region33: #{encoder_decoder_forward.12} parent=0 // pred_fallthru
    _
  // Predicated region
  $region34: #{encoder_decoder_forward.12} parent=0 // pred_check
    _
  $region35: #{encoder_decoder_forward.12} parent=0 // pred_check_branch
    %200 = sbr.rel (0) target = $region37
  $region36: #{encoder_decoder_forward.12} parent=0 // pred_region
    _
  $region37: #{encoder_decoder_forward.12} parent=0 // pred_fallthru
    _

// kernel: encoder_decoder_forward.16
$region0: #{encoder_decoder_forward.16}
  #allocation0 [shape = 'u32[]', space=smem, size = 0x4, offset = 0x4, fixed_abs, tag = 'smem constant byte address 0x4 - core index']
  #allocation1 [shape = 'u32[144,128]{1,0:T(1,128)}', space=vmem, size = 0x12000, scoped, tag = 'internal scratch']
  %s0 = inlined_call_operand.vmem [shape: f32[2,8,32], index: 0, kind: input, shape index: {}]
  %s1 = inlined_call_operand.vmem [shape: f32[2,8,32], index: 1, kind: input, shape index: {}]
  %s2 = inlined_call_operand.vmem [shape: f32[2,8], index: 2, kind: input, shape index: {}]
  %s3 = inlined_call_operand.vmem [shape: f32[1,32], index: 3, kind: input, shape index: {}]
  %s4 = inlined_call_operand.vmem [shape: f32[1,32], index: 4, kind: input, shape index: {}]
  %s5 = inlined_call_operand.vmem [shape: f32[32,32], index: 5, kind: input, shape index: {}]
  %s6 = inlined_call_operand.vmem [shape: f32[1,32], index: 6, kind: input, shape index: {}]
  %s7 = inlined_call_operand.vmem [shape: f32[32,64], index: 7, kind: input, shape index: {}]
  %s8 = inlined_call_operand.vmem [shape: f32[1,64], index: 8, kind: input, shape index: {}]
  %s9 = inlined_call_operand.vmem [shape: f32[32,32], index: 9, kind: input, shape index: {}]
  %s10 = inlined_call_operand.vmem [shape: f32[1,32], index: 10, kind: input, shape index: {}]
  %s11 = inlined_call_operand.vmem [shape: f32[2,8,32], index: 11, kind: output, shape index: {}]
  %s12 = sld [smem:[#allocation0]]
  $region54: #{encoder_decoder_forward.16} parent=0
    _
  %s14 = ssub.s32 1, %s12
  %s15 = scalar_select 0, %s14, %s12
  // Predicated region
  $region2: #{encoder_decoder_forward.16} parent=0 // pred_check
    _
  $region3: #{encoder_decoder_forward.16} parent=0 // pred_check_branch
    %17 = sbr.rel (0) target = $region5
  $region4: #{encoder_decoder_forward.16} parent=0 // pred_region
    _
  $region5: #{encoder_decoder_forward.16} parent=0 // pred_fallthru
    _
  // Predicated region
  $region6: #{encoder_decoder_forward.16} parent=0 // pred_check
    _
  $region7: #{encoder_decoder_forward.16} parent=0 // pred_check_branch
    %19 = sbr.rel (0) target = $region9
  $region8: #{encoder_decoder_forward.16} parent=0 // pred_region
    _
  $region9: #{encoder_decoder_forward.16} parent=0 // pred_fallthru
    _
  // Predicated region
  $region10: #{encoder_decoder_forward.16} parent=0 // pred_check
    _
  $region11: #{encoder_decoder_forward.16} parent=0 // pred_check_branch
    %21 = sbr.rel (0) target = $region13
  $region12: #{encoder_decoder_forward.16} parent=0 // pred_region
    _
  $region13: #{encoder_decoder_forward.16} parent=0 // pred_fallthru
    _
  // Predicated region
  $region14: #{encoder_decoder_forward.16} parent=0 // pred_check
    _
  $region15: #{encoder_decoder_forward.16} parent=0 // pred_check_branch
    %23 = sbr.rel (0) target = $region17
  $region16: #{encoder_decoder_forward.16} parent=0 // pred_region
    _
  $region17: #{encoder_decoder_forward.16} parent=0 // pred_fallthru
    _
  // Predicated region
  $region18: #{encoder_decoder_forward.16} parent=0 // pred_check
    _
  $region19: #{encoder_decoder_forward.16} parent=0 // pred_check_branch
    %25 = sbr.rel (0) target = $region21
  $region20: #{encoder_decoder_forward.16} parent=0 // pred_region
    _
  $region21: #{encoder_decoder_forward.16} parent=0 // pred_fallthru
    _
  // Predicated region
  $region22: #{encoder_decoder_forward.16} parent=0 // pred_check
    _
  $region23: #{encoder_decoder_forward.16} parent=0 // pred_check_branch
    %27 = sbr.rel (0) target = $region25
  $region24: #{encoder_decoder_forward.16} parent=0 // pred_region
    _
  $region25: #{encoder_decoder_forward.16} parent=0 // pred_fallthru
    _
  // Predicated region
  $region26: #{encoder_decoder_forward.16} parent=0 // pred_check
    _
  $region27: #{encoder_decoder_forward.16} parent=0 // pred_check_branch
    %29 = sbr.rel (0) target = $region29
  $region28: #{encoder_decoder_forward.16} parent=0 // pred_region
    _
  $region29: #{encoder_decoder_forward.16} parent=0 // pred_fallthru
    _
  // Predicated region
  $region30: #{encoder_decoder_forward.16} parent=0 // pred_check
    _
  $region31: #{encoder_decoder_forward.16} parent=0 // pred_check_branch
    %31 = sbr.rel (0) target = $region33
  $region32: #{encoder_decoder_forward.16} parent=0 // pred_region
    _
  $region33: #{encoder_decoder_forward.16} parent=0 // pred_fallthru
    _
  // Predicated region
  $region34: #{encoder_decoder_forward.16} parent=0 // pred_check
    _
  $region35: #{encoder_decoder_forward.16} parent=0 // pred_check_branch
    %33 = sbr.rel (0) target = $region37
  $region36: #{encoder_decoder_forward.16} parent=0 // pred_region
    _
  $region37: #{encoder_decoder_forward.16} parent=0 // pred_fallthru
    _
  // Predicated region
  $region38: #{encoder_decoder_forward.16} parent=0 // pred_check
    _
  $region39: #{encoder_decoder_forward.16} parent=0 // pred_check_branch
    %35 = sbr.rel (0) target = $region41
  $region40: #{encoder_decoder_forward.16} parent=0 // pred_region
    _
  $region41: #{encoder_decoder_forward.16} parent=0 // pred_fallthru
    _
  // Predicated region
  $region42: #{encoder_decoder_forward.16} parent=0 // pred_check
    _
  $region43: #{encoder_decoder_forward.16} parent=0 // pred_check_branch
    %37 = sbr.rel (0) target = $region45
  $region44: #{encoder_decoder_forward.16} parent=0 // pred_region
    _
  $region45: #{encoder_decoder_forward.16} parent=0 // pred_fallthru
    _
  %v39 = vld [vmem:[%s0] sm:$0xff]
  %v40 = vld [vmem:[%s0 + $0x8] sm:$0xff]
  %v41 = vld [vmem:[%s3] sm:$0x1]
  %v42 = vld [vmem:[%s4] sm:$0x1]
  %vm43 = vcmask 261120
  %v44 = vsel %vm43, %v39, 0.0
  %45 = vadd.xlane.f32.xlu0 %v44
  %v46 = vpop.xlane.xlu0 %45
  %v47 = vsel %vm43, %v40, 0.0
  %48 = vadd.xlane.f32.xlu0 %v47
  %v49 = vpop.xlane.xlu0 %48
  %v50 = vrcp.pop 32.0
  %v51 = vmul.f32 %v46, %v50
  %v52 = vmul.f32 %v49, %v50
  %v53 = vsub.f32 %v39, %v51
  %v54 = vsub.f32 %v40, %v52
  %v55 = vmul.f32 %v53, %v53
  %v56 = vmul.f32 %v54, %v54
  %v57 = vsel %vm43, %v55, 0.0
  %58 = vadd.xlane.f32.xlu0 %v57
  %v59 = vpop.xlane.xlu0 %58
  %v60 = vsel %vm43, %v56, 0.0
  %61 = vadd.xlane.f32.xlu0 %v60
  %v62 = vpop.xlane.xlu0 %61
  %v63 = vmul.f32 %v59, %v50
  %v64 = vmul.f32 %v62, %v50
  %v65 = vadd.f32 %v63, 1e-05
  %v66 = vadd.f32 %v64, 1e-05
  %v67 = vrsqrt.pop %v65
  %v68 = vrsqrt.pop %v66
  %v69 = vmul.f32 %v53, %v67
  %v70 = vmul.f32 %v54, %v68
  %v72 = vlaneseq
  %v73 = vshrl.u32 %v72, 7
  %v74 = vsub.s32 0, %v73
  %v75 = vrot.slane %v41, %v74
  %v77 = vmul.f32 %v69, %v75
  %v78 = vmul.f32 %v70, %v75
  %v80 = vlaneseq
  %v81 = vshrl.u32 %v80, 7
  %v82 = vsub.s32 0, %v81
  %v83 = vrot.slane %v42, %v82
  %v85 = vadd.f32 %v77, %v83
  %v86 = vadd.f32 %v78, %v83
  %v87 = vld [vmem:[%s5] sm:$0xff]
  %v88 = vld [vmem:[%s5 + $0x8] sm:$0xff]
  %v89 = vld [vmem:[%s5 + $0x10] sm:$0xff]
  %v90 = vld [vmem:[%s5 + $0x18] sm:$0xff]
  %v91 = vpack.c.bf16 %v86, %v85
  %v92 = vpack.c.bf16 %v88, %v87
  %v93 = vpack.c.bf16 %v90, %v89
  %v94 = vld [vmem:[%s6] sm:$0x1]
  %v96 = vlaneseq
  %v97 = vshrl.u32 %v96, 7
  %v98 = vsub.s32 0, %v97
  %v99 = vrot.slane %v94, %v98
  %v102 = vsel %vm43, %v91, 0
  %104 = vmatprep.subr.bf16.mxu0 0
  %105 = vmatpush1.bf16.msra.mxu0 0
  %106 = vmatprep.subr.bf16.mxu0 0
  %107 = vmatpush1.bf16.msra.mxu0 0
  %108 = vmatprep.subr.bf16.mxu0 0
  %109 = vmatpush1.bf16.msra.mxu0 0
  %110 = vmatprep.subr.bf16.mxu0 0
  %111 = vmatpush1.bf16.msra.mxu0 0
  %112 = vmatprep.subr.bf16.mxu0 0
  %113 = vmatpush1.bf16.msra.mxu0 0
  %114 = vmatprep.subr.bf16.mxu0 0
  %115 = vmatpush1.bf16.msra.mxu0 0
  %116 = vmatprep.subr.bf16.mxu0 0
  %117 = vmatpush1.bf16.msra.mxu0 %v93
  %118 = vmatprep.subr.bf16.mxu0 0
  %119 = vmatpush1.bf16.msra.mxu0 %v92
  %120 = vmatprep.subr.bf16.mxu0 0
  %121 = vmatpush2.bf16.msra.mxu0 0
  %122 = vmatprep.subr.bf16.mxu0 0
  %123 = vmatpush2.bf16.msra.mxu0 0
  %124 = vmatprep.subr.bf16.mxu0 0
  %125 = vmatpush2.bf16.msra.mxu0 0
  %126 = vmatprep.subr.bf16.mxu0 0
  %127 = vmatpush2.bf16.msra.mxu0 0
  %128 = vmatprep.subr.bf16.mxu0 0
  %129 = vmatpush2.bf16.msra.mxu0 0
  %130 = vmatprep.subr.bf16.mxu0 0
  %131 = vmatpush2.bf16.msra.mxu0 0
  %132 = vmatprep.subr.bf16.mxu0 0
  %133 = vmatpush2.bf16.msra.mxu0 0
  %134 = vmatprep.subr.bf16.mxu0 0
  %135 = vmatpush2.bf16.msra.mxu0 0
  %136 = vmatprep.mubr.bf16.mxu0 0
  %137 = vmatmul.mubr.bf16.gmra.mxu0 %v102
  %v138 = vpop.f32.mrf.mxu0
  %v139 = vadd.f32 %v99, %v138
  %v140 = vpop.f32.mrf.mxu0
  %v141 = vpop.f32.mrf.mxu0
  %v142 = vadd.f32 %v99, %v141
  %v143 = vpop.f32.mrf.mxu0
  %144 = vdwg.mxu0
  %v145 = vld [vmem:[%s1] sm:$0xff]
  %v146 = vld [vmem:[%s1 + $0x8] sm:$0xff]
  %v147 = vld [vmem:[%s7] sm:$0xff]
  %v148 = vld [vmem:[%s7 + $0x8] sm:$0xff]
  %v149 = vld [vmem:[%s7 + $0x10] sm:$0xff]
  %v150 = vld [vmem:[%s7 + $0x18] sm:$0xff]
  %v151 = vpack.c.bf16 %v146, %v145
  %v152 = vpack.c.bf16 %v148, %v147
  %v153 = vpack.c.bf16 %v150, %v149
  %v154 = vld [vmem:[%s8] sm:$0x1]
  %v156 = vlaneseq
  %v157 = vshrl.u32 %v156, 7
  %v158 = vsub.s32 0, %v157
  %v159 = vrot.slane %v154, %v158
  %v162 = vsel %vm43, %v151, 0
  %164 = vmatprep.subr.bf16.mxu0 0
  %165 = vmatpush1.bf16.msra.mxu0 0
  %166 = vmatprep.subr.bf16.mxu0 0
  %167 = vmatpush1.bf16.msra.mxu0 0
  %168 = vmatprep.subr.bf16.mxu0 0
  %169 = vmatpush1.bf16.msra.mxu0 0
  %170 = vmatprep.subr.bf16.mxu0 0
  %171 = vmatpush1.bf16.msra.mxu0 0
  %172 = vmatprep.subr.bf16.mxu0 0
  %173 = vmatpush1.bf16.msra.mxu0 0
  %174 = vmatprep.subr.bf16.mxu0 0
  %175 = vmatpush1.bf16.msra.mxu0 0
  %176 = vmatprep.subr.bf16.mxu0 0
  %177 = vmatpush1.bf16.msra.mxu0 %v153
  %178 = vmatprep.subr.bf16.mxu0 0
  %179 = vmatpush1.bf16.msra.mxu0 %v152
  %180 = vmatprep.subr.bf16.mxu0 0
  %181 = vmatpush2.bf16.msra.mxu0 0
  %182 = vmatprep.subr.bf16.mxu0 0
  %183 = vmatpush2.bf16.msra.mxu0 0
  %184 = vmatprep.subr.bf16.mxu0 0
  %185 = vmatpush2.bf16.msra.mxu0 0
  %186 = vmatprep.subr.bf16.mxu0 0
  %187 = vmatpush2.bf16.msra.mxu0 0
  %188 = vmatprep.subr.bf16.mxu0 0
  %189 = vmatpush2.bf16.msra.mxu0 0
  %190 = vmatprep.subr.bf16.mxu0 0
  %191 = vmatpush2.bf16.msra.mxu0 0
  %192 = vmatprep.subr.bf16.mxu0 0
  %193 = vmatpush2.bf16.msra.mxu0 0
  %194 = vmatprep.subr.bf16.mxu0 0
  %195 = vmatpush2.bf16.msra.mxu0 0
  %196 = vmatprep.mubr.bf16.mxu0 0
  %197 = vmatmul.mubr.bf16.gmra.mxu0 %v162
  %v198 = vpop.f32.mrf.mxu0
  %v199 = vadd.f32 %v159, %v198
  %v200 = vpop.f32.mrf.mxu0
  %v201 = vpop.f32.mrf.mxu0
  %v202 = vadd.f32 %v159, %v201
  %v203 = vpop.f32.mrf.mxu0
  %204 = vdwg.mxu0
  %v205 = vld [vmem:[%s2] sm:$0x3]
  %v208 = vunpack.c.l.s4 1966171168
  %v209 = vunpack.c.0.s8 %v208
  %v210 = vlaneseq
  %v211 = vshrl.u32 %v210, 7
  %v212 = vsub.s32 %v209, %v211
  %v213 = vrot.slane %v205, %v212
  %v214 = vcombine.high %v213, %v213
  %v216 = vunpack.c.l.s4 1966171168
  %v217 = vunpack.c.0.s8 %v216
  %v218 = vlaneseq
  %v219 = vshrl.u32 %v218, 7
  %v220 = vsub.s32 %v217, %v219
  %v221 = vrot.slane %v213, %v220
  %v223 = vunpack.c.l.s4 1966171168
  %v224 = vunpack.c.0.s8 %v223
  %v225 = vlaneseq
  %v226 = vshrl.u32 %v225, 7
  %v227 = vsub.s32 %v224, %v226
  %v228 = vrot.slane %v214, %v227
  %v231 = vmul.f32 %v221, -1e+30
  %v232 = vmul.f32 %v228, -1e+30
  %v235 = vlaneseq
  %v236 = vshrl.u32 %v235, 7
  %v237 = vsub.s32 0, %v236
  %v238 = vrot.slane %v231, %v237
  %v239 = vlaneseq
  %v240 = vshrl.u32 %v239, 7
  %v241 = vsub.s32 0, %v240
  %v242 = vrot.slane %v232, %v241
  %v245 = vpack.c.bf16 %v139, %v139
  %v246 = vpack.c.bf16 %v142, %v142
  %v247 = vpack.c.bf16 %v199, %v199
  %v248 = vpack.c.bf16 %v202, %v202
  %vm249 = vcmask 64512
  %v251 = vsel %vm249, %v245, 0
  %v254 = vsel %vm249, %v247, 0
  %256 = vmatprep.subr.bf16.mxu0 0
  %257 = vmatpush1.bf16.xpose.msra.mxu0 0
  %258 = vmatprep.subr.bf16.mxu0 0
  %259 = vmatpush1.bf16.xpose.msra.mxu0 0
  %260 = vmatprep.subr.bf16.mxu0 0
  %261 = vmatpush1.bf16.xpose.msra.mxu0 0
  %262 = vmatprep.subr.bf16.mxu0 0
  %263 = vmatpush1.bf16.xpose.msra.mxu0 0
  %264 = vmatprep.subr.bf16.mxu0 0
  %265 = vmatpush1.bf16.xpose.msra.mxu0 0
  %266 = vmatprep.subr.bf16.mxu0 0
  %267 = vmatpush1.bf16.xpose.msra.mxu0 0
  %268 = vmatprep.subr.bf16.mxu0 0
  %269 = vmatpush1.bf16.xpose.msra.mxu0 0
  %270 = vmatprep.subr.bf16.mxu0 0
  %271 = vmatpush1.bf16.xpose.msra.mxu0 %v254
  %272 = vmatprep.subr.bf16.mxu0 0
  %273 = vmatpush2.bf16.xpose.msra.mxu0 0
  %274 = vmatprep.subr.bf16.mxu0 0
  %275 = vmatpush2.bf16.xpose.msra.mxu0 0
  %276 = vmatprep.subr.bf16.mxu0 0
  %277 = vmatpush2.bf16.xpose.msra.mxu0 0
  %278 = vmatprep.subr.bf16.mxu0 0
  %279 = vmatpush2.bf16.xpose.msra.mxu0 0
  %280 = vmatprep.subr.bf16.mxu0 0
  %281 = vmatpush2.bf16.xpose.msra.mxu0 0
  %282 = vmatprep.subr.bf16.mxu0 0
  %283 = vmatpush2.bf16.xpose.msra.mxu0 0
  %284 = vmatprep.subr.bf16.mxu0 0
  %285 = vmatpush2.bf16.xpose.msra.mxu0 0
  %286 = vmatprep.subr.bf16.mxu0 0
  %287 = vmatpush2.bf16.xpose.msra.mxu0 0
  %288 = vmatprep.mubr.bf16.mxu0 0
  %289 = vmatmul.mubr.bf16.gmra.mxu0 %v251
  %v290 = vpop.f32.mrf.mxu0
  %v291 = vadd.f32 %v238, %v290
  %v292 = vpop.f32.mrf.mxu0
  %v293 = vpop.f32.mrf.mxu0
  %v294 = vpop.f32.mrf.mxu0
  %295 = vdwg.mxu0
  %v297 = vsel %vm249, %v246, 0
  %v300 = vsel %vm249, %v248, 0
  %302 = vmatprep.subr.bf16.mxu0 0
  %303 = vmatpush1.bf16.xpose.msra.mxu0 0
  %304 = vmatprep.subr.bf16.mxu0 0
  %305 = vmatpush1.bf16.xpose.msra.mxu0 0
  %306 = vmatprep.subr.bf16.mxu0 0
  %307 = vmatpush1.bf16.xpose.msra.mxu0 0
  %308 = vmatprep.subr.bf16.mxu0 0
  %309 = vmatpush1.bf16.xpose.msra.mxu0 0
  %310 = vmatprep.subr.bf16.mxu0 0
  %311 = vmatpush1.bf16.xpose.msra.mxu0 0
  %312 = vmatprep.subr.bf16.mxu0 0
  %313 = vmatpush1.bf16.xpose.msra.mxu0 0
  %314 = vmatprep.subr.bf16.mxu0 0
  %315 = vmatpush1.bf16.xpose.msra.mxu0 0
  %316 = vmatprep.subr.bf16.mxu0 0
  %317 = vmatpush1.bf16.xpose.msra.mxu0 %v300
  %318 = vmatprep.subr.bf16.mxu0 0
  %319 = vmatpush2.bf16.xpose.msra.mxu0 0
  %320 = vmatprep.subr.bf16.mxu0 0
  %321 = vmatpush2.bf16.xpose.msra.mxu0 0
  %322 = vmatprep.subr.bf16.mxu0 0
  %323 = vmatpush2.bf16.xpose.msra.mxu0 0
  %324 = vmatprep.subr.bf16.mxu0 0
  %325 = vmatpush2.bf16.xpose.msra.mxu0 0
  %326 = vmatprep.subr.bf16.mxu0 0
  %327 = vmatpush2.bf16.xpose.msra.mxu0 0
  %328 = vmatprep.subr.bf16.mxu0 0
  %329 = vmatpush2.bf16.xpose.msra.mxu0 0
  %330 = vmatprep.subr.bf16.mxu0 0
  %331 = vmatpush2.bf16.xpose.msra.mxu0 0
  %332 = vmatprep.subr.bf16.mxu0 0
  %333 = vmatpush2.bf16.xpose.msra.mxu0 0
  %334 = vmatprep.mubr.bf16.mxu0 0
  %335 = vmatmul.mubr.bf16.gmra.mxu0 %v297
  %v336 = vpop.f32.mrf.mxu0
  %v337 = vadd.f32 %v242, %v336
  %v338 = vpop.f32.mrf.mxu0
  %v339 = vpop.f32.mrf.mxu0
  %v340 = vpop.f32.mrf.mxu0
  %341 = vdwg.mxu0
  %v342 = vsel %vm249, %v291, -inf
  %343 = vmax.xlane.f32.xlu0 %v342
  %v344 = vpop.xlane.xlu0 %343
  %v345 = vsel %vm249, %v337, -inf
  %346 = vmax.xlane.f32.xlu0 %v345
  %v347 = vpop.xlane.xlu0 %346
  %v348 = vsub.f32 %v291, %v344
  %v349 = vsub.f32 %v337, %v347
  %v350 = vmul.f32 %v348, 1.442695
  %v351 = vpow.pop %v350
  %v352 = vmul.f32 %v349, 1.442695
  %v353 = vpow.pop %v352
  %v354 = vsel %vm249, %v351, 0.0
  %355 = vadd.xlane.f32.xlu0 %v354
  %v356 = vpop.xlane.xlu0 %355
  %v357 = vsel %vm249, %v353, 0.0
  %358 = vadd.xlane.f32.xlu0 %v357
  %v359 = vpop.xlane.xlu0 %358
  %v360 = vpack.c.bf16 %v351, %v351
  %v361 = vpack.c.bf16 %v353, %v353
  %363 = vrot.lane.b32.xlu0 %v247, 96
  %v364 = vpop.permute.xlu0 %363
  %v366 = vsel %vm249, %v360, 0
  %vm368 = vcmask 1043456
  %v370 = vsel %vm368, %v364, 0
  %372 = vmatprep.subr.bf16.mxu0 0
  %373 = vmatpush1.bf16.msra.mxu0 0
  %374 = vmatprep.subr.bf16.mxu0 0
  %375 = vmatpush1.bf16.msra.mxu0 0
  %376 = vmatprep.subr.bf16.mxu0 0
  %377 = vmatpush1.bf16.msra.mxu0 0
  %378 = vmatprep.subr.bf16.mxu0 0
  %379 = vmatpush1.bf16.msra.mxu0 0
  %380 = vmatprep.subr.bf16.mxu0 0
  %381 = vmatpush1.bf16.msra.mxu0 0
  %382 = vmatprep.subr.bf16.mxu0 0
  %383 = vmatpush1.bf16.msra.mxu0 0
  %384 = vmatprep.subr.bf16.mxu0 0
  %385 = vmatpush1.bf16.msra.mxu0 0
  %386 = vmatprep.subr.bf16.mxu0 0
  %387 = vmatpush1.bf16.msra.mxu0 %v370
  %388 = vmatprep.subr.bf16.mxu0 0
  %389 = vmatpush2.bf16.msra.mxu0 0
  %390 = vmatprep.subr.bf16.mxu0 0
  %391 = vmatpush2.bf16.msra.mxu0 0
  %392 = vmatprep.subr.bf16.mxu0 0
  %393 = vmatpush2.bf16.msra.mxu0 0
  %394 = vmatprep.subr.bf16.mxu0 0
  %395 = vmatpush2.bf16.msra.mxu0 0
  %396 = vmatprep.subr.bf16.mxu0 0
  %397 = vmatpush2.bf16.msra.mxu0 0
  %398 = vmatprep.subr.bf16.mxu0 0
  %399 = vmatpush2.bf16.msra.mxu0 0
  %400 = vmatprep.subr.bf16.mxu0 0
  %401 = vmatpush2.bf16.msra.mxu0 0
  %402 = vmatprep.subr.bf16.mxu0 0
  %403 = vmatpush2.bf16.msra.mxu0 0
  %404 = vmatprep.mubr.bf16.mxu0 0
  %405 = vmatmul.mubr.bf16.gmra.mxu0 %v366
  %v406 = vpop.f32.mrf.mxu0
  %v407 = vadd.f32 0.0, %v406
  %v408 = vpop.f32.mrf.mxu0
  %v409 = vpop.f32.mrf.mxu0
  %v410 = vpop.f32.mrf.mxu0
  %411 = vdwg.mxu0
  %413 = vrot.lane.b32.xlu0 %v248, 96
  %v414 = vpop.permute.xlu0 %413
  %v416 = vsel %vm249, %v361, 0
  %v419 = vsel %vm368, %v414, 0
  %421 = vmatprep.subr.bf16.mxu0 0
  %422 = vmatpush1.bf16.msra.mxu0 0
  %423 = vmatprep.subr.bf16.mxu0 0
  %424 = vmatpush1.bf16.msra.mxu0 0
  %425 = vmatprep.subr.bf16.mxu0 0
  %426 = vmatpush1.bf16.msra.mxu0 0
  %427 = vmatprep.subr.bf16.mxu0 0
  %428 = vmatpush1.bf16.msra.mxu0 0
  %429 = vmatprep.subr.bf16.mxu0 0
  %430 = vmatpush1.bf16.msra.mxu0 0
  %431 = vmatprep.subr.bf16.mxu0 0
  %432 = vmatpush1.bf16.msra.mxu0 0
  %433 = vmatprep.subr.bf16.mxu0 0
  %434 = vmatpush1.bf16.msra.mxu0 0
  %435 = vmatprep.subr.bf16.mxu0 0
  %436 = vmatpush1.bf16.msra.mxu0 %v419
  %437 = vmatprep.subr.bf16.mxu0 0
  %438 = vmatpush2.bf16.msra.mxu0 0
  %439 = vmatprep.subr.bf16.mxu0 0
  %440 = vmatpush2.bf16.msra.mxu0 0
  %441 = vmatprep.subr.bf16.mxu0 0
  %442 = vmatpush2.bf16.msra.mxu0 0
  %443 = vmatprep.subr.bf16.mxu0 0
  %444 = vmatpush2.bf16.msra.mxu0 0
  %445 = vmatprep.subr.bf16.mxu0 0
  %446 = vmatpush2.bf16.msra.mxu0 0
  %447 = vmatprep.subr.bf16.mxu0 0
  %448 = vmatpush2.bf16.msra.mxu0 0
  %449 = vmatprep.subr.bf16.mxu0 0
  %450 = vmatpush2.bf16.msra.mxu0 0
  %451 = vmatprep.subr.bf16.mxu0 0
  %452 = vmatpush2.bf16.msra.mxu0 0
  %453 = vmatprep.mubr.bf16.mxu0 0
  %454 = vmatmul.mubr.bf16.gmra.mxu0 %v416
  %v455 = vpop.f32.mrf.mxu0
  %v456 = vadd.f32 0.0, %v455
  %v457 = vpop.f32.mrf.mxu0
  %v458 = vpop.f32.mrf.mxu0
  %v459 = vpop.f32.mrf.mxu0
  %460 = vdwg.mxu0
  %v461 = vrcp.pop %v356
  %v462 = vrcp.pop %v359
  %v463 = vmul.f32 %v407, %v461
  %v464 = vmul.f32 %v456, %v462
  %v465 = vld [vmem:[%s9] sm:$0xff]
  %v466 = vpack.c.bf16 %v464, %v463
  %v467 = vpack.c.bf16 %v465, %v465
  %469 = vrot.lane.b32.xlu0 %v245, 120
  %v470 = vpop.permute.xlu0 %469
  %471 = vrot.lane.b32.xlu0 %v247, 120
  %v472 = vpop.permute.xlu0 %471
  %v474 = vsel %vm249, %v470, 0
  %v477 = vsel %vm249, %v472, 0
  %479 = vmatprep.subr.bf16.mxu0 0
  %480 = vmatpush1.bf16.xpose.msra.mxu0 0
  %481 = vmatprep.subr.bf16.mxu0 0
  %482 = vmatpush1.bf16.xpose.msra.mxu0 0
  %483 = vmatprep.subr.bf16.mxu0 0
  %484 = vmatpush1.bf16.xpose.msra.mxu0 0
  %485 = vmatprep.subr.bf16.mxu0 0
  %486 = vmatpush1.bf16.xpose.msra.mxu0 0
  %487 = vmatprep.subr.bf16.mxu0 0
  %488 = vmatpush1.bf16.xpose.msra.mxu0 0
  %489 = vmatprep.subr.bf16.mxu0 0
  %490 = vmatpush1.bf16.xpose.msra.mxu0 0
  %491 = vmatprep.subr.bf16.mxu0 0
  %492 = vmatpush1.bf16.xpose.msra.mxu0 0
  %493 = vmatprep.subr.bf16.mxu0 0
  %494 = vmatpush1.bf16.xpose.msra.mxu0 %v477
  %495 = vmatprep.subr.bf16.mxu0 0
  %496 = vmatpush2.bf16.xpose.msra.mxu0 0
  %497 = vmatprep.subr.bf16.mxu0 0
  %498 = vmatpush2.bf16.xpose.msra.mxu0 0
  %499 = vmatprep.subr.bf16.mxu0 0
  %500 = vmatpush2.bf16.xpose.msra.mxu0 0
  %501 = vmatprep.subr.bf16.mxu0 0
  %502 = vmatpush2.bf16.xpose.msra.mxu0 0
  %503 = vmatprep.subr.bf16.mxu0 0
  %504 = vmatpush2.bf16.xpose.msra.mxu0 0
  %505 = vmatprep.subr.bf16.mxu0 0
  %506 = vmatpush2.bf16.xpose.msra.mxu0 0
  %507 = vmatprep.subr.bf16.mxu0 0
  %508 = vmatpush2.bf16.xpose.msra.mxu0 0
  %509 = vmatprep.subr.bf16.mxu0 0
  %510 = vmatpush2.bf16.xpose.msra.mxu0 0
  %511 = vmatprep.mubr.bf16.mxu0 0
  %512 = vmatmul.mubr.bf16.gmra.mxu0 %v474
  %v513 = vpop.f32.mrf.mxu0
  %v514 = vadd.f32 %v238, %v513
  %v515 = vpop.f32.mrf.mxu0
  %v516 = vpop.f32.mrf.mxu0
  %v517 = vpop.f32.mrf.mxu0
  %518 = vdwg.mxu0
  %520 = vrot.lane.b32.xlu0 %v246, 120
  %v521 = vpop.permute.xlu0 %520
  %522 = vrot.lane.b32.xlu0 %v248, 120
  %v523 = vpop.permute.xlu0 %522
  %v525 = vsel %vm249, %v521, 0
  %v528 = vsel %vm249, %v523, 0
  %530 = vmatprep.subr.bf16.mxu0 0
  %531 = vmatpush1.bf16.xpose.msra.mxu0 0
  %532 = vmatprep.subr.bf16.mxu0 0
  %533 = vmatpush1.bf16.xpose.msra.mxu0 0
  %534 = vmatprep.subr.bf16.mxu0 0
  %535 = vmatpush1.bf16.xpose.msra.mxu0 0
  %536 = vmatprep.subr.bf16.mxu0 0
  %537 = vmatpush1.bf16.xpose.msra.mxu0 0
  %538 = vmatprep.subr.bf16.mxu0 0
  %539 = vmatpush1.bf16.xpose.msra.mxu0 0
  %540 = vmatprep.subr.bf16.mxu0 0
  %541 = vmatpush1.bf16.xpose.msra.mxu0 0
  %542 = vmatprep.subr.bf16.mxu0 0
  %543 = vmatpush1.bf16.xpose.msra.mxu0 0
  %544 = vmatprep.subr.bf16.mxu0 0
  %545 = vmatpush1.bf16.xpose.msra.mxu0 %v528
  %546 = vmatprep.subr.bf16.mxu0 0
  %547 = vmatpush2.bf16.xpose.msra.mxu0 0
  %548 = vmatprep.subr.bf16.mxu0 0
  %549 = vmatpush2.bf16.xpose.msra.mxu0 0
  %550 = vmatprep.subr.bf16.mxu0 0
  %551 = vmatpush2.bf16.xpose.msra.mxu0 0
  %552 = vmatprep.subr.bf16.mxu0 0
  %553 = vmatpush2.bf16.xpose.msra.mxu0 0
  %554 = vmatprep.subr.bf16.mxu0 0
  %555 = vmatpush2.bf16.xpose.msra.mxu0 0
  %556 = vmatprep.subr.bf16.mxu0 0
  %557 = vmatpush2.bf16.xpose.msra.mxu0 0
  %558 = vmatprep.subr.bf16.mxu0 0
  %559 = vmatpush2.bf16.xpose.msra.mxu0 0
  %560 = vmatprep.subr.bf16.mxu0 0
  %561 = vmatpush2.bf16.xpose.msra.mxu0 0
  %562 = vmatprep.mubr.bf16.mxu0 0
  %563 = vmatmul.mubr.bf16.gmra.mxu0 %v525
  %v564 = vpop.f32.mrf.mxu0
  %v565 = vadd.f32 %v242, %v564
  %v566 = vpop.f32.mrf.mxu0
  %v567 = vpop.f32.mrf.mxu0
  %v568 = vpop.f32.mrf.mxu0
  %569 = vdwg.mxu0
  %v570 = vsel %vm249, %v514, -inf
  %571 = vmax.xlane.f32.xlu0 %v570
  %v572 = vpop.xlane.xlu0 %571
  %v573 = vsel %vm249, %v565, -inf
  %574 = vmax.xlane.f32.xlu0 %v573
  %v575 = vpop.xlane.xlu0 %574
  %v576 = vsub.f32 %v514, %v572
  %v577 = vsub.f32 %v565, %v575
  %v578 = vmul.f32 %v576, 1.442695
  %v579 = vpow.pop %v578
  %v580 = vmul.f32 %v577, 1.442695
  %v581 = vpow.pop %v580
  %v582 = vsel %vm249, %v579, 0.0
  %583 = vadd.xlane.f32.xlu0 %v582
  %v584 = vpop.xlane.xlu0 %583
  %v585 = vsel %vm249, %v581, 0.0
  %586 = vadd.xlane.f32.xlu0 %v585
  %v587 = vpop.xlane.xlu0 %586
  %v588 = vpack.c.bf16 %v579, %v579
  %v589 = vpack.c.bf16 %v581, %v581
  %590 = vrot.lane.b32.xlu0 %v247, 88
  %v591 = vpop.permute.xlu0 %590
  %v593 = vsel %vm249, %v588, 0
  %v596 = vsel %vm368, %v591, 0
  %598 = vmatprep.subr.bf16.mxu0 0
  %599 = vmatpush1.bf16.msra.mxu0 0
  %600 = vmatprep.subr.bf16.mxu0 0
  %601 = vmatpush1.bf16.msra.mxu0 0
  %602 = vmatprep.subr.bf16.mxu0 0
  %603 = vmatpush1.bf16.msra.mxu0 0
  %604 = vmatprep.subr.bf16.mxu0 0
  %605 = vmatpush1.bf16.msra.mxu0 0
  %606 = vmatprep.subr.bf16.mxu0 0
  %607 = vmatpush1.bf16.msra.mxu0 0
  %608 = vmatprep.subr.bf16.mxu0 0
  %609 = vmatpush1.bf16.msra.mxu0 0
  %610 = vmatprep.subr.bf16.mxu0 0
  %611 = vmatpush1.bf16.msra.mxu0 0
  %612 = vmatprep.subr.bf16.mxu0 0
  %613 = vmatpush1.bf16.msra.mxu0 %v596
  %614 = vmatprep.subr.bf16.mxu0 0
  %615 = vmatpush2.bf16.msra.mxu0 0
  %616 = vmatprep.subr.bf16.mxu0 0
  %617 = vmatpush2.bf16.msra.mxu0 0
  %618 = vmatprep.subr.bf16.mxu0 0
  %619 = vmatpush2.bf16.msra.mxu0 0
  %620 = vmatprep.subr.bf16.mxu0 0
  %621 = vmatpush2.bf16.msra.mxu0 0
  %622 = vmatprep.subr.bf16.mxu0 0
  %623 = vmatpush2.bf16.msra.mxu0 0
  %624 = vmatprep.subr.bf16.mxu0 0
  %625 = vmatpush2.bf16.msra.mxu0 0
  %626 = vmatprep.subr.bf16.mxu0 0
  %627 = vmatpush2.bf16.msra.mxu0 0
  %628 = vmatprep.subr.bf16.mxu0 0
  %629 = vmatpush2.bf16.msra.mxu0 0
  %630 = vmatprep.mubr.bf16.mxu0 0
  %631 = vmatmul.mubr.bf16.gmra.mxu0 %v593
  %v632 = vpop.f32.mrf.mxu0
  %v633 = vadd.f32 0.0, %v632
  %v634 = vpop.f32.mrf.mxu0
  %v635 = vpop.f32.mrf.mxu0
  %v636 = vpop.f32.mrf.mxu0
  %637 = vdwg.mxu0
  %638 = vrot.lane.b32.xlu0 %v248, 88
  %v639 = vpop.permute.xlu0 %638
  %v641 = vsel %vm249, %v589, 0
  %v644 = vsel %vm368, %v639, 0
  %646 = vmatprep.subr.bf16.mxu0 0
  %647 = vmatpush1.bf16.msra.mxu0 0
  %648 = vmatprep.subr.bf16.mxu0 0
  %649 = vmatpush1.bf16.msra.mxu0 0
  %650 = vmatprep.subr.bf16.mxu0 0
  %651 = vmatpush1.bf16.msra.mxu0 0
  %652 = vmatprep.subr.bf16.mxu0 0
  %653 = vmatpush1.bf16.msra.mxu0 0
  %654 = vmatprep.subr.bf16.mxu0 0
  %655 = vmatpush1.bf16.msra.mxu0 0
  %656 = vmatprep.subr.bf16.mxu0 0
  %657 = vmatpush1.bf16.msra.mxu0 0
  %658 = vmatprep.subr.bf16.mxu0 0
  %659 = vmatpush1.bf16.msra.mxu0 0
  %660 = vmatprep.subr.bf16.mxu0 0
  %661 = vmatpush1.bf16.msra.mxu0 %v644
  %662 = vmatprep.subr.bf16.mxu0 0
  %663 = vmatpush2.bf16.msra.mxu0 0
  %664 = vmatprep.subr.bf16.mxu0 0
  %665 = vmatpush2.bf16.msra.mxu0 0
  %666 = vmatprep.subr.bf16.mxu0 0
  %667 = vmatpush2.bf16.msra.mxu0 0
  %668 = vmatprep.subr.bf16.mxu0 0
  %669 = vmatpush2.bf16.msra.mxu0 0
  %670 = vmatprep.subr.bf16.mxu0 0
  %671 = vmatpush2.bf16.msra.mxu0 0
  %672 = vmatprep.subr.bf16.mxu0 0
  %673 = vmatpush2.bf16.msra.mxu0 0
  %674 = vmatprep.subr.bf16.mxu0 0
  %675 = vmatpush2.bf16.msra.mxu0 0
  %676 = vmatprep.subr.bf16.mxu0 0
  %677 = vmatpush2.bf16.msra.mxu0 0
  %678 = vmatprep.mubr.bf16.mxu0 0
  %679 = vmatmul.mubr.bf16.gmra.mxu0 %v641
  %v680 = vpop.f32.mrf.mxu0
  %v681 = vadd.f32 0.0, %v680
  %v682 = vpop.f32.mrf.mxu0
  %v683 = vpop.f32.mrf.mxu0
  %v684 = vpop.f32.mrf.mxu0
  %685 = vdwg.mxu0
  %v686 = vrcp.pop %v584
  %v687 = vrcp.pop %v587
  %v688 = vmul.f32 %v633, %v686
  %v689 = vmul.f32 %v681, %v687
  %v690 = vld [vmem:[%s9 + $0x8] sm:$0xff]
  %v691 = vpack.c.bf16 %v689, %v688
  %v692 = vpack.c.bf16 %v690, %v690
  %v694 = vsel %vm249, %v691, 0
  %v697 = vsel %vm368, %v692, 0
  %699 = vmatprep.subr.bf16.mxu0 0
  %700 = vmatpush1.bf16.msra.mxu0 0
  %701 = vmatprep.subr.bf16.mxu0 0
  %702 = vmatpush1.bf16.msra.mxu0 0
  %703 = vmatprep.subr.bf16.mxu0 0
  %704 = vmatpush1.bf16.msra.mxu0 0
  %705 = vmatprep.subr.bf16.mxu0 0
  %706 = vmatpush1.bf16.msra.mxu0 0
  %707 = vmatprep.subr.bf16.mxu0 0
  %708 = vmatpush1.bf16.msra.mxu0 0
  %709 = vmatprep.subr.bf16.mxu0 0
  %710 = vmatpush1.bf16.msra.mxu0 0
  %711 = vmatprep.subr.bf16.mxu0 0
  %712 = vmatpush1.bf16.msra.mxu0 0
  %713 = vmatprep.subr.bf16.mxu0 0
  %714 = vmatpush1.bf16.msra.mxu0 %v697
  %715 = vmatprep.subr.bf16.mxu0 0
  %716 = vmatpush2.bf16.msra.mxu0 0
  %717 = vmatprep.subr.bf16.mxu0 0
  %718 = vmatpush2.bf16.msra.mxu0 0
  %719 = vmatprep.subr.bf16.mxu0 0
  %720 = vmatpush2.bf16.msra.mxu0 0
  %721 = vmatprep.subr.bf16.mxu0 0
  %722 = vmatpush2.bf16.msra.mxu0 0
  %723 = vmatprep.subr.bf16.mxu0 0
  %724 = vmatpush2.bf16.msra.mxu0 0
  %725 = vmatprep.subr.bf16.mxu0 0
  %726 = vmatpush2.bf16.msra.mxu0 0
  %727 = vmatprep.subr.bf16.mxu0 0
  %728 = vmatpush2.bf16.msra.mxu0 0
  %729 = vmatprep.subr.bf16.mxu0 0
  %730 = vmatpush2.bf16.msra.mxu0 0
  %731 = vmatprep.mubr.bf16.mxu0 0
  %732 = vmatmul.mubr.bf16.gmra.mxu0 %v694
  %v733 = vpop.f32.mrf.mxu0
  %v734 = vadd.f32 0.0, %v733
  %v735 = vpop.f32.mrf.mxu0
  %v736 = vpop.f32.mrf.mxu0
  %v737 = vadd.f32 0.0, %v736
  %v738 = vpop.f32.mrf.mxu0
  %739 = vdwg.mxu0
  %v741 = vsel %vm249, %v466, 0
  %v744 = vsel %vm368, %v467, 0
  %746 = vmatprep.subr.bf16.mxu0 0
  %747 = vmatpush1.bf16.msra.mxu0 0
  %748 = vmatprep.subr.bf16.mxu0 0
  %749 = vmatpush1.bf16.msra.mxu0 0
  %750 = vmatprep.subr.bf16.mxu0 0
  %751 = vmatpush1.bf16.msra.mxu0 0
  %752 = vmatprep.subr.bf16.mxu0 0
  %753 = vmatpush1.bf16.msra.mxu0 0
  %754 = vmatprep.subr.bf16.mxu0 0
  %755 = vmatpush1.bf16.msra.mxu0 0
  %756 = vmatprep.subr.bf16.mxu0 0
  %757 = vmatpush1.bf16.msra.mxu0 0
  %758 = vmatprep.subr.bf16.mxu0 0
  %759 = vmatpush1.bf16.msra.mxu0 0
  %760 = vmatprep.subr.bf16.mxu0 0
  %761 = vmatpush1.bf16.msra.mxu0 %v744
  %762 = vmatprep.subr.bf16.mxu0 0
  %763 = vmatpush2.bf16.msra.mxu0 0
  %764 = vmatprep.subr.bf16.mxu0 0
  %765 = vmatpush2.bf16.msra.mxu0 0
  %766 = vmatprep.subr.bf16.mxu0 0
  %767 = vmatpush2.bf16.msra.mxu0 0
  %768 = vmatprep.subr.bf16.mxu0 0
  %769 = vmatpush2.bf16.msra.mxu0 0
  %770 = vmatprep.subr.bf16.mxu0 0
  %771 = vmatpush2.bf16.msra.mxu0 0
  %772 = vmatprep.subr.bf16.mxu0 0
  %773 = vmatpush2.bf16.msra.mxu0 0
  %774 = vmatprep.subr.bf16.mxu0 0
  %775 = vmatpush2.bf16.msra.mxu0 0
  %776 = vmatprep.subr.bf16.mxu0 0
  %777 = vmatpush2.bf16.msra.mxu0 0
  %778 = vmatprep.mubr.bf16.mxu0 0
  %779 = vmatmul.mubr.bf16.gmra.mxu0 %v741
  %v780 = vpop.f32.mrf.mxu0
  %v781 = vadd.f32 %v734, %v780
  %v782 = vpop.f32.mrf.mxu0
  %v783 = vpop.f32.mrf.mxu0
  %v784 = vadd.f32 %v737, %v783
  %v785 = vpop.f32.mrf.mxu0
  %786 = vdwg.mxu0
  %787 = vrot.lane.b32.xlu0 %v245, 112
  %v788 = vpop.permute.xlu0 %787
  %789 = vrot.lane.b32.xlu0 %v247, 112
  %v790 = vpop.permute.xlu0 %789
  %v792 = vsel %vm249, %v788, 0
  %v795 = vsel %vm249, %v790, 0
  %797 = vmatprep.subr.bf16.mxu0 0
  %798 = vmatpush1.bf16.xpose.msra.mxu0 0
  %799 = vmatprep.subr.bf16.mxu0 0
  %800 = vmatpush1.bf16.xpose.msra.mxu0 0
  %801 = vmatprep.subr.bf16.mxu0 0
  %802 = vmatpush1.bf16.xpose.msra.mxu0 0
  %803 = vmatprep.subr.bf16.mxu0 0
  %804 = vmatpush1.bf16.xpose.msra.mxu0 0
  %805 = vmatprep.subr.bf16.mxu0 0
  %806 = vmatpush1.bf16.xpose.msra.mxu0 0
  %807 = vmatprep.subr.bf16.mxu0 0
  %808 = vmatpush1.bf16.xpose.msra.mxu0 0
  %809 = vmatprep.subr.bf16.mxu0 0
  %810 = vmatpush1.bf16.xpose.msra.mxu0 0
  %811 = vmatprep.subr.bf16.mxu0 0
  %812 = vmatpush1.bf16.xpose.msra.mxu0 %v795
  %813 = vmatprep.subr.bf16.mxu0 0
  %814 = vmatpush2.bf16.xpose.msra.mxu0 0
  %815 = vmatprep.subr.bf16.mxu0 0
  %816 = vmatpush2.bf16.xpose.msra.mxu0 0
  %817 = vmatprep.subr.bf16.mxu0 0
  %818 = vmatpush2.bf16.xpose.msra.mxu0 0
  %819 = vmatprep.subr.bf16.mxu0 0
  %820 = vmatpush2.bf16.xpose.msra.mxu0 0
  %821 = vmatprep.subr.bf16.mxu0 0
  %822 = vmatpush2.bf16.xpose.msra.mxu0 0
  %823 = vmatprep.subr.bf16.mxu0 0
  %824 = vmatpush2.bf16.xpose.msra.mxu0 0
  %825 = vmatprep.subr.bf16.mxu0 0
  %826 = vmatpush2.bf16.xpose.msra.mxu0 0
  %827 = vmatprep.subr.bf16.mxu0 0
  %828 = vmatpush2.bf16.xpose.msra.mxu0 0
  %829 = vmatprep.mubr.bf16.mxu0 0
  %830 = vmatmul.mubr.bf16.gmra.mxu0 %v792
  %v831 = vpop.f32.mrf.mxu0
  %v832 = vadd.f32 %v238, %v831
  %v833 = vpop.f32.mrf.mxu0
  %v834 = vpop.f32.mrf.mxu0
  %v835 = vpop.f32.mrf.mxu0
  %836 = vdwg.mxu0
  %837 = vrot.lane.b32.xlu0 %v246, 112
  %v838 = vpop.permute.xlu0 %837
  %839 = vrot.lane.b32.xlu0 %v248, 112
  %v840 = vpop.permute.xlu0 %839
  %v842 = vsel %vm249, %v838, 0
  %v845 = vsel %vm249, %v840, 0
  %847 = vmatprep.subr.bf16.mxu0 0
  %848 = vmatpush1.bf16.xpose.msra.mxu0 0
  %849 = vmatprep.subr.bf16.mxu0 0
  %850 = vmatpush1.bf16.xpose.msra.mxu0 0
  %851 = vmatprep.subr.bf16.mxu0 0
  %852 = vmatpush1.bf16.xpose.msra.mxu0 0
  %853 = vmatprep.subr.bf16.mxu0 0
  %854 = vmatpush1.bf16.xpose.msra.mxu0 0
  %855 = vmatprep.subr.bf16.mxu0 0
  %856 = vmatpush1.bf16.xpose.msra.mxu0 0
  %857 = vmatprep.subr.bf16.mxu0 0
  %858 = vmatpush1.bf16.xpose.msra.mxu0 0
  %859 = vmatprep.subr.bf16.mxu0 0
  %860 = vmatpush1.bf16.xpose.msra.mxu0 0
  %861 = vmatprep.subr.bf16.mxu0 0
  %862 = vmatpush1.bf16.xpose.msra.mxu0 %v845
  %863 = vmatprep.subr.bf16.mxu0 0
  %864 = vmatpush2.bf16.xpose.msra.mxu0 0
  %865 = vmatprep.subr.bf16.mxu0 0
  %866 = vmatpush2.bf16.xpose.msra.mxu0 0
  %867 = vmatprep.subr.bf16.mxu0 0
  %868 = vmatpush2.bf16.xpose.msra.mxu0 0
  %869 = vmatprep.subr.bf16.mxu0 0
  %870 = vmatpush2.bf16.xpose.msra.mxu0 0
  %871 = vmatprep.subr.bf16.mxu0 0
  %872 = vmatpush2.bf16.xpose.msra.mxu0 0
  %873 = vmatprep.subr.bf16.mxu0 0
  %874 = vmatpush2.bf16.xpose.msra.mxu0 0
  %875 = vmatprep.subr.bf16.mxu0 0
  %876 = vmatpush2.bf16.xpose.msra.mxu0 0
  %877 = vmatprep.subr.bf16.mxu0 0
  %878 = vmatpush2.bf16.xpose.msra.mxu0 0
  %879 = vmatprep.mubr.bf16.mxu0 0
  %880 = vmatmul.mubr.bf16.gmra.mxu0 %v842
  %v881 = vpop.f32.mrf.mxu0
  %v882 = vadd.f32 %v242, %v881
  %v883 = vpop.f32.mrf.mxu0
  %v884 = vpop.f32.mrf.mxu0
  %v885 = vpop.f32.mrf.mxu0
  %886 = vdwg.mxu0
  %v887 = vsel %vm249, %v832, -inf
  %888 = vmax.xlane.f32.xlu0 %v887
  %v889 = vpop.xlane.xlu0 %888
  %v890 = vsel %vm249, %v882, -inf
  %891 = vmax.xlane.f32.xlu0 %v890
  %v892 = vpop.xlane.xlu0 %891
  %v893 = vsub.f32 %v832, %v889
  %v894 = vsub.f32 %v882, %v892
  %v895 = vmul.f32 %v893, 1.442695
  %v896 = vpow.pop %v895
  %v897 = vmul.f32 %v894, 1.442695
  %v898 = vpow.pop %v897
  %v899 = vsel %vm249, %v896, 0.0
  %900 = vadd.xlane.f32.xlu0 %v899
  %v901 = vpop.xlane.xlu0 %900
  %v902 = vsel %vm249, %v898, 0.0
  %903 = vadd.xlane.f32.xlu0 %v902
  %v904 = vpop.xlane.xlu0 %903
  %v905 = vpack.c.bf16 %v896, %v896
  %v906 = vpack.c.bf16 %v898, %v898
  %907 = vrot.lane.b32.xlu0 %v247, 80
  %v908 = vpop.permute.xlu0 %907
  %v910 = vsel %vm249, %v905, 0
  %v913 = vsel %vm368, %v908, 0
  %915 = vmatprep.subr.bf16.mxu0 0
  %916 = vmatpush1.bf16.msra.mxu0 0
  %917 = vmatprep.subr.bf16.mxu0 0
  %918 = vmatpush1.bf16.msra.mxu0 0
  %919 = vmatprep.subr.bf16.mxu0 0
  %920 = vmatpush1.bf16.msra.mxu0 0
  %921 = vmatprep.subr.bf16.mxu0 0
  %922 = vmatpush1.bf16.msra.mxu0 0
  %923 = vmatprep.subr.bf16.mxu0 0
  %924 = vmatpush1.bf16.msra.mxu0 0
  %925 = vmatprep.subr.bf16.mxu0 0
  %926 = vmatpush1.bf16.msra.mxu0 0
  %927 = vmatprep.subr.bf16.mxu0 0
  %928 = vmatpush1.bf16.msra.mxu0 0
  %929 = vmatprep.subr.bf16.mxu0 0
  %930 = vmatpush1.bf16.msra.mxu0 %v913
  %931 = vmatprep.subr.bf16.mxu0 0
  %932 = vmatpush2.bf16.msra.mxu0 0
  %933 = vmatprep.subr.bf16.mxu0 0
  %934 = vmatpush2.bf16.msra.mxu0 0
  %935 = vmatprep.subr.bf16.mxu0 0
  %936 = vmatpush2.bf16.msra.mxu0 0
  %937 = vmatprep.subr.bf16.mxu0 0
  %938 = vmatpush2.bf16.msra.mxu0 0
  %939 = vmatprep.subr.bf16.mxu0 0
  %940 = vmatpush2.bf16.msra.mxu0 0
  %941 = vmatprep.subr.bf16.mxu0 0
  %942 = vmatpush2.bf16.msra.mxu0 0
  %943 = vmatprep.subr.bf16.mxu0 0
  %944 = vmatpush2.bf16.msra.mxu0 0
  %945 = vmatprep.subr.bf16.mxu0 0
  %946 = vmatpush2.bf16.msra.mxu0 0
  %947 = vmatprep.mubr.bf16.mxu0 0
  %948 = vmatmul.mubr.bf16.gmra.mxu0 %v910
  %v949 = vpop.f32.mrf.mxu0
  %v950 = vadd.f32 0.0, %v949
  %v951 = vpop.f32.mrf.mxu0
  %v952 = vpop.f32.mrf.mxu0
  %v953 = vpop.f32.mrf.mxu0
  %954 = vdwg.mxu0
  %955 = vrot.lane.b32.xlu0 %v248, 80
  %v956 = vpop.permute.xlu0 %955
  %v958 = vsel %vm249, %v906, 0
  %v961 = vsel %vm368, %v956, 0
  %963 = vmatprep.subr.bf16.mxu0 0
  %964 = vmatpush1.bf16.msra.mxu0 0
  %965 = vmatprep.subr.bf16.mxu0 0
  %966 = vmatpush1.bf16.msra.mxu0 0
  %967 = vmatprep.subr.bf16.mxu0 0
  %968 = vmatpush1.bf16.msra.mxu0 0
  %969 = vmatprep.subr.bf16.mxu0 0
  %970 = vmatpush1.bf16.msra.mxu0 0
  %971 = vmatprep.subr.bf16.mxu0 0
  %972 = vmatpush1.bf16.msra.mxu0 0
  %973 = vmatprep.subr.bf16.mxu0 0
  %974 = vmatpush1.bf16.msra.mxu0 0
  %975 = vmatprep.subr.bf16.mxu0 0
  %976 = vmatpush1.bf16.msra.mxu0 0
  %977 = vmatprep.subr.bf16.mxu0 0
  %978 = vmatpush1.bf16.msra.mxu0 %v961
  %979 = vmatprep.subr.bf16.mxu0 0
  %980 = vmatpush2.bf16.msra.mxu0 0
  %981 = vmatprep.subr.bf16.mxu0 0
  %982 = vmatpush2.bf16.msra.mxu0 0
  %983 = vmatprep.subr.bf16.mxu0 0
  %984 = vmatpush2.bf16.msra.mxu0 0
  %985 = vmatprep.subr.bf16.mxu0 0
  %986 = vmatpush2.bf16.msra.mxu0 0
  %987 = vmatprep.subr.bf16.mxu0 0
  %988 = vmatpush2.bf16.msra.mxu0 0
  %989 = vmatprep.subr.bf16.mxu0 0
  %990 = vmatpush2.bf16.msra.mxu0 0
  %991 = vmatprep.subr.bf16.mxu0 0
  %992 = vmatpush2.bf16.msra.mxu0 0
  %993 = vmatprep.subr.bf16.mxu0 0
  %994 = vmatpush2.bf16.msra.mxu0 0
  %995 = vmatprep.mubr.bf16.mxu0 0
  %996 = vmatmul.mubr.bf16.gmra.mxu0 %v958
  %v997 = vpop.f32.mrf.mxu0
  %v998 = vadd.f32 0.0, %v997
  %v999 = vpop.f32.mrf.mxu0
  %v1000 = vpop.f32.mrf.mxu0
  %v1001 = vpop.f32.mrf.mxu0
  %1002 = vdwg.mxu0
  %v1003 = vrcp.pop %v901
  %v1004 = vrcp.pop %v904
  %v1005 = vmul.f32 %v950, %v1003
  %v1006 = vmul.f32 %v998, %v1004
  %v1007 = vld [vmem:[%s9 + $0x10] sm:$0xff]
  %v1008 = vpack.c.bf16 %v1006, %v1005
  %v1009 = vpack.c.bf16 %v1007, %v1007
  %v1011 = vsel %vm249, %v1008, 0
  %v1014 = vsel %vm368, %v1009, 0
  %1016 = vmatprep.subr.bf16.mxu0 0
  %1017 = vmatpush1.bf16.msra.mxu0 0
  %1018 = vmatprep.subr.bf16.mxu0 0
  %1019 = vmatpush1.bf16.msra.mxu0 0
  %1020 = vmatprep.subr.bf16.mxu0 0
  %1021 = vmatpush1.bf16.msra.mxu0 0
  %1022 = vmatprep.subr.bf16.mxu0 0
  %1023 = vmatpush1.bf16.msra.mxu0 0
  %1024 = vmatprep.subr.bf16.mxu0 0
  %1025 = vmatpush1.bf16.msra.mxu0 0
  %1026 = vmatprep.subr.bf16.mxu0 0
  %1027 = vmatpush1.bf16.msra.mxu0 0
  %1028 = vmatprep.subr.bf16.mxu0 0
  %1029 = vmatpush1.bf16.msra.mxu0 0
  %1030 = vmatprep.subr.bf16.mxu0 0
  %1031 = vmatpush1.bf16.msra.mxu0 %v1014
  %1032 = vmatprep.subr.bf16.mxu0 0
  %1033 = vmatpush2.bf16.msra.mxu0 0
  %1034 = vmatprep.subr.bf16.mxu0 0
  %1035 = vmatpush2.bf16.msra.mxu0 0
  %1036 = vmatprep.subr.bf16.mxu0 0
  %1037 = vmatpush2.bf16.msra.mxu0 0
  %1038 = vmatprep.subr.bf16.mxu0 0
  %1039 = vmatpush2.bf16.msra.mxu0 0
  %1040 = vmatprep.subr.bf16.mxu0 0
  %1041 = vmatpush2.bf16.msra.mxu0 0
  %1042 = vmatprep.subr.bf16.mxu0 0
  %1043 = vmatpush2.bf16.msra.mxu0 0
  %1044 = vmatprep.subr.bf16.mxu0 0
  %1045 = vmatpush2.bf16.msra.mxu0 0
  %1046 = vmatprep.subr.bf16.mxu0 0
  %1047 = vmatpush2.bf16.msra.mxu0 0
  %1048 = vmatprep.mubr.bf16.mxu0 0
  %1049 = vmatmul.mubr.bf16.gmra.mxu0 %v1011
  %v1050 = vpop.f32.mrf.mxu0
  %v1051 = vadd.f32 0.0, %v1050
  %v1052 = vpop.f32.mrf.mxu0
  %v1053 = vpop.f32.mrf.mxu0
  %v1054 = vadd.f32 0.0, %v1053
  %v1055 = vpop.f32.mrf.mxu0
  %1056 = vdwg.mxu0
  %v1057 = vadd.f32 %v781, %v1051
  %v1058 = vadd.f32 %v784, %v1054
  %1059 = vrot.lane.b32.xlu0 %v245, 104
  %v1060 = vpop.permute.xlu0 %1059
  %1061 = vrot.lane.b32.xlu0 %v247, 104
  %v1062 = vpop.permute.xlu0 %1061
  %v1064 = vsel %vm249, %v1060, 0
  %v1067 = vsel %vm249, %v1062, 0
  %1069 = vmatprep.subr.bf16.mxu0 0
  %1070 = vmatpush1.bf16.xpose.msra.mxu0 0
  %1071 = vmatprep.subr.bf16.mxu0 0
  %1072 = vmatpush1.bf16.xpose.msra.mxu0 0
  %1073 = vmatprep.subr.bf16.mxu0 0
  %1074 = vmatpush1.bf16.xpose.msra.mxu0 0
  %1075 = vmatprep.subr.bf16.mxu0 0
  %1076 = vmatpush1.bf16.xpose.msra.mxu0 0
  %1077 = vmatprep.subr.bf16.mxu0 0
  %1078 = vmatpush1.bf16.xpose.msra.mxu0 0
  %1079 = vmatprep.subr.bf16.mxu0 0
  %1080 = vmatpush1.bf16.xpose.msra.mxu0 0
  %1081 = vmatprep.subr.bf16.mxu0 0
  %1082 = vmatpush1.bf16.xpose.msra.mxu0 0
  %1083 = vmatprep.subr.bf16.mxu0 0
  %1084 = vmatpush1.bf16.xpose.msra.mxu0 %v1067
  %1085 = vmatprep.subr.bf16.mxu0 0
  %1086 = vmatpush2.bf16.xpose.msra.mxu0 0
  %1087 = vmatprep.subr.bf16.mxu0 0
  %1088 = vmatpush2.bf16.xpose.msra.mxu0 0
  %1089 = vmatprep.subr.bf16.mxu0 0
  %1090 = vmatpush2.bf16.xpose.msra.mxu0 0
  %1091 = vmatprep.subr.bf16.mxu0 0
  %1092 = vmatpush2.bf16.xpose.msra.mxu0 0
  %1093 = vmatprep.subr.bf16.mxu0 0
  %1094 = vmatpush2.bf16.xpose.msra.mxu0 0
  %1095 = vmatprep.subr.bf16.mxu0 0
  %1096 = vmatpush2.bf16.xpose.msra.mxu0 0
  %1097 = vmatprep.subr.bf16.mxu0 0
  %1098 = vmatpush2.bf16.xpose.msra.mxu0 0
  %1099 = vmatprep.subr.bf16.mxu0 0
  %1100 = vmatpush2.bf16.xpose.msra.mxu0 0
  %1101 = vmatprep.mubr.bf16.mxu0 0
  %1102 = vmatmul.mubr.bf16.gmra.mxu0 %v1064
  %v1103 = vpop.f32.mrf.mxu0
  %v1104 = vadd.f32 %v238, %v1103
  %v1105 = vpop.f32.mrf.mxu0
  %v1106 = vpop.f32.mrf.mxu0
  %v1107 = vpop.f32.mrf.mxu0
  %1108 = vdwg.mxu0
  %1109 = vrot.lane.b32.xlu0 %v246, 104
  %v1110 = vpop.permute.xlu0 %1109
  %1111 = vrot.lane.b32.xlu0 %v248, 104
  %v1112 = vpop.permute.xlu0 %1111
  %v1114 = vsel %vm249, %v1110, 0
  %v1117 = vsel %vm249, %v1112, 0
  %1119 = vmatprep.subr.bf16.mxu0 0
  %1120 = vmatpush1.bf16.xpose.msra.mxu0 0
  %1121 = vmatprep.subr.bf16.mxu0 0
  %1122 = vmatpush1.bf16.xpose.msra.mxu0 0
  %1123 = vmatprep.subr.bf16.mxu0 0
  %1124 = vmatpush1.bf16.xpose.msra.mxu0 0
  %1125 = vmatprep.subr.bf16.mxu0 0
  %1126 = vmatpush1.bf16.xpose.msra.mxu0 0
  %1127 = vmatprep.subr.bf16.mxu0 0
  %1128 = vmatpush1.bf16.xpose.msra.mxu0 0
  %1129 = vmatprep.subr.bf16.mxu0 0
  %1130 = vmatpush1.bf16.xpose.msra.mxu0 0
  %1131 = vmatprep.subr.bf16.mxu0 0
  %1132 = vmatpush1.bf16.xpose.msra.mxu0 0
  %1133 = vmatprep.subr.bf16.mxu0 0
  %1134 = vmatpush1.bf16.xpose.msra.mxu0 %v1117
  %1135 = vmatprep.subr.bf16.mxu0 0
  %1136 = vmatpush2.bf16.xpose.msra.mxu0 0
  %1137 = vmatprep.subr.bf16.mxu0 0
  %1138 = vmatpush2.bf16.xpose.msra.mxu0 0
  %1139 = vmatprep.subr.bf16.mxu0 0
  %1140 = vmatpush2.bf16.xpose.msra.mxu0 0
  %1141 = vmatprep.subr.bf16.mxu0 0
  %1142 = vmatpush2.bf16.xpose.msra.mxu0 0
  %1143 = vmatprep.subr.bf16.mxu0 0
  %1144 = vmatpush2.bf16.xpose.msra.mxu0 0
  %1145 = vmatprep.subr.bf16.mxu0 0
  %1146 = vmatpush2.bf16.xpose.msra.mxu0 0
  %1147 = vmatprep.subr.bf16.mxu0 0
  %1148 = vmatpush2.bf16.xpose.msra.mxu0 0
  %1149 = vmatprep.subr.bf16.mxu0 0
  %1150 = vmatpush2.bf16.xpose.msra.mxu0 0
  %1151 = vmatprep.mubr.bf16.mxu0 0
  %1152 = vmatmul.mubr.bf16.gmra.mxu0 %v1114
  %v1153 = vpop.f32.mrf.mxu0
  %v1154 = vadd.f32 %v242, %v1153
  %v1155 = vpop.f32.mrf.mxu0
  %v1156 = vpop.f32.mrf.mxu0
  %v1157 = vpop.f32.mrf.mxu0
  %1158 = vdwg.mxu0
  %v1159 = vsel %vm249, %v1104, -inf
  %1160 = vmax.xlane.f32.xlu0 %v1159
  %v1161 = vpop.xlane.xlu0 %1160
  %v1162 = vsel %vm249, %v1154, -inf
  %1163 = vmax.xlane.f32.xlu0 %v1162
  %v1164 = vpop.xlane.xlu0 %1163
  %v1165 = vsub.f32 %v1104, %v1161
  %v1166 = vsub.f32 %v1154, %v1164
  %v1167 = vmul.f32 %v1165, 1.442695
  %v1168 = vpow.pop %v1167
  %v1169 = vmul.f32 %v1166, 1.442695
  %v1170 = vpow.pop %v1169
  %v1171 = vsel %vm249, %v1168, 0.0
  %1172 = vadd.xlane.f32.xlu0 %v1171
  %v1173 = vpop.xlane.xlu0 %1172
  %v1174 = vsel %vm249, %v1170, 0.0
  %1175 = vadd.xlane.f32.xlu0 %v1174
  %v1176 = vpop.xlane.xlu0 %1175
  %v1177 = vpack.c.bf16 %v1168, %v1168
  %v1178 = vpack.c.bf16 %v1170, %v1170
  %1179 = vrot.lane.b32.xlu0 %v247, 72
  %v1180 = vpop.permute.xlu0 %1179
  %v1182 = vsel %vm249, %v1177, 0
  %v1185 = vsel %vm368, %v1180, 0
  %1187 = vmatprep.subr.bf16.mxu0 0
  %1188 = vmatpush1.bf16.msra.mxu0 0
  %1189 = vmatprep.subr.bf16.mxu0 0
  %1190 = vmatpush1.bf16.msra.mxu0 0
  %1191 = vmatprep.subr.bf16.mxu0 0
  %1192 = vmatpush1.bf16.msra.mxu0 0
  %1193 = vmatprep.subr.bf16.mxu0 0
  %1194 = vmatpush1.bf16.msra.mxu0 0
  %1195 = vmatprep.subr.bf16.mxu0 0
  %1196 = vmatpush1.bf16.msra.mxu0 0
  %1197 = vmatprep.subr.bf16.mxu0 0
  %1198 = vmatpush1.bf16.msra.mxu0 0
  %1199 = vmatprep.subr.bf16.mxu0 0
  %1200 = vmatpush1.bf16.msra.mxu0 0
  %1201 = vmatprep.subr.bf16.mxu0 0
  %1202 = vmatpush1.bf16.msra.mxu0 %v1185
  %1203 = vmatprep.subr.bf16.mxu0 0
  %1204 = vmatpush2.bf16.msra.mxu0 0
  %1205 = vmatprep.subr.bf16.mxu0 0
  %1206 = vmatpush2.bf16.msra.mxu0 0
  %1207 = vmatprep.subr.bf16.mxu0 0
  %1208 = vmatpush2.bf16.msra.mxu0 0
  %1209 = vmatprep.subr.bf16.mxu0 0
  %1210 = vmatpush2.bf16.msra.mxu0 0
  %1211 = vmatprep.subr.bf16.mxu0 0
  %1212 = vmatpush2.bf16.msra.mxu0 0
  %1213 = vmatprep.subr.bf16.mxu0 0
  %1214 = vmatpush2.bf16.msra.mxu0 0
  %1215 = vmatprep.subr.bf16.mxu0 0
  %1216 = vmatpush2.bf16.msra.mxu0 0
  %1217 = vmatprep.subr.bf16.mxu0 0
  %1218 = vmatpush2.bf16.msra.mxu0 0
  %1219 = vmatprep.mubr.bf16.mxu0 0
  %1220 = vmatmul.mubr.bf16.gmra.mxu0 %v1182
  %v1221 = vpop.f32.mrf.mxu0
  %v1222 = vadd.f32 0.0, %v1221
  %v1223 = vpop.f32.mrf.mxu0
  %v1224 = vpop.f32.mrf.mxu0
  %v1225 = vpop.f32.mrf.mxu0
  %1226 = vdwg.mxu0
  %1227 = vrot.lane.b32.xlu0 %v248, 72
  %v1228 = vpop.permute.xlu0 %1227
  %v1230 = vsel %vm249, %v1178, 0
  %v1233 = vsel %vm368, %v1228, 0
  %1235 = vmatprep.subr.bf16.mxu0 0
  %1236 = vmatpush1.bf16.msra.mxu0 0
  %1237 = vmatprep.subr.bf16.mxu0 0
  %1238 = vmatpush1.bf16.msra.mxu0 0
  %1239 = vmatprep.subr.bf16.mxu0 0
  %1240 = vmatpush1.bf16.msra.mxu0 0
  %1241 = vmatprep.subr.bf16.mxu0 0
  %1242 = vmatpush1.bf16.msra.mxu0 0
  %1243 = vmatprep.subr.bf16.mxu0 0
  %1244 = vmatpush1.bf16.msra.mxu0 0
  %1245 = vmatprep.subr.bf16.mxu0 0
  %1246 = vmatpush1.bf16.msra.mxu0 0
  %1247 = vmatprep.subr.bf16.mxu0 0
  %1248 = vmatpush1.bf16.msra.mxu0 0
  %1249 = vmatprep.subr.bf16.mxu0 0
  %1250 = vmatpush1.bf16.msra.mxu0 %v1233
  %1251 = vmatprep.subr.bf16.mxu0 0
  %1252 = vmatpush2.bf16.msra.mxu0 0
  %1253 = vmatprep.subr.bf16.mxu0 0
  %1254 = vmatpush2.bf16.msra.mxu0 0
  %1255 = vmatprep.subr.bf16.mxu0 0
  %1256 = vmatpush2.bf16.msra.mxu0 0
  %1257 = vmatprep.subr.bf16.mxu0 0
  %1258 = vmatpush2.bf16.msra.mxu0 0
  %1259 = vmatprep.subr.bf16.mxu0 0
  %1260 = vmatpush2.bf16.msra.mxu0 0
  %1261 = vmatprep.subr.bf16.mxu0 0
  %1262 = vmatpush2.bf16.msra.mxu0 0
  %1263 = vmatprep.subr.bf16.mxu0 0
  %1264 = vmatpush2.bf16.msra.mxu0 0
  %1265 = vmatprep.subr.bf16.mxu0 0
  %1266 = vmatpush2.bf16.msra.mxu0 0
  %1267 = vmatprep.mubr.bf16.mxu0 0
  %1268 = vmatmul.mubr.bf16.gmra.mxu0 %v1230
  %v1269 = vpop.f32.mrf.mxu0
  %v1270 = vadd.f32 0.0, %v1269
  %v1271 = vpop.f32.mrf.mxu0
  %v1272 = vpop.f32.mrf.mxu0
  %v1273 = vpop.f32.mrf.mxu0
  %1274 = vdwg.mxu0
  %v1275 = vrcp.pop %v1173
  %v1276 = vrcp.pop %v1176
  %v1277 = vmul.f32 %v1222, %v1275
  %v1278 = vmul.f32 %v1270, %v1276
  %v1279 = vld [vmem:[%s9 + $0x18] sm:$0xff]
  %v1280 = vpack.c.bf16 %v1278, %v1277
  %v1281 = vpack.c.bf16 %v1279, %v1279
  %v1283 = vsel %vm249, %v1280, 0
  %v1286 = vsel %vm368, %v1281, 0
  %1288 = vmatprep.subr.bf16.mxu0 0
  %1289 = vmatpush1.bf16.msra.mxu0 0
  %1290 = vmatprep.subr.bf16.mxu0 0
  %1291 = vmatpush1.bf16.msra.mxu0 0
  %1292 = vmatprep.subr.bf16.mxu0 0
  %1293 = vmatpush1.bf16.msra.mxu0 0
  %1294 = vmatprep.subr.bf16.mxu0 0
  %1295 = vmatpush1.bf16.msra.mxu0 0
  %1296 = vmatprep.subr.bf16.mxu0 0
  %1297 = vmatpush1.bf16.msra.mxu0 0
  %1298 = vmatprep.subr.bf16.mxu0 0
  %1299 = vmatpush1.bf16.msra.mxu0 0
  %1300 = vmatprep.subr.bf16.mxu0 0
  %1301 = vmatpush1.bf16.msra.mxu0 0
  %1302 = vmatprep.subr.bf16.mxu0 0
  %1303 = vmatpush1.bf16.msra.mxu0 %v1286
  %1304 = vmatprep.subr.bf16.mxu0 0
  %1305 = vmatpush2.bf16.msra.mxu0 0
  %1306 = vmatprep.subr.bf16.mxu0 0
  %1307 = vmatpush2.bf16.msra.mxu0 0
  %1308 = vmatprep.subr.bf16.mxu0 0
  %1309 = vmatpush2.bf16.msra.mxu0 0
  %1310 = vmatprep.subr.bf16.mxu0 0
  %1311 = vmatpush2.bf16.msra.mxu0 0
  %1312 = vmatprep.subr.bf16.mxu0 0
  %1313 = vmatpush2.bf16.msra.mxu0 0
  %1314 = vmatprep.subr.bf16.mxu0 0
  %1315 = vmatpush2.bf16.msra.mxu0 0
  %1316 = vmatprep.subr.bf16.mxu0 0
  %1317 = vmatpush2.bf16.msra.mxu0 0
  %1318 = vmatprep.subr.bf16.mxu0 0
  %1319 = vmatpush2.bf16.msra.mxu0 0
  %1320 = vmatprep.mubr.bf16.mxu0 0
  %1321 = vmatmul.mubr.bf16.gmra.mxu0 %v1283
  %v1322 = vpop.f32.mrf.mxu0
  %v1323 = vadd.f32 0.0, %v1322
  %v1324 = vpop.f32.mrf.mxu0
  %v1325 = vpop.f32.mrf.mxu0
  %v1326 = vadd.f32 0.0, %v1325
  %v1327 = vpop.f32.mrf.mxu0
  %1328 = vdwg.mxu0
  %v1329 = vadd.f32 %v1057, %v1323
  %v1330 = vadd.f32 %v1058, %v1326
  %v1331 = vld [vmem:[%s10] sm:$0x1]
  %v1333 = vlaneseq
  %v1334 = vshrl.u32 %v1333, 7
  %v1335 = vsub.s32 0, %v1334
  %v1336 = vrot.slane %v1331, %v1335
  %v1338 = vadd.f32 %v1329, %v1336
  %v1339 = vadd.f32 %v1330, %v1336
  %v1340 = vadd.f32 %v39, %v1338
  %v1341 = vadd.f32 %v40, %v1339
  %1342 = vst.msk [vmem:[%s11] sm:$0xff] %vm43, %v1340
  %1343 = vst.msk [vmem:[%s11 + $0x8] sm:$0xff] %vm43, %v1341
  // Predicated region
  $region46: #{encoder_decoder_forward.16} parent=0 // pred_check
    _
  $region47: #{encoder_decoder_forward.16} parent=0 // pred_check_branch
    %1345 = sbr.rel (0) target = $region49
  $region48: #{encoder_decoder_forward.16} parent=0 // pred_region
    _
  $region49: #{encoder_decoder_forward.16} parent=0 // pred_fallthru
    _
  // Predicated region
  $region50: #{encoder_decoder_forward.16} parent=0 // pred_check
    _
  $region51: #{encoder_decoder_forward.16} parent=0 // pred_check_branch
    %1347 = sbr.rel (0) target = $region53
  $region52: #{encoder_decoder_forward.16} parent=0 // pred_region
    _
  $region53: #{encoder_decoder_forward.16} parent=0 // pred_fallthru
    _

// kernel: encoder_decoder_forward.15
$region0: #{encoder_decoder_forward.15}
  #allocation0 [shape = 'u32[]', space=smem, size = 0x4, offset = 0x4, fixed_abs, tag = 'smem constant byte address 0x4 - core index']
  #allocation1 [shape = 'u32[144,128]{1,0:T(1,128)}', space=vmem, size = 0x12000, scoped, tag = 'internal scratch']
  %s0 = inlined_call_operand.vmem [shape: f32[2,8,32], index: 0, kind: input, shape index: {}, may-alias: {0,1}]
  %s1 = inlined_call_operand.vmem [shape: f32[2,8,32], index: 1, kind: input, shape index: {}, may-alias: {0,1}]
  %s2 = inlined_call_operand.vmem [shape: f32[2,8], index: 2, kind: input, shape index: {}]
  %s3 = inlined_call_operand.vmem [shape: f32[1,32], index: 3, kind: input, shape index: {}]
  %s4 = inlined_call_operand.vmem [shape: f32[1,32], index: 4, kind: input, shape index: {}]
  %s5 = inlined_call_operand.vmem [shape: f32[32,32], index: 5, kind: input, shape index: {}]
  %s6 = inlined_call_operand.vmem [shape: f32[1,32], index: 6, kind: input, shape index: {}]
  %s7 = inlined_call_operand.vmem [shape: f32[32,64], index: 7, kind: input, shape index: {}]
  %s8 = inlined_call_operand.vmem [shape: f32[1,64], index: 8, kind: input, shape index: {}]
  %s9 = inlined_call_operand.vmem [shape: f32[32,32], index: 9, kind: input, shape index: {}]
  %s10 = inlined_call_operand.vmem [shape: f32[1,32], index: 10, kind: input, shape index: {}]
  %s11 = inlined_call_operand.vmem [shape: f32[2,8,32], index: 11, kind: output, shape index: {}]
  %s12 = sld [smem:[#allocation0]]
  $region54: #{encoder_decoder_forward.15} parent=0
    _
  %s14 = ssub.s32 1, %s12
  %s15 = scalar_select 0, %s14, %s12
  // Predicated region
  $region2: #{encoder_decoder_forward.15} parent=0 // pred_check
    _
  $region3: #{encoder_decoder_forward.15} parent=0 // pred_check_branch
    %17 = sbr.rel (0) target = $region5
  $region4: #{encoder_decoder_forward.15} parent=0 // pred_region
    _
  $region5: #{encoder_decoder_forward.15} parent=0 // pred_fallthru
    _
  // Predicated region
  $region6: #{encoder_decoder_forward.15} parent=0 // pred_check
    _
  $region7: #{encoder_decoder_forward.15} parent=0 // pred_check_branch
    %19 = sbr.rel (0) target = $region9
  $region8: #{encoder_decoder_forward.15} parent=0 // pred_region
    _
  $region9: #{encoder_decoder_forward.15} parent=0 // pred_fallthru
    _
  // Predicated region
  $region10: #{encoder_decoder_forward.15} parent=0 // pred_check
    _
  $region11: #{encoder_decoder_forward.15} parent=0 // pred_check_branch
    %21 = sbr.rel (0) target = $region13
  $region12: #{encoder_decoder_forward.15} parent=0 // pred_region
    _
  $region13: #{encoder_decoder_forward.15} parent=0 // pred_fallthru
    _
  // Predicated region
  $region14: #{encoder_decoder_forward.15} parent=0 // pred_check
    _
  $region15: #{encoder_decoder_forward.15} parent=0 // pred_check_branch
    %23 = sbr.rel (0) target = $region17
  $region16: #{encoder_decoder_forward.15} parent=0 // pred_region
    _
  $region17: #{encoder_decoder_forward.15} parent=0 // pred_fallthru
    _
  // Predicated region
  $region18: #{encoder_decoder_forward.15} parent=0 // pred_check
    _
  $region19: #{encoder_decoder_forward.15} parent=0 // pred_check_branch
    %25 = sbr.rel (0) target = $region21
  $region20: #{encoder_decoder_forward.15} parent=0 // pred_region
    _
  $region21: #{encoder_decoder_forward.15} parent=0 // pred_fallthru
    _
  // Predicated region
  $region22: #{encoder_decoder_forward.15} parent=0 // pred_check
    _
  $region23: #{encoder_decoder_forward.15} parent=0 // pred_check_branch
    %27 = sbr.rel (0) target = $region25
  $region24: #{encoder_decoder_forward.15} parent=0 // pred_region
    _
  $region25: #{encoder_decoder_forward.15} parent=0 // pred_fallthru
    _
  // Predicated region
  $region26: #{encoder_decoder_forward.15} parent=0 // pred_check
    _
  $region27: #{encoder_decoder_forward.15} parent=0 // pred_check_branch
    %29 = sbr.rel (0) target = $region29
  $region28: #{encoder_decoder_forward.15} parent=0 // pred_region
    _
  $region29: #{encoder_decoder_forward.15} parent=0 // pred_fallthru
    _
  // Predicated region
  $region30: #{encoder_decoder_forward.15} parent=0 // pred_check
    _
  $region31: #{encoder_decoder_forward.15} parent=0 // pred_check_branch
    %31 = sbr.rel (0) target = $region33
  $region32: #{encoder_decoder_forward.15} parent=0 // pred_region
    _
  $region33: #{encoder_decoder_forward.15} parent=0 // pred_fallthru
    _
  // Predicated region
  $region34: #{encoder_decoder_forward.15} parent=0 // pred_check
    _
  $region35: #{encoder_decoder_forward.15} parent=0 // pred_check_branch
    %33 = sbr.rel (0) target = $region37
  $region36: #{encoder_decoder_forward.15} parent=0 // pred_region
    _
  $region37: #{encoder_decoder_forward.15} parent=0 // pred_fallthru
    _
  // Predicated region
  $region38: #{encoder_decoder_forward.15} parent=0 // pred_check
    _
  $region39: #{encoder_decoder_forward.15} parent=0 // pred_check_branch
    %35 = sbr.rel (0) target = $region41
  $region40: #{encoder_decoder_forward.15} parent=0 // pred_region
    _
  $region41: #{encoder_decoder_forward.15} parent=0 // pred_fallthru
    _
  // Predicated region
  $region42: #{encoder_decoder_forward.15} parent=0 // pred_check
    _
  $region43: #{encoder_decoder_forward.15} parent=0 // pred_check_branch
    %37 = sbr.rel (0) target = $region45
  $region44: #{encoder_decoder_forward.15} parent=0 // pred_region
    _
  $region45: #{encoder_decoder_forward.15} parent=0 // pred_fallthru
    _
  %v39 = vld [vmem:[%s0] sm:$0xff]
  %v40 = vld [vmem:[%s0 + $0x8] sm:$0xff]
  %v41 = vld [vmem:[%s3] sm:$0x1]
  %v42 = vld [vmem:[%s4] sm:$0x1]
  %vm43 = vcmask 261120
  %v44 = vsel %vm43, %v39, 0.0
  %45 = vadd.xlane.f32.xlu0 %v44
  %v46 = vpop.xlane.xlu0 %45
  %v47 = vsel %vm43, %v40, 0.0
  %48 = vadd.xlane.f32.xlu0 %v47
  %v49 = vpop.xlane.xlu0 %48
  %v50 = vrcp.pop 32.0
  %v51 = vmul.f32 %v46, %v50
  %v52 = vmul.f32 %v49, %v50
  %v53 = vsub.f32 %v39, %v51
  %v54 = vsub.f32 %v40, %v52
  %v55 = vmul.f32 %v53, %v53
  %v56 = vmul.f32 %v54, %v54
  %v57 = vsel %vm43, %v55, 0.0
  %58 = vadd.xlane.f32.xlu0 %v57
  %v59 = vpop.xlane.xlu0 %58
  %v60 = vsel %vm43, %v56, 0.0
  %61 = vadd.xlane.f32.xlu0 %v60
  %v62 = vpop.xlane.xlu0 %61
  %v63 = vmul.f32 %v59, %v50
  %v64 = vmul.f32 %v62, %v50
  %v65 = vadd.f32 %v63, 1e-05
  %v66 = vadd.f32 %v64, 1e-05
  %v67 = vrsqrt.pop %v65
  %v68 = vrsqrt.pop %v66
  %v69 = vmul.f32 %v53, %v67
  %v70 = vmul.f32 %v54, %v68
  %v72 = vlaneseq
  %v73 = vshrl.u32 %v72, 7
  %v74 = vsub.s32 0, %v73
  %v75 = vrot.slane %v41, %v74
  %v77 = vmul.f32 %v69, %v75
  %v78 = vmul.f32 %v70, %v75
  %v80 = vlaneseq
  %v81 = vshrl.u32 %v80, 7
  %v82 = vsub.s32 0, %v81
  %v83 = vrot.slane %v42, %v82
  %v85 = vadd.f32 %v77, %v83
  %v86 = vadd.f32 %v78, %v83
  %v87 = vld [vmem:[%s5] sm:$0xff]
  %v88 = vld [vmem:[%s5 + $0x8] sm:$0xff]
  %v89 = vld [vmem:[%s5 + $0x10] sm:$0xff]
  %v90 = vld [vmem:[%s5 + $0x18] sm:$0xff]
  %v91 = vpack.c.bf16 %v86, %v85
  %v92 = vpack.c.bf16 %v88, %v87
  %v93 = vpack.c.bf16 %v90, %v89
  %v94 = vld [vmem:[%s6] sm:$0x1]
  %v96 = vlaneseq
  %v97 = vshrl.u32 %v96, 7
  %v98 = vsub.s32 0, %v97
  %v99 = vrot.slane %v94, %v98
  %v102 = vsel %vm43, %v91, 0
  %104 = vmatprep.subr.bf16.mxu0 0
  %105 = vmatpush1.bf16.msra.mxu0 0
  %106 = vmatprep.subr.bf16.mxu0 0
  %107 = vmatpush1.bf16.msra.mxu0 0
  %108 = vmatprep.subr.bf16.mxu0 0
  %109 = vmatpush1.bf16.msra.mxu0 0
  %110 = vmatprep.subr.bf16.mxu0 0
  %111 = vmatpush1.bf16.msra.mxu0 0
  %112 = vmatprep.subr.bf16.mxu0 0
  %113 = vmatpush1.bf16.msra.mxu0 0
  %114 = vmatprep.subr.bf16.mxu0 0
  %115 = vmatpush1.bf16.msra.mxu0 0
  %116 = vmatprep.subr.bf16.mxu0 0
  %117 = vmatpush1.bf16.msra.mxu0 %v93
  %118 = vmatprep.subr.bf16.mxu0 0
  %119 = vmatpush1.bf16.msra.mxu0 %v92
  %120 = vmatprep.subr.bf16.mxu0 0
  %121 = vmatpush2.bf16.msra.mxu0 0
  %122 = vmatprep.subr.bf16.mxu0 0
  %123 = vmatpush2.bf16.msra.mxu0 0
  %124 = vmatprep.subr.bf16.mxu0 0
  %125 = vmatpush2.bf16.msra.mxu0 0
  %126 = vmatprep.subr.bf16.mxu0 0
  %127 = vmatpush2.bf16.msra.mxu0 0
  %128 = vmatprep.subr.bf16.mxu0 0
  %129 = vmatpush2.bf16.msra.mxu0 0
  %130 = vmatprep.subr.bf16.mxu0 0
  %131 = vmatpush2.bf16.msra.mxu0 0
  %132 = vmatprep.subr.bf16.mxu0 0
  %133 = vmatpush2.bf16.msra.mxu0 0
  %134 = vmatprep.subr.bf16.mxu0 0
  %135 = vmatpush2.bf16.msra.mxu0 0
  %136 = vmatprep.mubr.bf16.mxu0 0
  %137 = vmatmul.mubr.bf16.gmra.mxu0 %v102
  %v138 = vpop.f32.mrf.mxu0
  %v139 = vadd.f32 %v99, %v138
  %v140 = vpop.f32.mrf.mxu0
  %v141 = vpop.f32.mrf.mxu0
  %v142 = vadd.f32 %v99, %v141
  %v143 = vpop.f32.mrf.mxu0
  %144 = vdwg.mxu0
  %v145 = vld [vmem:[%s7] sm:$0xff]
  %v146 = vld [vmem:[%s7 + $0x8] sm:$0xff]
  %v147 = vld [vmem:[%s7 + $0x10] sm:$0xff]
  %v148 = vld [vmem:[%s7 + $0x18] sm:$0xff]
  %v149 = vpack.c.bf16 %v146, %v145
  %v150 = vpack.c.bf16 %v148, %v147
  %v151 = vld [vmem:[%s8] sm:$0x1]
  %v153 = vlaneseq
  %v154 = vshrl.u32 %v153, 7
  %v155 = vsub.s32 0, %v154
  %v156 = vrot.slane %v151, %v155
  %158 = vmatprep.subr.bf16.mxu0 0
  %159 = vmatpush1.bf16.msra.mxu0 0
  %160 = vmatprep.subr.bf16.mxu0 0
  %161 = vmatpush1.bf16.msra.mxu0 0
  %162 = vmatprep.subr.bf16.mxu0 0
  %163 = vmatpush1.bf16.msra.mxu0 0
  %164 = vmatprep.subr.bf16.mxu0 0
  %165 = vmatpush1.bf16.msra.mxu0 0
  %166 = vmatprep.subr.bf16.mxu0 0
  %167 = vmatpush1.bf16.msra.mxu0 0
  %168 = vmatprep.subr.bf16.mxu0 0
  %169 = vmatpush1.bf16.msra.mxu0 0
  %170 = vmatprep.subr.bf16.mxu0 0
  %171 = vmatpush1.bf16.msra.mxu0 %v150
  %172 = vmatprep.subr.bf16.mxu0 0
  %173 = vmatpush1.bf16.msra.mxu0 %v149
  %174 = vmatprep.subr.bf16.mxu0 0
  %175 = vmatpush2.bf16.msra.mxu0 0
  %176 = vmatprep.subr.bf16.mxu0 0
  %177 = vmatpush2.bf16.msra.mxu0 0
  %178 = vmatprep.subr.bf16.mxu0 0
  %179 = vmatpush2.bf16.msra.mxu0 0
  %180 = vmatprep.subr.bf16.mxu0 0
  %181 = vmatpush2.bf16.msra.mxu0 0
  %182 = vmatprep.subr.bf16.mxu0 0
  %183 = vmatpush2.bf16.msra.mxu0 0
  %184 = vmatprep.subr.bf16.mxu0 0
  %185 = vmatpush2.bf16.msra.mxu0 0
  %186 = vmatprep.subr.bf16.mxu0 0
  %187 = vmatpush2.bf16.msra.mxu0 0
  %188 = vmatprep.subr.bf16.mxu0 0
  %189 = vmatpush2.bf16.msra.mxu0 0
  %190 = vmatprep.mubr.bf16.mxu0 0
  %191 = vmatmul.mubr.bf16.gmra.mxu0 %v102
  %v192 = vpop.f32.mrf.mxu0
  %v193 = vadd.f32 %v156, %v192
  %v194 = vpop.f32.mrf.mxu0
  %v195 = vpop.f32.mrf.mxu0
  %v196 = vadd.f32 %v156, %v195
  %v197 = vpop.f32.mrf.mxu0
  %198 = vdwg.mxu0
  %v199 = vld [vmem:[%s2] sm:$0x3]
  %v202 = vunpack.c.l.s4 1966171168
  %v203 = vunpack.c.0.s8 %v202
  %v204 = vlaneseq
  %v205 = vshrl.u32 %v204, 7
  %v206 = vsub.s32 %v203, %v205
  %v207 = vrot.slane %v199, %v206
  %v208 = vcombine.high %v207, %v207
  %v210 = vunpack.c.l.s4 1966171168
  %v211 = vunpack.c.0.s8 %v210
  %v212 = vlaneseq
  %v213 = vshrl.u32 %v212, 7
  %v214 = vsub.s32 %v211, %v213
  %v215 = vrot.slane %v207, %v214
  %v217 = vunpack.c.l.s4 1966171168
  %v218 = vunpack.c.0.s8 %v217
  %v219 = vlaneseq
  %v220 = vshrl.u32 %v219, 7
  %v221 = vsub.s32 %v218, %v220
  %v222 = vrot.slane %v208, %v221
  %v225 = vmul.f32 %v215, -1e+30
  %v226 = vmul.f32 %v222, -1e+30
  %v227 = vlaneseq
  %v228 = vshrl.u32 %v227, 7
  %v229 = vlaneseq
  %v230 = vand.u32 %v229, 127
  %vm231 = vcmp.gt.s32.totalorder %v230, %v228
  %v232 = vsel %vm231, -1e+30, 0.0
  %v235 = vlaneseq
  %v236 = vshrl.u32 %v235, 7
  %v237 = vsub.s32 0, %v236
  %v238 = vrot.slane %v225, %v237
  %v239 = vlaneseq
  %v240 = vshrl.u32 %v239, 7
  %v241 = vsub.s32 0, %v240
  %v242 = vrot.slane %v226, %v241
  %v245 = vadd.f32 %v238, %v232
  %v246 = vadd.f32 %v242, %v232
  %v247 = vpack.c.bf16 %v139, %v139
  %v248 = vpack.c.bf16 %v142, %v142
  %v249 = vpack.c.bf16 %v193, %v193
  %v250 = vpack.c.bf16 %v196, %v196
  %vm251 = vcmask 64512
  %v253 = vsel %vm251, %v247, 0
  %v256 = vsel %vm251, %v249, 0
  %258 = vmatprep.subr.bf16.mxu0 0
  %259 = vmatpush1.bf16.xpose.msra.mxu0 0
  %260 = vmatprep.subr.bf16.mxu0 0
  %261 = vmatpush1.bf16.xpose.msra.mxu0 0
  %262 = vmatprep.subr.bf16.mxu0 0
  %263 = vmatpush1.bf16.xpose.msra.mxu0 0
  %264 = vmatprep.subr.bf16.mxu0 0
  %265 = vmatpush1.bf16.xpose.msra.mxu0 0
  %266 = vmatprep.subr.bf16.mxu0 0
  %267 = vmatpush1.bf16.xpose.msra.mxu0 0
  %268 = vmatprep.subr.bf16.mxu0 0
  %269 = vmatpush1.bf16.xpose.msra.mxu0 0
  %270 = vmatprep.subr.bf16.mxu0 0
  %271 = vmatpush1.bf16.xpose.msra.mxu0 0
  %272 = vmatprep.subr.bf16.mxu0 0
  %273 = vmatpush1.bf16.xpose.msra.mxu0 %v256
  %274 = vmatprep.subr.bf16.mxu0 0
  %275 = vmatpush2.bf16.xpose.msra.mxu0 0
  %276 = vmatprep.subr.bf16.mxu0 0
  %277 = vmatpush2.bf16.xpose.msra.mxu0 0
  %278 = vmatprep.subr.bf16.mxu0 0
  %279 = vmatpush2.bf16.xpose.msra.mxu0 0
  %280 = vmatprep.subr.bf16.mxu0 0
  %281 = vmatpush2.bf16.xpose.msra.mxu0 0
  %282 = vmatprep.subr.bf16.mxu0 0
  %283 = vmatpush2.bf16.xpose.msra.mxu0 0
  %284 = vmatprep.subr.bf16.mxu0 0
  %285 = vmatpush2.bf16.xpose.msra.mxu0 0
  %286 = vmatprep.subr.bf16.mxu0 0
  %287 = vmatpush2.bf16.xpose.msra.mxu0 0
  %288 = vmatprep.subr.bf16.mxu0 0
  %289 = vmatpush2.bf16.xpose.msra.mxu0 0
  %290 = vmatprep.mubr.bf16.mxu0 0
  %291 = vmatmul.mubr.bf16.gmra.mxu0 %v253
  %v292 = vpop.f32.mrf.mxu0
  %v293 = vadd.f32 %v245, %v292
  %v294 = vpop.f32.mrf.mxu0
  %v295 = vpop.f32.mrf.mxu0
  %v296 = vpop.f32.mrf.mxu0
  %297 = vdwg.mxu0
  %v299 = vsel %vm251, %v248, 0
  %v302 = vsel %vm251, %v250, 0
  %304 = vmatprep.subr.bf16.mxu0 0
  %305 = vmatpush1.bf16.xpose.msra.mxu0 0
  %306 = vmatprep.subr.bf16.mxu0 0
  %307 = vmatpush1.bf16.xpose.msra.mxu0 0
  %308 = vmatprep.subr.bf16.mxu0 0
  %309 = vmatpush1.bf16.xpose.msra.mxu0 0
  %310 = vmatprep.subr.bf16.mxu0 0
  %311 = vmatpush1.bf16.xpose.msra.mxu0 0
  %312 = vmatprep.subr.bf16.mxu0 0
  %313 = vmatpush1.bf16.xpose.msra.mxu0 0
  %314 = vmatprep.subr.bf16.mxu0 0
  %315 = vmatpush1.bf16.xpose.msra.mxu0 0
  %316 = vmatprep.subr.bf16.mxu0 0
  %317 = vmatpush1.bf16.xpose.msra.mxu0 0
  %318 = vmatprep.subr.bf16.mxu0 0
  %319 = vmatpush1.bf16.xpose.msra.mxu0 %v302
  %320 = vmatprep.subr.bf16.mxu0 0
  %321 = vmatpush2.bf16.xpose.msra.mxu0 0
  %322 = vmatprep.subr.bf16.mxu0 0
  %323 = vmatpush2.bf16.xpose.msra.mxu0 0
  %324 = vmatprep.subr.bf16.mxu0 0
  %325 = vmatpush2.bf16.xpose.msra.mxu0 0
  %326 = vmatprep.subr.bf16.mxu0 0
  %327 = vmatpush2.bf16.xpose.msra.mxu0 0
  %328 = vmatprep.subr.bf16.mxu0 0
  %329 = vmatpush2.bf16.xpose.msra.mxu0 0
  %330 = vmatprep.subr.bf16.mxu0 0
  %331 = vmatpush2.bf16.xpose.msra.mxu0 0
  %332 = vmatprep.subr.bf16.mxu0 0
  %333 = vmatpush2.bf16.xpose.msra.mxu0 0
  %334 = vmatprep.subr.bf16.mxu0 0
  %335 = vmatpush2.bf16.xpose.msra.mxu0 0
  %336 = vmatprep.mubr.bf16.mxu0 0
  %337 = vmatmul.mubr.bf16.gmra.mxu0 %v299
  %v338 = vpop.f32.mrf.mxu0
  %v339 = vadd.f32 %v246, %v338
  %v340 = vpop.f32.mrf.mxu0
  %v341 = vpop.f32.mrf.mxu0
  %v342 = vpop.f32.mrf.mxu0
  %343 = vdwg.mxu0
  %v344 = vsel %vm251, %v293, -inf
  %345 = vmax.xlane.f32.xlu0 %v344
  %v346 = vpop.xlane.xlu0 %345
  %v347 = vsel %vm251, %v339, -inf
  %348 = vmax.xlane.f32.xlu0 %v347
  %v349 = vpop.xlane.xlu0 %348
  %v350 = vsub.f32 %v293, %v346
  %v351 = vsub.f32 %v339, %v349
  %v352 = vmul.f32 %v350, 1.442695
  %v353 = vpow.pop %v352
  %v354 = vmul.f32 %v351, 1.442695
  %v355 = vpow.pop %v354
  %v356 = vsel %vm251, %v353, 0.0
  %357 = vadd.xlane.f32.xlu0 %v356
  %v358 = vpop.xlane.xlu0 %357
  %v359 = vsel %vm251, %v355, 0.0
  %360 = vadd.xlane.f32.xlu0 %v359
  %v361 = vpop.xlane.xlu0 %360
  %v362 = vpack.c.bf16 %v353, %v353
  %v363 = vpack.c.bf16 %v355, %v355
  %365 = vrot.lane.b32.xlu0 %v249, 96
  %v366 = vpop.permute.xlu0 %365
  %v368 = vsel %vm251, %v362, 0
  %vm370 = vcmask 1043456
  %v372 = vsel %vm370, %v366, 0
  %374 = vmatprep.subr.bf16.mxu0 0
  %375 = vmatpush1.bf16.msra.mxu0 0
  %376 = vmatprep.subr.bf16.mxu0 0
  %377 = vmatpush1.bf16.msra.mxu0 0
  %378 = vmatprep.subr.bf16.mxu0 0
  %379 = vmatpush1.bf16.msra.mxu0 0
  %380 = vmatprep.subr.bf16.mxu0 0
  %381 = vmatpush1.bf16.msra.mxu0 0
  %382 = vmatprep.subr.bf16.mxu0 0
  %383 = vmatpush1.bf16.msra.mxu0 0
  %384 = vmatprep.subr.bf16.mxu0 0
  %385 = vmatpush1.bf16.msra.mxu0 0
  %386 = vmatprep.subr.bf16.mxu0 0
  %387 = vmatpush1.bf16.msra.mxu0 0
  %388 = vmatprep.subr.bf16.mxu0 0
  %389 = vmatpush1.bf16.msra.mxu0 %v372
  %390 = vmatprep.subr.bf16.mxu0 0
  %391 = vmatpush2.bf16.msra.mxu0 0
  %392 = vmatprep.subr.bf16.mxu0 0
  %393 = vmatpush2.bf16.msra.mxu0 0
  %394 = vmatprep.subr.bf16.mxu0 0
  %395 = vmatpush2.bf16.msra.mxu0 0
  %396 = vmatprep.subr.bf16.mxu0 0
  %397 = vmatpush2.bf16.msra.mxu0 0
  %398 = vmatprep.subr.bf16.mxu0 0
  %399 = vmatpush2.bf16.msra.mxu0 0
  %400 = vmatprep.subr.bf16.mxu0 0
  %401 = vmatpush2.bf16.msra.mxu0 0
  %402 = vmatprep.subr.bf16.mxu0 0
  %403 = vmatpush2.bf16.msra.mxu0 0
  %404 = vmatprep.subr.bf16.mxu0 0
  %405 = vmatpush2.bf16.msra.mxu0 0
  %406 = vmatprep.mubr.bf16.mxu0 0
  %407 = vmatmul.mubr.bf16.gmra.mxu0 %v368
  %v408 = vpop.f32.mrf.mxu0
  %v409 = vadd.f32 0.0, %v408
  %v410 = vpop.f32.mrf.mxu0
  %v411 = vpop.f32.mrf.mxu0
  %v412 = vpop.f32.mrf.mxu0
  %413 = vdwg.mxu0
  %415 = vrot.lane.b32.xlu0 %v250, 96
  %v416 = vpop.permute.xlu0 %415
  %v418 = vsel %vm251, %v363, 0
  %v421 = vsel %vm370, %v416, 0
  %423 = vmatprep.subr.bf16.mxu0 0
  %424 = vmatpush1.bf16.msra.mxu0 0
  %425 = vmatprep.subr.bf16.mxu0 0
  %426 = vmatpush1.bf16.msra.mxu0 0
  %427 = vmatprep.subr.bf16.mxu0 0
  %428 = vmatpush1.bf16.msra.mxu0 0
  %429 = vmatprep.subr.bf16.mxu0 0
  %430 = vmatpush1.bf16.msra.mxu0 0
  %431 = vmatprep.subr.bf16.mxu0 0
  %432 = vmatpush1.bf16.msra.mxu0 0
  %433 = vmatprep.subr.bf16.mxu0 0
  %434 = vmatpush1.bf16.msra.mxu0 0
  %435 = vmatprep.subr.bf16.mxu0 0
  %436 = vmatpush1.bf16.msra.mxu0 0
  %437 = vmatprep.subr.bf16.mxu0 0
  %438 = vmatpush1.bf16.msra.mxu0 %v421
  %439 = vmatprep.subr.bf16.mxu0 0
  %440 = vmatpush2.bf16.msra.mxu0 0
  %441 = vmatprep.subr.bf16.mxu0 0
  %442 = vmatpush2.bf16.msra.mxu0 0
  %443 = vmatprep.subr.bf16.mxu0 0
  %444 = vmatpush2.bf16.msra.mxu0 0
  %445 = vmatprep.subr.bf16.mxu0 0
  %446 = vmatpush2.bf16.msra.mxu0 0
  %447 = vmatprep.subr.bf16.mxu0 0
  %448 = vmatpush2.bf16.msra.mxu0 0
  %449 = vmatprep.subr.bf16.mxu0 0
  %450 = vmatpush2.bf16.msra.mxu0 0
  %451 = vmatprep.subr.bf16.mxu0 0
  %452 = vmatpush2.bf16.msra.mxu0 0
  %453 = vmatprep.subr.bf16.mxu0 0
  %454 = vmatpush2.bf16.msra.mxu0 0
  %455 = vmatprep.mubr.bf16.mxu0 0
  %456 = vmatmul.mubr.bf16.gmra.mxu0 %v418
  %v457 = vpop.f32.mrf.mxu0
  %v458 = vadd.f32 0.0, %v457
  %v459 = vpop.f32.mrf.mxu0
  %v460 = vpop.f32.mrf.mxu0
  %v461 = vpop.f32.mrf.mxu0
  %462 = vdwg.mxu0
  %v463 = vrcp.pop %v358
  %v464 = vrcp.pop %v361
  %v465 = vmul.f32 %v409, %v463
  %v466 = vmul.f32 %v458, %v464
  %v467 = vld [vmem:[%s9] sm:$0xff]
  %v468 = vpack.c.bf16 %v466, %v465
  %v469 = vpack.c.bf16 %v467, %v467
  %471 = vrot.lane.b32.xlu0 %v247, 120
  %v472 = vpop.permute.xlu0 %471
  %473 = vrot.lane.b32.xlu0 %v249, 120
  %v474 = vpop.permute.xlu0 %473
  %v476 = vsel %vm251, %v472, 0
  %v479 = vsel %vm251, %v474, 0
  %481 = vmatprep.subr.bf16.mxu0 0
  %482 = vmatpush1.bf16.xpose.msra.mxu0 0
  %483 = vmatprep.subr.bf16.mxu0 0
  %484 = vmatpush1.bf16.xpose.msra.mxu0 0
  %485 = vmatprep.subr.bf16.mxu0 0
  %486 = vmatpush1.bf16.xpose.msra.mxu0 0
  %487 = vmatprep.subr.bf16.mxu0 0
  %488 = vmatpush1.bf16.xpose.msra.mxu0 0
  %489 = vmatprep.subr.bf16.mxu0 0
  %490 = vmatpush1.bf16.xpose.msra.mxu0 0
  %491 = vmatprep.subr.bf16.mxu0 0
  %492 = vmatpush1.bf16.xpose.msra.mxu0 0
  %493 = vmatprep.subr.bf16.mxu0 0
  %494 = vmatpush1.bf16.xpose.msra.mxu0 0
  %495 = vmatprep.subr.bf16.mxu0 0
  %496 = vmatpush1.bf16.xpose.msra.mxu0 %v479
  %497 = vmatprep.subr.bf16.mxu0 0
  %498 = vmatpush2.bf16.xpose.msra.mxu0 0
  %499 = vmatprep.subr.bf16.mxu0 0
  %500 = vmatpush2.bf16.xpose.msra.mxu0 0
  %501 = vmatprep.subr.bf16.mxu0 0
  %502 = vmatpush2.bf16.xpose.msra.mxu0 0
  %503 = vmatprep.subr.bf16.mxu0 0
  %504 = vmatpush2.bf16.xpose.msra.mxu0 0
  %505 = vmatprep.subr.bf16.mxu0 0
  %506 = vmatpush2.bf16.xpose.msra.mxu0 0
  %507 = vmatprep.subr.bf16.mxu0 0
  %508 = vmatpush2.bf16.xpose.msra.mxu0 0
  %509 = vmatprep.subr.bf16.mxu0 0
  %510 = vmatpush2.bf16.xpose.msra.mxu0 0
  %511 = vmatprep.subr.bf16.mxu0 0
  %512 = vmatpush2.bf16.xpose.msra.mxu0 0
  %513 = vmatprep.mubr.bf16.mxu0 0
  %514 = vmatmul.mubr.bf16.gmra.mxu0 %v476
  %v515 = vpop.f32.mrf.mxu0
  %v516 = vadd.f32 %v245, %v515
  %v517 = vpop.f32.mrf.mxu0
  %v518 = vpop.f32.mrf.mxu0
  %v519 = vpop.f32.mrf.mxu0
  %520 = vdwg.mxu0
  %522 = vrot.lane.b32.xlu0 %v248, 120
  %v523 = vpop.permute.xlu0 %522
  %524 = vrot.lane.b32.xlu0 %v250, 120
  %v525 = vpop.permute.xlu0 %524
  %v527 = vsel %vm251, %v523, 0
  %v530 = vsel %vm251, %v525, 0
  %532 = vmatprep.subr.bf16.mxu0 0
  %533 = vmatpush1.bf16.xpose.msra.mxu0 0
  %534 = vmatprep.subr.bf16.mxu0 0
  %535 = vmatpush1.bf16.xpose.msra.mxu0 0
  %536 = vmatprep.subr.bf16.mxu0 0
  %537 = vmatpush1.bf16.xpose.msra.mxu0 0
  %538 = vmatprep.subr.bf16.mxu0 0
  %539 = vmatpush1.bf16.xpose.msra.mxu0 0
  %540 = vmatprep.subr.bf16.mxu0 0
  %541 = vmatpush1.bf16.xpose.msra.mxu0 0
  %542 = vmatprep.subr.bf16.mxu0 0
  %543 = vmatpush1.bf16.xpose.msra.mxu0 0
  %544 = vmatprep.subr.bf16.mxu0 0
  %545 = vmatpush1.bf16.xpose.msra.mxu0 0
  %546 = vmatprep.subr.bf16.mxu0 0
  %547 = vmatpush1.bf16.xpose.msra.mxu0 %v530
  %548 = vmatprep.subr.bf16.mxu0 0
  %549 = vmatpush2.bf16.xpose.msra.mxu0 0
  %550 = vmatprep.subr.bf16.mxu0 0
  %551 = vmatpush2.bf16.xpose.msra.mxu0 0
  %552 = vmatprep.subr.bf16.mxu0 0
  %553 = vmatpush2.bf16.xpose.msra.mxu0 0
  %554 = vmatprep.subr.bf16.mxu0 0
  %555 = vmatpush2.bf16.xpose.msra.mxu0 0
  %556 = vmatprep.subr.bf16.mxu0 0
  %557 = vmatpush2.bf16.xpose.msra.mxu0 0
  %558 = vmatprep.subr.bf16.mxu0 0
  %559 = vmatpush2.bf16.xpose.msra.mxu0 0
  %560 = vmatprep.subr.bf16.mxu0 0
  %561 = vmatpush2.bf16.xpose.msra.mxu0 0
  %562 = vmatprep.subr.bf16.mxu0 0
  %563 = vmatpush2.bf16.xpose.msra.mxu0 0
  %564 = vmatprep.mubr.bf16.mxu0 0
  %565 = vmatmul.mubr.bf16.gmra.mxu0 %v527
  %v566 = vpop.f32.mrf.mxu0
  %v567 = vadd.f32 %v246, %v566
  %v568 = vpop.f32.mrf.mxu0
  %v569 = vpop.f32.mrf.mxu0
  %v570 = vpop.f32.mrf.mxu0
  %571 = vdwg.mxu0
  %v572 = vsel %vm251, %v516, -inf
  %573 = vmax.xlane.f32.xlu0 %v572
  %v574 = vpop.xlane.xlu0 %573
  %v575 = vsel %vm251, %v567, -inf
  %576 = vmax.xlane.f32.xlu0 %v575
  %v577 = vpop.xlane.xlu0 %576
  %v578 = vsub.f32 %v516, %v574
  %v579 = vsub.f32 %v567, %v577
  %v580 = vmul.f32 %v578, 1.442695
  %v581 = vpow.pop %v580
  %v582 = vmul.f32 %v579, 1.442695
  %v583 = vpow.pop %v582
  %v584 = vsel %vm251, %v581, 0.0
  %585 = vadd.xlane.f32.xlu0 %v584
  %v586 = vpop.xlane.xlu0 %585
  %v587 = vsel %vm251, %v583, 0.0
  %588 = vadd.xlane.f32.xlu0 %v587
  %v589 = vpop.xlane.xlu0 %588
  %v590 = vpack.c.bf16 %v581, %v581
  %v591 = vpack.c.bf16 %v583, %v583
  %592 = vrot.lane.b32.xlu0 %v249, 88
  %v593 = vpop.permute.xlu0 %592
  %v595 = vsel %vm251, %v590, 0
  %v598 = vsel %vm370, %v593, 0
  %600 = vmatprep.subr.bf16.mxu0 0
  %601 = vmatpush1.bf16.msra.mxu0 0
  %602 = vmatprep.subr.bf16.mxu0 0
  %603 = vmatpush1.bf16.msra.mxu0 0
  %604 = vmatprep.subr.bf16.mxu0 0
  %605 = vmatpush1.bf16.msra.mxu0 0
  %606 = vmatprep.subr.bf16.mxu0 0
  %607 = vmatpush1.bf16.msra.mxu0 0
  %608 = vmatprep.subr.bf16.mxu0 0
  %609 = vmatpush1.bf16.msra.mxu0 0
  %610 = vmatprep.subr.bf16.mxu0 0
  %611 = vmatpush1.bf16.msra.mxu0 0
  %612 = vmatprep.subr.bf16.mxu0 0
  %613 = vmatpush1.bf16.msra.mxu0 0
  %614 = vmatprep.subr.bf16.mxu0 0
  %615 = vmatpush1.bf16.msra.mxu0 %v598
  %616 = vmatprep.subr.bf16.mxu0 0
  %617 = vmatpush2.bf16.msra.mxu0 0
  %618 = vmatprep.subr.bf16.mxu0 0
  %619 = vmatpush2.bf16.msra.mxu0 0
  %620 = vmatprep.subr.bf16.mxu0 0
  %621 = vmatpush2.bf16.msra.mxu0 0
  %622 = vmatprep.subr.bf16.mxu0 0
  %623 = vmatpush2.bf16.msra.mxu0 0
  %624 = vmatprep.subr.bf16.mxu0 0
  %625 = vmatpush2.bf16.msra.mxu0 0
  %626 = vmatprep.subr.bf16.mxu0 0
  %627 = vmatpush2.bf16.msra.mxu0 0
  %628 = vmatprep.subr.bf16.mxu0 0
  %629 = vmatpush2.bf16.msra.mxu0 0
  %630 = vmatprep.subr.bf16.mxu0 0
  %631 = vmatpush2.bf16.msra.mxu0 0
  %632 = vmatprep.mubr.bf16.mxu0 0
  %633 = vmatmul.mubr.bf16.gmra.mxu0 %v595
  %v634 = vpop.f32.mrf.mxu0
  %v635 = vadd.f32 0.0, %v634
  %v636 = vpop.f32.mrf.mxu0
  %v637 = vpop.f32.mrf.mxu0
  %v638 = vpop.f32.mrf.mxu0
  %639 = vdwg.mxu0
  %640 = vrot.lane.b32.xlu0 %v250, 88
  %v641 = vpop.permute.xlu0 %640
  %v643 = vsel %vm251, %v591, 0
  %v646 = vsel %vm370, %v641, 0
  %648 = vmatprep.subr.bf16.mxu0 0
  %649 = vmatpush1.bf16.msra.mxu0 0
  %650 = vmatprep.subr.bf16.mxu0 0
  %651 = vmatpush1.bf16.msra.mxu0 0
  %652 = vmatprep.subr.bf16.mxu0 0
  %653 = vmatpush1.bf16.msra.mxu0 0
  %654 = vmatprep.subr.bf16.mxu0 0
  %655 = vmatpush1.bf16.msra.mxu0 0
  %656 = vmatprep.subr.bf16.mxu0 0
  %657 = vmatpush1.bf16.msra.mxu0 0
  %658 = vmatprep.subr.bf16.mxu0 0
  %659 = vmatpush1.bf16.msra.mxu0 0
  %660 = vmatprep.subr.bf16.mxu0 0
  %661 = vmatpush1.bf16.msra.mxu0 0
  %662 = vmatprep.subr.bf16.mxu0 0
  %663 = vmatpush1.bf16.msra.mxu0 %v646
  %664 = vmatprep.subr.bf16.mxu0 0
  %665 = vmatpush2.bf16.msra.mxu0 0
  %666 = vmatprep.subr.bf16.mxu0 0
  %667 = vmatpush2.bf16.msra.mxu0 0
  %668 = vmatprep.subr.bf16.mxu0 0
  %669 = vmatpush2.bf16.msra.mxu0 0
  %670 = vmatprep.subr.bf16.mxu0 0
  %671 = vmatpush2.bf16.msra.mxu0 0
  %672 = vmatprep.subr.bf16.mxu0 0
  %673 = vmatpush2.bf16.msra.mxu0 0
  %674 = vmatprep.subr.bf16.mxu0 0
  %675 = vmatpush2.bf16.msra.mxu0 0
  %676 = vmatprep.subr.bf16.mxu0 0
  %677 = vmatpush2.bf16.msra.mxu0 0
  %678 = vmatprep.subr.bf16.mxu0 0
  %679 = vmatpush2.bf16.msra.mxu0 0
  %680 = vmatprep.mubr.bf16.mxu0 0
  %681 = vmatmul.mubr.bf16.gmra.mxu0 %v643
  %v682 = vpop.f32.mrf.mxu0
  %v683 = vadd.f32 0.0, %v682
  %v684 = vpop.f32.mrf.mxu0
  %v685 = vpop.f32.mrf.mxu0
  %v686 = vpop.f32.mrf.mxu0
  %687 = vdwg.mxu0
  %v688 = vrcp.pop %v586
  %v689 = vrcp.pop %v589
  %v690 = vmul.f32 %v635, %v688
  %v691 = vmul.f32 %v683, %v689
  %v692 = vld [vmem:[%s9 + $0x8] sm:$0xff]
  %v693 = vpack.c.bf16 %v691, %v690
  %v694 = vpack.c.bf16 %v692, %v692
  %v696 = vsel %vm251, %v693, 0
  %v699 = vsel %vm370, %v694, 0
  %701 = vmatprep.subr.bf16.mxu0 0
  %702 = vmatpush1.bf16.msra.mxu0 0
  %703 = vmatprep.subr.bf16.mxu0 0
  %704 = vmatpush1.bf16.msra.mxu0 0
  %705 = vmatprep.subr.bf16.mxu0 0
  %706 = vmatpush1.bf16.msra.mxu0 0
  %707 = vmatprep.subr.bf16.mxu0 0
  %708 = vmatpush1.bf16.msra.mxu0 0
  %709 = vmatprep.subr.bf16.mxu0 0
  %710 = vmatpush1.bf16.msra.mxu0 0
  %711 = vmatprep.subr.bf16.mxu0 0
  %712 = vmatpush1.bf16.msra.mxu0 0
  %713 = vmatprep.subr.bf16.mxu0 0
  %714 = vmatpush1.bf16.msra.mxu0 0
  %715 = vmatprep.subr.bf16.mxu0 0
  %716 = vmatpush1.bf16.msra.mxu0 %v699
  %717 = vmatprep.subr.bf16.mxu0 0
  %718 = vmatpush2.bf16.msra.mxu0 0
  %719 = vmatprep.subr.bf16.mxu0 0
  %720 = vmatpush2.bf16.msra.mxu0 0
  %721 = vmatprep.subr.bf16.mxu0 0
  %722 = vmatpush2.bf16.msra.mxu0 0
  %723 = vmatprep.subr.bf16.mxu0 0
  %724 = vmatpush2.bf16.msra.mxu0 0
  %725 = vmatprep.subr.bf16.mxu0 0
  %726 = vmatpush2.bf16.msra.mxu0 0
  %727 = vmatprep.subr.bf16.mxu0 0
  %728 = vmatpush2.bf16.msra.mxu0 0
  %729 = vmatprep.subr.bf16.mxu0 0
  %730 = vmatpush2.bf16.msra.mxu0 0
  %731 = vmatprep.subr.bf16.mxu0 0
  %732 = vmatpush2.bf16.msra.mxu0 0
  %733 = vmatprep.mubr.bf16.mxu0 0
  %734 = vmatmul.mubr.bf16.gmra.mxu0 %v696
  %v735 = vpop.f32.mrf.mxu0
  %v736 = vadd.f32 0.0, %v735
  %v737 = vpop.f32.mrf.mxu0
  %v738 = vpop.f32.mrf.mxu0
  %v739 = vadd.f32 0.0, %v738
  %v740 = vpop.f32.mrf.mxu0
  %741 = vdwg.mxu0
  %v743 = vsel %vm251, %v468, 0
  %v746 = vsel %vm370, %v469, 0
  %748 = vmatprep.subr.bf16.mxu0 0
  %749 = vmatpush1.bf16.msra.mxu0 0
  %750 = vmatprep.subr.bf16.mxu0 0
  %751 = vmatpush1.bf16.msra.mxu0 0
  %752 = vmatprep.subr.bf16.mxu0 0
  %753 = vmatpush1.bf16.msra.mxu0 0
  %754 = vmatprep.subr.bf16.mxu0 0
  %755 = vmatpush1.bf16.msra.mxu0 0
  %756 = vmatprep.subr.bf16.mxu0 0
  %757 = vmatpush1.bf16.msra.mxu0 0
  %758 = vmatprep.subr.bf16.mxu0 0
  %759 = vmatpush1.bf16.msra.mxu0 0
  %760 = vmatprep.subr.bf16.mxu0 0
  %761 = vmatpush1.bf16.msra.mxu0 0
  %762 = vmatprep.subr.bf16.mxu0 0
  %763 = vmatpush1.bf16.msra.mxu0 %v746
  %764 = vmatprep.subr.bf16.mxu0 0
  %765 = vmatpush2.bf16.msra.mxu0 0
  %766 = vmatprep.subr.bf16.mxu0 0
  %767 = vmatpush2.bf16.msra.mxu0 0
  %768 = vmatprep.subr.bf16.mxu0 0
  %769 = vmatpush2.bf16.msra.mxu0 0
  %770 = vmatprep.subr.bf16.mxu0 0
  %771 = vmatpush2.bf16.msra.mxu0 0
  %772 = vmatprep.subr.bf16.mxu0 0
  %773 = vmatpush2.bf16.msra.mxu0 0
  %774 = vmatprep.subr.bf16.mxu0 0
  %775 = vmatpush2.bf16.msra.mxu0 0
  %776 = vmatprep.subr.bf16.mxu0 0
  %777 = vmatpush2.bf16.msra.mxu0 0
  %778 = vmatprep.subr.bf16.mxu0 0
  %779 = vmatpush2.bf16.msra.mxu0 0
  %780 = vmatprep.mubr.bf16.mxu0 0
  %781 = vmatmul.mubr.bf16.gmra.mxu0 %v743
  %v782 = vpop.f32.mrf.mxu0
  %v783 = vadd.f32 %v736, %v782
  %v784 = vpop.f32.mrf.mxu0
  %v785 = vpop.f32.mrf.mxu0
  %v786 = vadd.f32 %v739, %v785
  %v787 = vpop.f32.mrf.mxu0
  %788 = vdwg.mxu0
  %789 = vrot.lane.b32.xlu0 %v247, 112
  %v790 = vpop.permute.xlu0 %789
  %791 = vrot.lane.b32.xlu0 %v249, 112
  %v792 = vpop.permute.xlu0 %791
  %v794 = vsel %vm251, %v790, 0
  %v797 = vsel %vm251, %v792, 0
  %799 = vmatprep.subr.bf16.mxu0 0
  %800 = vmatpush1.bf16.xpose.msra.mxu0 0
  %801 = vmatprep.subr.bf16.mxu0 0
  %802 = vmatpush1.bf16.xpose.msra.mxu0 0
  %803 = vmatprep.subr.bf16.mxu0 0
  %804 = vmatpush1.bf16.xpose.msra.mxu0 0
  %805 = vmatprep.subr.bf16.mxu0 0
  %806 = vmatpush1.bf16.xpose.msra.mxu0 0
  %807 = vmatprep.subr.bf16.mxu0 0
  %808 = vmatpush1.bf16.xpose.msra.mxu0 0
  %809 = vmatprep.subr.bf16.mxu0 0
  %810 = vmatpush1.bf16.xpose.msra.mxu0 0
  %811 = vmatprep.subr.bf16.mxu0 0
  %812 = vmatpush1.bf16.xpose.msra.mxu0 0
  %813 = vmatprep.subr.bf16.mxu0 0
  %814 = vmatpush1.bf16.xpose.msra.mxu0 %v797
  %815 = vmatprep.subr.bf16.mxu0 0
  %816 = vmatpush2.bf16.xpose.msra.mxu0 0
  %817 = vmatprep.subr.bf16.mxu0 0
  %818 = vmatpush2.bf16.xpose.msra.mxu0 0
  %819 = vmatprep.subr.bf16.mxu0 0
  %820 = vmatpush2.bf16.xpose.msra.mxu0 0
  %821 = vmatprep.subr.bf16.mxu0 0
  %822 = vmatpush2.bf16.xpose.msra.mxu0 0
  %823 = vmatprep.subr.bf16.mxu0 0
  %824 = vmatpush2.bf16.xpose.msra.mxu0 0
  %825 = vmatprep.subr.bf16.mxu0 0
  %826 = vmatpush2.bf16.xpose.msra.mxu0 0
  %827 = vmatprep.subr.bf16.mxu0 0
  %828 = vmatpush2.bf16.xpose.msra.mxu0 0
  %829 = vmatprep.subr.bf16.mxu0 0
  %830 = vmatpush2.bf16.xpose.msra.mxu0 0
  %831 = vmatprep.mubr.bf16.mxu0 0
  %832 = vmatmul.mubr.bf16.gmra.mxu0 %v794
  %v833 = vpop.f32.mrf.mxu0
  %v834 = vadd.f32 %v245, %v833
  %v835 = vpop.f32.mrf.mxu0
  %v836 = vpop.f32.mrf.mxu0
  %v837 = vpop.f32.mrf.mxu0
  %838 = vdwg.mxu0
  %839 = vrot.lane.b32.xlu0 %v248, 112
  %v840 = vpop.permute.xlu0 %839
  %841 = vrot.lane.b32.xlu0 %v250, 112
  %v842 = vpop.permute.xlu0 %841
  %v844 = vsel %vm251, %v840, 0
  %v847 = vsel %vm251, %v842, 0
  %849 = vmatprep.subr.bf16.mxu0 0
  %850 = vmatpush1.bf16.xpose.msra.mxu0 0
  %851 = vmatprep.subr.bf16.mxu0 0
  %852 = vmatpush1.bf16.xpose.msra.mxu0 0
  %853 = vmatprep.subr.bf16.mxu0 0
  %854 = vmatpush1.bf16.xpose.msra.mxu0 0
  %855 = vmatprep.subr.bf16.mxu0 0
  %856 = vmatpush1.bf16.xpose.msra.mxu0 0
  %857 = vmatprep.subr.bf16.mxu0 0
  %858 = vmatpush1.bf16.xpose.msra.mxu0 0
  %859 = vmatprep.subr.bf16.mxu0 0
  %860 = vmatpush1.bf16.xpose.msra.mxu0 0
  %861 = vmatprep.subr.bf16.mxu0 0
  %862 = vmatpush1.bf16.xpose.msra.mxu0 0
  %863 = vmatprep.subr.bf16.mxu0 0
  %864 = vmatpush1.bf16.xpose.msra.mxu0 %v847
  %865 = vmatprep.subr.bf16.mxu0 0
  %866 = vmatpush2.bf16.xpose.msra.mxu0 0
  %867 = vmatprep.subr.bf16.mxu0 0
  %868 = vmatpush2.bf16.xpose.msra.mxu0 0
  %869 = vmatprep.subr.bf16.mxu0 0
  %870 = vmatpush2.bf16.xpose.msra.mxu0 0
  %871 = vmatprep.subr.bf16.mxu0 0
  %872 = vmatpush2.bf16.xpose.msra.mxu0 0
  %873 = vmatprep.subr.bf16.mxu0 0
  %874 = vmatpush2.bf16.xpose.msra.mxu0 0
  %875 = vmatprep.subr.bf16.mxu0 0
  %876 = vmatpush2.bf16.xpose.msra.mxu0 0
  %877 = vmatprep.subr.bf16.mxu0 0
  %878 = vmatpush2.bf16.xpose.msra.mxu0 0
  %879 = vmatprep.subr.bf16.mxu0 0
  %880 = vmatpush2.bf16.xpose.msra.mxu0 0
  %881 = vmatprep.mubr.bf16.mxu0 0
  %882 = vmatmul.mubr.bf16.gmra.mxu0 %v844
  %v883 = vpop.f32.mrf.mxu0
  %v884 = vadd.f32 %v246, %v883
  %v885 = vpop.f32.mrf.mxu0
  %v886 = vpop.f32.mrf.mxu0
  %v887 = vpop.f32.mrf.mxu0
  %888 = vdwg.mxu0
  %v889 = vsel %vm251, %v834, -inf
  %890 = vmax.xlane.f32.xlu0 %v889
  %v891 = vpop.xlane.xlu0 %890
  %v892 = vsel %vm251, %v884, -inf
  %893 = vmax.xlane.f32.xlu0 %v892
  %v894 = vpop.xlane.xlu0 %893
  %v895 = vsub.f32 %v834, %v891
  %v896 = vsub.f32 %v884, %v894
  %v897 = vmul.f32 %v895, 1.442695
  %v898 = vpow.pop %v897
  %v899 = vmul.f32 %v896, 1.442695
  %v900 = vpow.pop %v899
  %v901 = vsel %vm251, %v898, 0.0
  %902 = vadd.xlane.f32.xlu0 %v901
  %v903 = vpop.xlane.xlu0 %902
  %v904 = vsel %vm251, %v900, 0.0
  %905 = vadd.xlane.f32.xlu0 %v904
  %v906 = vpop.xlane.xlu0 %905
  %v907 = vpack.c.bf16 %v898, %v898
  %v908 = vpack.c.bf16 %v900, %v900
  %909 = vrot.lane.b32.xlu0 %v249, 80
  %v910 = vpop.permute.xlu0 %909
  %v912 = vsel %vm251, %v907, 0
  %v915 = vsel %vm370, %v910, 0
  %917 = vmatprep.subr.bf16.mxu0 0
  %918 = vmatpush1.bf16.msra.mxu0 0
  %919 = vmatprep.subr.bf16.mxu0 0
  %920 = vmatpush1.bf16.msra.mxu0 0
  %921 = vmatprep.subr.bf16.mxu0 0
  %922 = vmatpush1.bf16.msra.mxu0 0
  %923 = vmatprep.subr.bf16.mxu0 0
  %924 = vmatpush1.bf16.msra.mxu0 0
  %925 = vmatprep.subr.bf16.mxu0 0
  %926 = vmatpush1.bf16.msra.mxu0 0
  %927 = vmatprep.subr.bf16.mxu0 0
  %928 = vmatpush1.bf16.msra.mxu0 0
  %929 = vmatprep.subr.bf16.mxu0 0
  %930 = vmatpush1.bf16.msra.mxu0 0
  %931 = vmatprep.subr.bf16.mxu0 0
  %932 = vmatpush1.bf16.msra.mxu0 %v915
  %933 = vmatprep.subr.bf16.mxu0 0
  %934 = vmatpush2.bf16.msra.mxu0 0
  %935 = vmatprep.subr.bf16.mxu0 0
  %936 = vmatpush2.bf16.msra.mxu0 0
  %937 = vmatprep.subr.bf16.mxu0 0
  %938 = vmatpush2.bf16.msra.mxu0 0
  %939 = vmatprep.subr.bf16.mxu0 0
  %940 = vmatpush2.bf16.msra.mxu0 0
  %941 = vmatprep.subr.bf16.mxu0 0
  %942 = vmatpush2.bf16.msra.mxu0 0
  %943 = vmatprep.subr.bf16.mxu0 0
  %944 = vmatpush2.bf16.msra.mxu0 0
  %945 = vmatprep.subr.bf16.mxu0 0
  %946 = vmatpush2.bf16.msra.mxu0 0
  %947 = vmatprep.subr.bf16.mxu0 0
  %948 = vmatpush2.bf16.msra.mxu0 0
  %949 = vmatprep.mubr.bf16.mxu0 0
  %950 = vmatmul.mubr.bf16.gmra.mxu0 %v912
  %v951 = vpop.f32.mrf.mxu0
  %v952 = vadd.f32 0.0, %v951
  %v953 = vpop.f32.mrf.mxu0
  %v954 = vpop.f32.mrf.mxu0
  %v955 = vpop.f32.mrf.mxu0
  %956 = vdwg.mxu0
  %957 = vrot.lane.b32.xlu0 %v250, 80
  %v958 = vpop.permute.xlu0 %957
  %v960 = vsel %vm251, %v908, 0
  %v963 = vsel %vm370, %v958, 0
  %965 = vmatprep.subr.bf16.mxu0 0
  %966 = vmatpush1.bf16.msra.mxu0 0
  %967 = vmatprep.subr.bf16.mxu0 0
  %968 = vmatpush1.bf16.msra.mxu0 0
  %969 = vmatprep.subr.bf16.mxu0 0
  %970 = vmatpush1.bf16.msra.mxu0 0
  %971 = vmatprep.subr.bf16.mxu0 0
  %972 = vmatpush1.bf16.msra.mxu0 0
  %973 = vmatprep.subr.bf16.mxu0 0
  %974 = vmatpush1.bf16.msra.mxu0 0
  %975 = vmatprep.subr.bf16.mxu0 0
  %976 = vmatpush1.bf16.msra.mxu0 0
  %977 = vmatprep.subr.bf16.mxu0 0
  %978 = vmatpush1.bf16.msra.mxu0 0
  %979 = vmatprep.subr.bf16.mxu0 0
  %980 = vmatpush1.bf16.msra.mxu0 %v963
  %981 = vmatprep.subr.bf16.mxu0 0
  %982 = vmatpush2.bf16.msra.mxu0 0
  %983 = vmatprep.subr.bf16.mxu0 0
  %984 = vmatpush2.bf16.msra.mxu0 0
  %985 = vmatprep.subr.bf16.mxu0 0
  %986 = vmatpush2.bf16.msra.mxu0 0
  %987 = vmatprep.subr.bf16.mxu0 0
  %988 = vmatpush2.bf16.msra.mxu0 0
  %989 = vmatprep.subr.bf16.mxu0 0
  %990 = vmatpush2.bf16.msra.mxu0 0
  %991 = vmatprep.subr.bf16.mxu0 0
  %992 = vmatpush2.bf16.msra.mxu0 0
  %993 = vmatprep.subr.bf16.mxu0 0
  %994 = vmatpush2.bf16.msra.mxu0 0
  %995 = vmatprep.subr.bf16.mxu0 0
  %996 = vmatpush2.bf16.msra.mxu0 0
  %997 = vmatprep.mubr.bf16.mxu0 0
  %998 = vmatmul.mubr.bf16.gmra.mxu0 %v960
  %v999 = vpop.f32.mrf.mxu0
  %v1000 = vadd.f32 0.0, %v999
  %v1001 = vpop.f32.mrf.mxu0
  %v1002 = vpop.f32.mrf.mxu0
  %v1003 = vpop.f32.mrf.mxu0
  %1004 = vdwg.mxu0
  %v1005 = vrcp.pop %v903
  %v1006 = vrcp.pop %v906
  %v1007 = vmul.f32 %v952, %v1005
  %v1008 = vmul.f32 %v1000, %v1006
  %v1009 = vld [vmem:[%s9 + $0x10] sm:$0xff]
  %v1010 = vpack.c.bf16 %v1008, %v1007
  %v1011 = vpack.c.bf16 %v1009, %v1009
  %v1013 = vsel %vm251, %v1010, 0
  %v1016 = vsel %vm370, %v1011, 0
  %1018 = vmatprep.subr.bf16.mxu0 0
  %1019 = vmatpush1.bf16.msra.mxu0 0
  %1020 = vmatprep.subr.bf16.mxu0 0
  %1021 = vmatpush1.bf16.msra.mxu0 0
  %1022 = vmatprep.subr.bf16.mxu0 0
  %1023 = vmatpush1.bf16.msra.mxu0 0
  %1024 = vmatprep.subr.bf16.mxu0 0
  %1025 = vmatpush1.bf16.msra.mxu0 0
  %1026 = vmatprep.subr.bf16.mxu0 0
  %1027 = vmatpush1.bf16.msra.mxu0 0
  %1028 = vmatprep.subr.bf16.mxu0 0
  %1029 = vmatpush1.bf16.msra.mxu0 0
  %1030 = vmatprep.subr.bf16.mxu0 0
  %1031 = vmatpush1.bf16.msra.mxu0 0
  %1032 = vmatprep.subr.bf16.mxu0 0
  %1033 = vmatpush1.bf16.msra.mxu0 %v1016
  %1034 = vmatprep.subr.bf16.mxu0 0
  %1035 = vmatpush2.bf16.msra.mxu0 0
  %1036 = vmatprep.subr.bf16.mxu0 0
  %1037 = vmatpush2.bf16.msra.mxu0 0
  %1038 = vmatprep.subr.bf16.mxu0 0
  %1039 = vmatpush2.bf16.msra.mxu0 0
  %1040 = vmatprep.subr.bf16.mxu0 0
  %1041 = vmatpush2.bf16.msra.mxu0 0
  %1042 = vmatprep.subr.bf16.mxu0 0
  %1043 = vmatpush2.bf16.msra.mxu0 0
  %1044 = vmatprep.subr.bf16.mxu0 0
  %1045 = vmatpush2.bf16.msra.mxu0 0
  %1046 = vmatprep.subr.bf16.mxu0 0
  %1047 = vmatpush2.bf16.msra.mxu0 0
  %1048 = vmatprep.subr.bf16.mxu0 0
  %1049 = vmatpush2.bf16.msra.mxu0 0
  %1050 = vmatprep.mubr.bf16.mxu0 0
  %1051 = vmatmul.mubr.bf16.gmra.mxu0 %v1013
  %v1052 = vpop.f32.mrf.mxu0
  %v1053 = vadd.f32 0.0, %v1052
  %v1054 = vpop.f32.mrf.mxu0
  %v1055 = vpop.f32.mrf.mxu0
  %v1056 = vadd.f32 0.0, %v1055
  %v1057 = vpop.f32.mrf.mxu0
  %1058 = vdwg.mxu0
  %v1059 = vadd.f32 %v783, %v1053
  %v1060 = vadd.f32 %v786, %v1056
  %1061 = vrot.lane.b32.xlu0 %v247, 104
  %v1062 = vpop.permute.xlu0 %1061
  %1063 = vrot.lane.b32.xlu0 %v249, 104
  %v1064 = vpop.permute.xlu0 %1063
  %v1066 = vsel %vm251, %v1062, 0
  %v1069 = vsel %vm251, %v1064, 0
  %1071 = vmatprep.subr.bf16.mxu0 0
  %1072 = vmatpush1.bf16.xpose.msra.mxu0 0
  %1073 = vmatprep.subr.bf16.mxu0 0
  %1074 = vmatpush1.bf16.xpose.msra.mxu0 0
  %1075 = vmatprep.subr.bf16.mxu0 0
  %1076 = vmatpush1.bf16.xpose.msra.mxu0 0
  %1077 = vmatprep.subr.bf16.mxu0 0
  %1078 = vmatpush1.bf16.xpose.msra.mxu0 0
  %1079 = vmatprep.subr.bf16.mxu0 0
  %1080 = vmatpush1.bf16.xpose.msra.mxu0 0
  %1081 = vmatprep.subr.bf16.mxu0 0
  %1082 = vmatpush1.bf16.xpose.msra.mxu0 0
  %1083 = vmatprep.subr.bf16.mxu0 0
  %1084 = vmatpush1.bf16.xpose.msra.mxu0 0
  %1085 = vmatprep.subr.bf16.mxu0 0
  %1086 = vmatpush1.bf16.xpose.msra.mxu0 %v1069
  %1087 = vmatprep.subr.bf16.mxu0 0
  %1088 = vmatpush2.bf16.xpose.msra.mxu0 0
  %1089 = vmatprep.subr.bf16.mxu0 0
  %1090 = vmatpush2.bf16.xpose.msra.mxu0 0
  %1091 = vmatprep.subr.bf16.mxu0 0
  %1092 = vmatpush2.bf16.xpose.msra.mxu0 0
  %1093 = vmatprep.subr.bf16.mxu0 0
  %1094 = vmatpush2.bf16.xpose.msra.mxu0 0
  %1095 = vmatprep.subr.bf16.mxu0 0
  %1096 = vmatpush2.bf16.xpose.msra.mxu0 0
  %1097 = vmatprep.subr.bf16.mxu0 0
  %1098 = vmatpush2.bf16.xpose.msra.mxu0 0
  %1099 = vmatprep.subr.bf16.mxu0 0
  %1100 = vmatpush2.bf16.xpose.msra.mxu0 0
  %1101 = vmatprep.subr.bf16.mxu0 0
  %1102 = vmatpush2.bf16.xpose.msra.mxu0 0
  %1103 = vmatprep.mubr.bf16.mxu0 0
  %1104 = vmatmul.mubr.bf16.gmra.mxu0 %v1066
  %v1105 = vpop.f32.mrf.mxu0
  %v1106 = vadd.f32 %v245, %v1105
  %v1107 = vpop.f32.mrf.mxu0
  %v1108 = vpop.f32.mrf.mxu0
  %v1109 = vpop.f32.mrf.mxu0
  %1110 = vdwg.mxu0
  %1111 = vrot.lane.b32.xlu0 %v248, 104
  %v1112 = vpop.permute.xlu0 %1111
  %1113 = vrot.lane.b32.xlu0 %v250, 104
  %v1114 = vpop.permute.xlu0 %1113
  %v1116 = vsel %vm251, %v1112, 0
  %v1119 = vsel %vm251, %v1114, 0
  %1121 = vmatprep.subr.bf16.mxu0 0
  %1122 = vmatpush1.bf16.xpose.msra.mxu0 0
  %1123 = vmatprep.subr.bf16.mxu0 0
  %1124 = vmatpush1.bf16.xpose.msra.mxu0 0
  %1125 = vmatprep.subr.bf16.mxu0 0
  %1126 = vmatpush1.bf16.xpose.msra.mxu0 0
  %1127 = vmatprep.subr.bf16.mxu0 0
  %1128 = vmatpush1.bf16.xpose.msra.mxu0 0
  %1129 = vmatprep.subr.bf16.mxu0 0
  %1130 = vmatpush1.bf16.xpose.msra.mxu0 0
  %1131 = vmatprep.subr.bf16.mxu0 0
  %1132 = vmatpush1.bf16.xpose.msra.mxu0 0
  %1133 = vmatprep.subr.bf16.mxu0 0
  %1134 = vmatpush1.bf16.xpose.msra.mxu0 0
  %1135 = vmatprep.subr.bf16.mxu0 0
  %1136 = vmatpush1.bf16.xpose.msra.mxu0 %v1119
  %1137 = vmatprep.subr.bf16.mxu0 0
  %1138 = vmatpush2.bf16.xpose.msra.mxu0 0
  %1139 = vmatprep.subr.bf16.mxu0 0
  %1140 = vmatpush2.bf16.xpose.msra.mxu0 0
  %1141 = vmatprep.subr.bf16.mxu0 0
  %1142 = vmatpush2.bf16.xpose.msra.mxu0 0
  %1143 = vmatprep.subr.bf16.mxu0 0
  %1144 = vmatpush2.bf16.xpose.msra.mxu0 0
  %1145 = vmatprep.subr.bf16.mxu0 0
  %1146 = vmatpush2.bf16.xpose.msra.mxu0 0
  %1147 = vmatprep.subr.bf16.mxu0 0
  %1148 = vmatpush2.bf16.xpose.msra.mxu0 0
  %1149 = vmatprep.subr.bf16.mxu0 0
  %1150 = vmatpush2.bf16.xpose.msra.mxu0 0
  %1151 = vmatprep.subr.bf16.mxu0 0
  %1152 = vmatpush2.bf16.xpose.msra.mxu0 0
  %1153 = vmatprep.mubr.bf16.mxu0 0
  %1154 = vmatmul.mubr.bf16.gmra.mxu0 %v1116
  %v1155 = vpop.f32.mrf.mxu0
  %v1156 = vadd.f32 %v246, %v1155
  %v1157 = vpop.f32.mrf.mxu0
  %v1158 = vpop.f32.mrf.mxu0
  %v1159 = vpop.f32.mrf.mxu0
  %1160 = vdwg.mxu0
  %v1161 = vsel %vm251, %v1106, -inf
  %1162 = vmax.xlane.f32.xlu0 %v1161
  %v1163 = vpop.xlane.xlu0 %1162
  %v1164 = vsel %vm251, %v1156, -inf
  %1165 = vmax.xlane.f32.xlu0 %v1164
  %v1166 = vpop.xlane.xlu0 %1165
  %v1167 = vsub.f32 %v1106, %v1163
  %v1168 = vsub.f32 %v1156, %v1166
  %v1169 = vmul.f32 %v1167, 1.442695
  %v1170 = vpow.pop %v1169
  %v1171 = vmul.f32 %v1168, 1.442695
  %v1172 = vpow.pop %v1171
  %v1173 = vsel %vm251, %v1170, 0.0
  %1174 = vadd.xlane.f32.xlu0 %v1173
  %v1175 = vpop.xlane.xlu0 %1174
  %v1176 = vsel %vm251, %v1172, 0.0
  %1177 = vadd.xlane.f32.xlu0 %v1176
  %v1178 = vpop.xlane.xlu0 %1177
  %v1179 = vpack.c.bf16 %v1170, %v1170
  %v1180 = vpack.c.bf16 %v1172, %v1172
  %1181 = vrot.lane.b32.xlu0 %v249, 72
  %v1182 = vpop.permute.xlu0 %1181
  %v1184 = vsel %vm251, %v1179, 0
  %v1187 = vsel %vm370, %v1182, 0
  %1189 = vmatprep.subr.bf16.mxu0 0
  %1190 = vmatpush1.bf16.msra.mxu0 0
  %1191 = vmatprep.subr.bf16.mxu0 0
  %1192 = vmatpush1.bf16.msra.mxu0 0
  %1193 = vmatprep.subr.bf16.mxu0 0
  %1194 = vmatpush1.bf16.msra.mxu0 0
  %1195 = vmatprep.subr.bf16.mxu0 0
  %1196 = vmatpush1.bf16.msra.mxu0 0
  %1197 = vmatprep.subr.bf16.mxu0 0
  %1198 = vmatpush1.bf16.msra.mxu0 0
  %1199 = vmatprep.subr.bf16.mxu0 0
  %1200 = vmatpush1.bf16.msra.mxu0 0
  %1201 = vmatprep.subr.bf16.mxu0 0
  %1202 = vmatpush1.bf16.msra.mxu0 0
  %1203 = vmatprep.subr.bf16.mxu0 0
  %1204 = vmatpush1.bf16.msra.mxu0 %v1187
  %1205 = vmatprep.subr.bf16.mxu0 0
  %1206 = vmatpush2.bf16.msra.mxu0 0
  %1207 = vmatprep.subr.bf16.mxu0 0
  %1208 = vmatpush2.bf16.msra.mxu0 0
  %1209 = vmatprep.subr.bf16.mxu0 0
  %1210 = vmatpush2.bf16.msra.mxu0 0
  %1211 = vmatprep.subr.bf16.mxu0 0
  %1212 = vmatpush2.bf16.msra.mxu0 0
  %1213 = vmatprep.subr.bf16.mxu0 0
  %1214 = vmatpush2.bf16.msra.mxu0 0
  %1215 = vmatprep.subr.bf16.mxu0 0
  %1216 = vmatpush2.bf16.msra.mxu0 0
  %1217 = vmatprep.subr.bf16.mxu0 0
  %1218 = vmatpush2.bf16.msra.mxu0 0
  %1219 = vmatprep.subr.bf16.mxu0 0
  %1220 = vmatpush2.bf16.msra.mxu0 0
  %1221 = vmatprep.mubr.bf16.mxu0 0
  %1222 = vmatmul.mubr.bf16.gmra.mxu0 %v1184
  %v1223 = vpop.f32.mrf.mxu0
  %v1224 = vadd.f32 0.0, %v1223
  %v1225 = vpop.f32.mrf.mxu0
  %v1226 = vpop.f32.mrf.mxu0
  %v1227 = vpop.f32.mrf.mxu0
  %1228 = vdwg.mxu0
  %1229 = vrot.lane.b32.xlu0 %v250, 72
  %v1230 = vpop.permute.xlu0 %1229
  %v1232 = vsel %vm251, %v1180, 0
  %v1235 = vsel %vm370, %v1230, 0
  %1237 = vmatprep.subr.bf16.mxu0 0
  %1238 = vmatpush1.bf16.msra.mxu0 0
  %1239 = vmatprep.subr.bf16.mxu0 0
  %1240 = vmatpush1.bf16.msra.mxu0 0
  %1241 = vmatprep.subr.bf16.mxu0 0
  %1242 = vmatpush1.bf16.msra.mxu0 0
  %1243 = vmatprep.subr.bf16.mxu0 0
  %1244 = vmatpush1.bf16.msra.mxu0 0
  %1245 = vmatprep.subr.bf16.mxu0 0
  %1246 = vmatpush1.bf16.msra.mxu0 0
  %1247 = vmatprep.subr.bf16.mxu0 0
  %1248 = vmatpush1.bf16.msra.mxu0 0
  %1249 = vmatprep.subr.bf16.mxu0 0
  %1250 = vmatpush1.bf16.msra.mxu0 0
  %1251 = vmatprep.subr.bf16.mxu0 0
  %1252 = vmatpush1.bf16.msra.mxu0 %v1235
  %1253 = vmatprep.subr.bf16.mxu0 0
  %1254 = vmatpush2.bf16.msra.mxu0 0
  %1255 = vmatprep.subr.bf16.mxu0 0
  %1256 = vmatpush2.bf16.msra.mxu0 0
  %1257 = vmatprep.subr.bf16.mxu0 0
  %1258 = vmatpush2.bf16.msra.mxu0 0
  %1259 = vmatprep.subr.bf16.mxu0 0
  %1260 = vmatpush2.bf16.msra.mxu0 0
  %1261 = vmatprep.subr.bf16.mxu0 0
  %1262 = vmatpush2.bf16.msra.mxu0 0
  %1263 = vmatprep.subr.bf16.mxu0 0
  %1264 = vmatpush2.bf16.msra.mxu0 0
  %1265 = vmatprep.subr.bf16.mxu0 0
  %1266 = vmatpush2.bf16.msra.mxu0 0
  %1267 = vmatprep.subr.bf16.mxu0 0
  %1268 = vmatpush2.bf16.msra.mxu0 0
  %1269 = vmatprep.mubr.bf16.mxu0 0
  %1270 = vmatmul.mubr.bf16.gmra.mxu0 %v1232
  %v1271 = vpop.f32.mrf.mxu0
  %v1272 = vadd.f32 0.0, %v1271
  %v1273 = vpop.f32.mrf.mxu0
  %v1274 = vpop.f32.mrf.mxu0
  %v1275 = vpop.f32.mrf.mxu0
  %1276 = vdwg.mxu0
  %v1277 = vrcp.pop %v1175
  %v1278 = vrcp.pop %v1178
  %v1279 = vmul.f32 %v1224, %v1277
  %v1280 = vmul.f32 %v1272, %v1278
  %v1281 = vld [vmem:[%s9 + $0x18] sm:$0xff]
  %v1282 = vpack.c.bf16 %v1280, %v1279
  %v1283 = vpack.c.bf16 %v1281, %v1281
  %v1285 = vsel %vm251, %v1282, 0
  %v1288 = vsel %vm370, %v1283, 0
  %1290 = vmatprep.subr.bf16.mxu0 0
  %1291 = vmatpush1.bf16.msra.mxu0 0
  %1292 = vmatprep.subr.bf16.mxu0 0
  %1293 = vmatpush1.bf16.msra.mxu0 0
  %1294 = vmatprep.subr.bf16.mxu0 0
  %1295 = vmatpush1.bf16.msra.mxu0 0
  %1296 = vmatprep.subr.bf16.mxu0 0
  %1297 = vmatpush1.bf16.msra.mxu0 0
  %1298 = vmatprep.subr.bf16.mxu0 0
  %1299 = vmatpush1.bf16.msra.mxu0 0
  %1300 = vmatprep.subr.bf16.mxu0 0
  %1301 = vmatpush1.bf16.msra.mxu0 0
  %1302 = vmatprep.subr.bf16.mxu0 0
  %1303 = vmatpush1.bf16.msra.mxu0 0
  %1304 = vmatprep.subr.bf16.mxu0 0
  %1305 = vmatpush1.bf16.msra.mxu0 %v1288
  %1306 = vmatprep.subr.bf16.mxu0 0
  %1307 = vmatpush2.bf16.msra.mxu0 0
  %1308 = vmatprep.subr.bf16.mxu0 0
  %1309 = vmatpush2.bf16.msra.mxu0 0
  %1310 = vmatprep.subr.bf16.mxu0 0
  %1311 = vmatpush2.bf16.msra.mxu0 0
  %1312 = vmatprep.subr.bf16.mxu0 0
  %1313 = vmatpush2.bf16.msra.mxu0 0
  %1314 = vmatprep.subr.bf16.mxu0 0
  %1315 = vmatpush2.bf16.msra.mxu0 0
  %1316 = vmatprep.subr.bf16.mxu0 0
  %1317 = vmatpush2.bf16.msra.mxu0 0
  %1318 = vmatprep.subr.bf16.mxu0 0
  %1319 = vmatpush2.bf16.msra.mxu0 0
  %1320 = vmatprep.subr.bf16.mxu0 0
  %1321 = vmatpush2.bf16.msra.mxu0 0
  %1322 = vmatprep.mubr.bf16.mxu0 0
  %1323 = vmatmul.mubr.bf16.gmra.mxu0 %v1285
  %v1324 = vpop.f32.mrf.mxu0
  %v1325 = vadd.f32 0.0, %v1324
  %v1326 = vpop.f32.mrf.mxu0
  %v1327 = vpop.f32.mrf.mxu0
  %v1328 = vadd.f32 0.0, %v1327
  %v1329 = vpop.f32.mrf.mxu0
  %1330 = vdwg.mxu0
  %v1331 = vadd.f32 %v1059, %v1325
  %v1332 = vadd.f32 %v1060, %v1328
  %v1333 = vld [vmem:[%s10] sm:$0x1]
  %v1335 = vlaneseq
  %v1336 = vshrl.u32 %v1335, 7
  %v1337 = vsub.s32 0, %v1336
  %v1338 = vrot.slane %v1333, %v1337
  %v1340 = vadd.f32 %v1331, %v1338
  %v1341 = vadd.f32 %v1332, %v1338
  %v1342 = vadd.f32 %v39, %v1340
  %v1343 = vadd.f32 %v40, %v1341
  %1344 = vst.msk [vmem:[%s11] sm:$0xff] %vm43, %v1342
  %1345 = vst.msk [vmem:[%s11 + $0x8] sm:$0xff] %vm43, %v1343
  // Predicated region
  $region46: #{encoder_decoder_forward.15} parent=0 // pred_check
    _
  $region47: #{encoder_decoder_forward.15} parent=0 // pred_check_branch
    %1347 = sbr.rel (0) target = $region49
  $region48: #{encoder_decoder_forward.15} parent=0 // pred_region
    _
  $region49: #{encoder_decoder_forward.15} parent=0 // pred_fallthru
    _
  // Predicated region
  $region50: #{encoder_decoder_forward.15} parent=0 // pred_check
    _
  $region51: #{encoder_decoder_forward.15} parent=0 // pred_check_branch
    %1349 = sbr.rel (0) target = $region53
  $region52: #{encoder_decoder_forward.15} parent=0 // pred_region
    _
  $region53: #{encoder_decoder_forward.15} parent=0 // pred_fallthru
    _

// kernel: encoder_decoder_forward.11
$region0: #{encoder_decoder_forward.11}
  #allocation0 [shape = 'u32[]', space=smem, size = 0x4, offset = 0x4, fixed_abs, tag = 'smem constant byte address 0x4 - core index']
  #allocation1 [shape = 'u32[144,128]{1,0:T(1,128)}', space=vmem, size = 0x12000, scoped, tag = 'internal scratch']
  %s0 = inlined_call_operand.vmem [shape: f32[2,8,32], index: 0, kind: input, shape index: {}, may-alias: {0,1}]
  %s1 = inlined_call_operand.vmem [shape: f32[2,8,32], index: 1, kind: input, shape index: {}, may-alias: {0,1}]
  %s2 = inlined_call_operand.vmem [shape: f32[2,8], index: 2, kind: input, shape index: {}]
  %s3 = inlined_call_operand.vmem [shape: f32[1,32], index: 3, kind: input, shape index: {}]
  %s4 = inlined_call_operand.vmem [shape: f32[1,32], index: 4, kind: input, shape index: {}]
  %s5 = inlined_call_operand.vmem [shape: f32[32,32], index: 5, kind: input, shape index: {}]
  %s6 = inlined_call_operand.vmem [shape: f32[1,32], index: 6, kind: input, shape index: {}]
  %s7 = inlined_call_operand.vmem [shape: f32[32,64], index: 7, kind: input, shape index: {}]
  %s8 = inlined_call_operand.vmem [shape: f32[1,64], index: 8, kind: input, shape index: {}]
  %s9 = inlined_call_operand.vmem [shape: f32[32,32], index: 9, kind: input, shape index: {}]
  %s10 = inlined_call_operand.vmem [shape: f32[1,32], index: 10, kind: input, shape index: {}]
  %s11 = inlined_call_operand.vmem [shape: f32[2,8,32], index: 11, kind: output, shape index: {}]
  %s12 = sld [smem:[#allocation0]]
  $region54: #{encoder_decoder_forward.11} parent=0
    _
  %s14 = ssub.s32 1, %s12
  %s15 = scalar_select 0, %s14, %s12
  // Predicated region
  $region2: #{encoder_decoder_forward.11} parent=0 // pred_check
    _
  $region3: #{encoder_decoder_forward.11} parent=0 // pred_check_branch
    %17 = sbr.rel (0) target = $region5
  $region4: #{encoder_decoder_forward.11} parent=0 // pred_region
    _
  $region5: #{encoder_decoder_forward.11} parent=0 // pred_fallthru
    _
  // Predicated region
  $region6: #{encoder_decoder_forward.11} parent=0 // pred_check
    _
  $region7: #{encoder_decoder_forward.11} parent=0 // pred_check_branch
    %19 = sbr.rel (0) target = $region9
  $region8: #{encoder_decoder_forward.11} parent=0 // pred_region
    _
  $region9: #{encoder_decoder_forward.11} parent=0 // pred_fallthru
    _
  // Predicated region
  $region10: #{encoder_decoder_forward.11} parent=0 // pred_check
    _
  $region11: #{encoder_decoder_forward.11} parent=0 // pred_check_branch
    %21 = sbr.rel (0) target = $region13
  $region12: #{encoder_decoder_forward.11} parent=0 // pred_region
    _
  $region13: #{encoder_decoder_forward.11} parent=0 // pred_fallthru
    _
  // Predicated region
  $region14: #{encoder_decoder_forward.11} parent=0 // pred_check
    _
  $region15: #{encoder_decoder_forward.11} parent=0 // pred_check_branch
    %23 = sbr.rel (0) target = $region17
  $region16: #{encoder_decoder_forward.11} parent=0 // pred_region
    _
  $region17: #{encoder_decoder_forward.11} parent=0 // pred_fallthru
    _
  // Predicated region
  $region18: #{encoder_decoder_forward.11} parent=0 // pred_check
    _
  $region19: #{encoder_decoder_forward.11} parent=0 // pred_check_branch
    %25 = sbr.rel (0) target = $region21
  $region20: #{encoder_decoder_forward.11} parent=0 // pred_region
    _
  $region21: #{encoder_decoder_forward.11} parent=0 // pred_fallthru
    _
  // Predicated region
  $region22: #{encoder_decoder_forward.11} parent=0 // pred_check
    _
  $region23: #{encoder_decoder_forward.11} parent=0 // pred_check_branch
    %27 = sbr.rel (0) target = $region25
  $region24: #{encoder_decoder_forward.11} parent=0 // pred_region
    _
  $region25: #{encoder_decoder_forward.11} parent=0 // pred_fallthru
    _
  // Predicated region
  $region26: #{encoder_decoder_forward.11} parent=0 // pred_check
    _
  $region27: #{encoder_decoder_forward.11} parent=0 // pred_check_branch
    %29 = sbr.rel (0) target = $region29
  $region28: #{encoder_decoder_forward.11} parent=0 // pred_region
    _
  $region29: #{encoder_decoder_forward.11} parent=0 // pred_fallthru
    _
  // Predicated region
  $region30: #{encoder_decoder_forward.11} parent=0 // pred_check
    _
  $region31: #{encoder_decoder_forward.11} parent=0 // pred_check_branch
    %31 = sbr.rel (0) target = $region33
  $region32: #{encoder_decoder_forward.11} parent=0 // pred_region
    _
  $region33: #{encoder_decoder_forward.11} parent=0 // pred_fallthru
    _
  // Predicated region
  $region34: #{encoder_decoder_forward.11} parent=0 // pred_check
    _
  $region35: #{encoder_decoder_forward.11} parent=0 // pred_check_branch
    %33 = sbr.rel (0) target = $region37
  $region36: #{encoder_decoder_forward.11} parent=0 // pred_region
    _
  $region37: #{encoder_decoder_forward.11} parent=0 // pred_fallthru
    _
  // Predicated region
  $region38: #{encoder_decoder_forward.11} parent=0 // pred_check
    _
  $region39: #{encoder_decoder_forward.11} parent=0 // pred_check_branch
    %35 = sbr.rel (0) target = $region41
  $region40: #{encoder_decoder_forward.11} parent=0 // pred_region
    _
  $region41: #{encoder_decoder_forward.11} parent=0 // pred_fallthru
    _
  // Predicated region
  $region42: #{encoder_decoder_forward.11} parent=0 // pred_check
    _
  $region43: #{encoder_decoder_forward.11} parent=0 // pred_check_branch
    %37 = sbr.rel (0) target = $region45
  $region44: #{encoder_decoder_forward.11} parent=0 // pred_region
    _
  $region45: #{encoder_decoder_forward.11} parent=0 // pred_fallthru
    _
  %v39 = vld [vmem:[%s0] sm:$0xff]
  %v40 = vld [vmem:[%s0 + $0x8] sm:$0xff]
  %v41 = vld [vmem:[%s3] sm:$0x1]
  %v42 = vld [vmem:[%s4] sm:$0x1]
  %vm43 = vcmask 261120
  %v44 = vsel %vm43, %v39, 0.0
  %45 = vadd.xlane.f32.xlu0 %v44
  %v46 = vpop.xlane.xlu0 %45
  %v47 = vsel %vm43, %v40, 0.0
  %48 = vadd.xlane.f32.xlu0 %v47
  %v49 = vpop.xlane.xlu0 %48
  %v50 = vrcp.pop 32.0
  %v51 = vmul.f32 %v46, %v50
  %v52 = vmul.f32 %v49, %v50
  %v53 = vsub.f32 %v39, %v51
  %v54 = vsub.f32 %v40, %v52
  %v55 = vmul.f32 %v53, %v53
  %v56 = vmul.f32 %v54, %v54
  %v57 = vsel %vm43, %v55, 0.0
  %58 = vadd.xlane.f32.xlu0 %v57
  %v59 = vpop.xlane.xlu0 %58
  %v60 = vsel %vm43, %v56, 0.0
  %61 = vadd.xlane.f32.xlu0 %v60
  %v62 = vpop.xlane.xlu0 %61
  %v63 = vmul.f32 %v59, %v50
  %v64 = vmul.f32 %v62, %v50
  %v65 = vadd.f32 %v63, 1e-05
  %v66 = vadd.f32 %v64, 1e-05
  %v67 = vrsqrt.pop %v65
  %v68 = vrsqrt.pop %v66
  %v69 = vmul.f32 %v53, %v67
  %v70 = vmul.f32 %v54, %v68
  %v72 = vlaneseq
  %v73 = vshrl.u32 %v72, 7
  %v74 = vsub.s32 0, %v73
  %v75 = vrot.slane %v41, %v74
  %v77 = vmul.f32 %v69, %v75
  %v78 = vmul.f32 %v70, %v75
  %v80 = vlaneseq
  %v81 = vshrl.u32 %v80, 7
  %v82 = vsub.s32 0, %v81
  %v83 = vrot.slane %v42, %v82
  %v85 = vadd.f32 %v77, %v83
  %v86 = vadd.f32 %v78, %v83
  %v87 = vld [vmem:[%s5] sm:$0xff]
  %v88 = vld [vmem:[%s5 + $0x8] sm:$0xff]
  %v89 = vld [vmem:[%s5 + $0x10] sm:$0xff]
  %v90 = vld [vmem:[%s5 + $0x18] sm:$0xff]
  %v91 = vpack.c.bf16 %v86, %v85
  %v92 = vpack.c.bf16 %v88, %v87
  %v93 = vpack.c.bf16 %v90, %v89
  %v94 = vld [vmem:[%s6] sm:$0x1]
  %v96 = vlaneseq
  %v97 = vshrl.u32 %v96, 7
  %v98 = vsub.s32 0, %v97
  %v99 = vrot.slane %v94, %v98
  %v102 = vsel %vm43, %v91, 0
  %104 = vmatprep.subr.bf16.mxu0 0
  %105 = vmatpush1.bf16.msra.mxu0 0
  %106 = vmatprep.subr.bf16.mxu0 0
  %107 = vmatpush1.bf16.msra.mxu0 0
  %108 = vmatprep.subr.bf16.mxu0 0
  %109 = vmatpush1.bf16.msra.mxu0 0
  %110 = vmatprep.subr.bf16.mxu0 0
  %111 = vmatpush1.bf16.msra.mxu0 0
  %112 = vmatprep.subr.bf16.mxu0 0
  %113 = vmatpush1.bf16.msra.mxu0 0
  %114 = vmatprep.subr.bf16.mxu0 0
  %115 = vmatpush1.bf16.msra.mxu0 0
  %116 = vmatprep.subr.bf16.mxu0 0
  %117 = vmatpush1.bf16.msra.mxu0 %v93
  %118 = vmatprep.subr.bf16.mxu0 0
  %119 = vmatpush1.bf16.msra.mxu0 %v92
  %120 = vmatprep.subr.bf16.mxu0 0
  %121 = vmatpush2.bf16.msra.mxu0 0
  %122 = vmatprep.subr.bf16.mxu0 0
  %123 = vmatpush2.bf16.msra.mxu0 0
  %124 = vmatprep.subr.bf16.mxu0 0
  %125 = vmatpush2.bf16.msra.mxu0 0
  %126 = vmatprep.subr.bf16.mxu0 0
  %127 = vmatpush2.bf16.msra.mxu0 0
  %128 = vmatprep.subr.bf16.mxu0 0
  %129 = vmatpush2.bf16.msra.mxu0 0
  %130 = vmatprep.subr.bf16.mxu0 0
  %131 = vmatpush2.bf16.msra.mxu0 0
  %132 = vmatprep.subr.bf16.mxu0 0
  %133 = vmatpush2.bf16.msra.mxu0 0
  %134 = vmatprep.subr.bf16.mxu0 0
  %135 = vmatpush2.bf16.msra.mxu0 0
  %136 = vmatprep.mubr.bf16.mxu0 0
  %137 = vmatmul.mubr.bf16.gmra.mxu0 %v102
  %v138 = vpop.f32.mrf.mxu0
  %v139 = vadd.f32 %v99, %v138
  %v140 = vpop.f32.mrf.mxu0
  %v141 = vpop.f32.mrf.mxu0
  %v142 = vadd.f32 %v99, %v141
  %v143 = vpop.f32.mrf.mxu0
  %144 = vdwg.mxu0
  %v145 = vld [vmem:[%s7] sm:$0xff]
  %v146 = vld [vmem:[%s7 + $0x8] sm:$0xff]
  %v147 = vld [vmem:[%s7 + $0x10] sm:$0xff]
  %v148 = vld [vmem:[%s7 + $0x18] sm:$0xff]
  %v149 = vpack.c.bf16 %v146, %v145
  %v150 = vpack.c.bf16 %v148, %v147
  %v151 = vld [vmem:[%s8] sm:$0x1]
  %v153 = vlaneseq
  %v154 = vshrl.u32 %v153, 7
  %v155 = vsub.s32 0, %v154
  %v156 = vrot.slane %v151, %v155
  %158 = vmatprep.subr.bf16.mxu0 0
  %159 = vmatpush1.bf16.msra.mxu0 0
  %160 = vmatprep.subr.bf16.mxu0 0
  %161 = vmatpush1.bf16.msra.mxu0 0
  %162 = vmatprep.subr.bf16.mxu0 0
  %163 = vmatpush1.bf16.msra.mxu0 0
  %164 = vmatprep.subr.bf16.mxu0 0
  %165 = vmatpush1.bf16.msra.mxu0 0
  %166 = vmatprep.subr.bf16.mxu0 0
  %167 = vmatpush1.bf16.msra.mxu0 0
  %168 = vmatprep.subr.bf16.mxu0 0
  %169 = vmatpush1.bf16.msra.mxu0 0
  %170 = vmatprep.subr.bf16.mxu0 0
  %171 = vmatpush1.bf16.msra.mxu0 %v150
  %172 = vmatprep.subr.bf16.mxu0 0
  %173 = vmatpush1.bf16.msra.mxu0 %v149
  %174 = vmatprep.subr.bf16.mxu0 0
  %175 = vmatpush2.bf16.msra.mxu0 0
  %176 = vmatprep.subr.bf16.mxu0 0
  %177 = vmatpush2.bf16.msra.mxu0 0
  %178 = vmatprep.subr.bf16.mxu0 0
  %179 = vmatpush2.bf16.msra.mxu0 0
  %180 = vmatprep.subr.bf16.mxu0 0
  %181 = vmatpush2.bf16.msra.mxu0 0
  %182 = vmatprep.subr.bf16.mxu0 0
  %183 = vmatpush2.bf16.msra.mxu0 0
  %184 = vmatprep.subr.bf16.mxu0 0
  %185 = vmatpush2.bf16.msra.mxu0 0
  %186 = vmatprep.subr.bf16.mxu0 0
  %187 = vmatpush2.bf16.msra.mxu0 0
  %188 = vmatprep.subr.bf16.mxu0 0
  %189 = vmatpush2.bf16.msra.mxu0 0
  %190 = vmatprep.mubr.bf16.mxu0 0
  %191 = vmatmul.mubr.bf16.gmra.mxu0 %v102
  %v192 = vpop.f32.mrf.mxu0
  %v193 = vadd.f32 %v156, %v192
  %v194 = vpop.f32.mrf.mxu0
  %v195 = vpop.f32.mrf.mxu0
  %v196 = vadd.f32 %v156, %v195
  %v197 = vpop.f32.mrf.mxu0
  %198 = vdwg.mxu0
  %v199 = vld [vmem:[%s2] sm:$0x3]
  %v202 = vunpack.c.l.s4 1966171168
  %v203 = vunpack.c.0.s8 %v202
  %v204 = vlaneseq
  %v205 = vshrl.u32 %v204, 7
  %v206 = vsub.s32 %v203, %v205
  %v207 = vrot.slane %v199, %v206
  %v208 = vcombine.high %v207, %v207
  %v210 = vunpack.c.l.s4 1966171168
  %v211 = vunpack.c.0.s8 %v210
  %v212 = vlaneseq
  %v213 = vshrl.u32 %v212, 7
  %v214 = vsub.s32 %v211, %v213
  %v215 = vrot.slane %v207, %v214
  %v217 = vunpack.c.l.s4 1966171168
  %v218 = vunpack.c.0.s8 %v217
  %v219 = vlaneseq
  %v220 = vshrl.u32 %v219, 7
  %v221 = vsub.s32 %v218, %v220
  %v222 = vrot.slane %v208, %v221
  %v225 = vmul.f32 %v215, -1e+30
  %v226 = vmul.f32 %v222, -1e+30
  %v229 = vlaneseq
  %v230 = vshrl.u32 %v229, 7
  %v231 = vsub.s32 0, %v230
  %v232 = vrot.slane %v225, %v231
  %v233 = vlaneseq
  %v234 = vshrl.u32 %v233, 7
  %v235 = vsub.s32 0, %v234
  %v236 = vrot.slane %v226, %v235
  %v239 = vpack.c.bf16 %v139, %v139
  %v240 = vpack.c.bf16 %v142, %v142
  %v241 = vpack.c.bf16 %v193, %v193
  %v242 = vpack.c.bf16 %v196, %v196
  %vm243 = vcmask 64512
  %v245 = vsel %vm243, %v239, 0
  %v248 = vsel %vm243, %v241, 0
  %250 = vmatprep.subr.bf16.mxu0 0
  %251 = vmatpush1.bf16.xpose.msra.mxu0 0
  %252 = vmatprep.subr.bf16.mxu0 0
  %253 = vmatpush1.bf16.xpose.msra.mxu0 0
  %254 = vmatprep.subr.bf16.mxu0 0
  %255 = vmatpush1.bf16.xpose.msra.mxu0 0
  %256 = vmatprep.subr.bf16.mxu0 0
  %257 = vmatpush1.bf16.xpose.msra.mxu0 0
  %258 = vmatprep.subr.bf16.mxu0 0
  %259 = vmatpush1.bf16.xpose.msra.mxu0 0
  %260 = vmatprep.subr.bf16.mxu0 0
  %261 = vmatpush1.bf16.xpose.msra.mxu0 0
  %262 = vmatprep.subr.bf16.mxu0 0
  %263 = vmatpush1.bf16.xpose.msra.mxu0 0
  %264 = vmatprep.subr.bf16.mxu0 0
  %265 = vmatpush1.bf16.xpose.msra.mxu0 %v248
  %266 = vmatprep.subr.bf16.mxu0 0
  %267 = vmatpush2.bf16.xpose.msra.mxu0 0
  %268 = vmatprep.subr.bf16.mxu0 0
  %269 = vmatpush2.bf16.xpose.msra.mxu0 0
  %270 = vmatprep.subr.bf16.mxu0 0
  %271 = vmatpush2.bf16.xpose.msra.mxu0 0
  %272 = vmatprep.subr.bf16.mxu0 0
  %273 = vmatpush2.bf16.xpose.msra.mxu0 0
  %274 = vmatprep.subr.bf16.mxu0 0
  %275 = vmatpush2.bf16.xpose.msra.mxu0 0
  %276 = vmatprep.subr.bf16.mxu0 0
  %277 = vmatpush2.bf16.xpose.msra.mxu0 0
  %278 = vmatprep.subr.bf16.mxu0 0
  %279 = vmatpush2.bf16.xpose.msra.mxu0 0
  %280 = vmatprep.subr.bf16.mxu0 0
  %281 = vmatpush2.bf16.xpose.msra.mxu0 0
  %282 = vmatprep.mubr.bf16.mxu0 0
  %283 = vmatmul.mubr.bf16.gmra.mxu0 %v245
  %v284 = vpop.f32.mrf.mxu0
  %v285 = vadd.f32 %v232, %v284
  %v286 = vpop.f32.mrf.mxu0
  %v287 = vpop.f32.mrf.mxu0
  %v288 = vpop.f32.mrf.mxu0
  %289 = vdwg.mxu0
  %v291 = vsel %vm243, %v240, 0
  %v294 = vsel %vm243, %v242, 0
  %296 = vmatprep.subr.bf16.mxu0 0
  %297 = vmatpush1.bf16.xpose.msra.mxu0 0
  %298 = vmatprep.subr.bf16.mxu0 0
  %299 = vmatpush1.bf16.xpose.msra.mxu0 0
  %300 = vmatprep.subr.bf16.mxu0 0
  %301 = vmatpush1.bf16.xpose.msra.mxu0 0
  %302 = vmatprep.subr.bf16.mxu0 0
  %303 = vmatpush1.bf16.xpose.msra.mxu0 0
  %304 = vmatprep.subr.bf16.mxu0 0
  %305 = vmatpush1.bf16.xpose.msra.mxu0 0
  %306 = vmatprep.subr.bf16.mxu0 0
  %307 = vmatpush1.bf16.xpose.msra.mxu0 0
  %308 = vmatprep.subr.bf16.mxu0 0
  %309 = vmatpush1.bf16.xpose.msra.mxu0 0
  %310 = vmatprep.subr.bf16.mxu0 0
  %311 = vmatpush1.bf16.xpose.msra.mxu0 %v294
  %312 = vmatprep.subr.bf16.mxu0 0
  %313 = vmatpush2.bf16.xpose.msra.mxu0 0
  %314 = vmatprep.subr.bf16.mxu0 0
  %315 = vmatpush2.bf16.xpose.msra.mxu0 0
  %316 = vmatprep.subr.bf16.mxu0 0
  %317 = vmatpush2.bf16.xpose.msra.mxu0 0
  %318 = vmatprep.subr.bf16.mxu0 0
  %319 = vmatpush2.bf16.xpose.msra.mxu0 0
  %320 = vmatprep.subr.bf16.mxu0 0
  %321 = vmatpush2.bf16.xpose.msra.mxu0 0
  %322 = vmatprep.subr.bf16.mxu0 0
  %323 = vmatpush2.bf16.xpose.msra.mxu0 0
  %324 = vmatprep.subr.bf16.mxu0 0
  %325 = vmatpush2.bf16.xpose.msra.mxu0 0
  %326 = vmatprep.subr.bf16.mxu0 0
  %327 = vmatpush2.bf16.xpose.msra.mxu0 0
  %328 = vmatprep.mubr.bf16.mxu0 0
  %329 = vmatmul.mubr.bf16.gmra.mxu0 %v291
  %v330 = vpop.f32.mrf.mxu0
  %v331 = vadd.f32 %v236, %v330
  %v332 = vpop.f32.mrf.mxu0
  %v333 = vpop.f32.mrf.mxu0
  %v334 = vpop.f32.mrf.mxu0
  %335 = vdwg.mxu0
  %v336 = vsel %vm243, %v285, -inf
  %337 = vmax.xlane.f32.xlu0 %v336
  %v338 = vpop.xlane.xlu0 %337
  %v339 = vsel %vm243, %v331, -inf
  %340 = vmax.xlane.f32.xlu0 %v339
  %v341 = vpop.xlane.xlu0 %340
  %v342 = vsub.f32 %v285, %v338
  %v343 = vsub.f32 %v331, %v341
  %v344 = vmul.f32 %v342, 1.442695
  %v345 = vpow.pop %v344
  %v346 = vmul.f32 %v343, 1.442695
  %v347 = vpow.pop %v346
  %v348 = vsel %vm243, %v345, 0.0
  %349 = vadd.xlane.f32.xlu0 %v348
  %v350 = vpop.xlane.xlu0 %349
  %v351 = vsel %vm243, %v347, 0.0
  %352 = vadd.xlane.f32.xlu0 %v351
  %v353 = vpop.xlane.xlu0 %352
  %v354 = vpack.c.bf16 %v345, %v345
  %v355 = vpack.c.bf16 %v347, %v347
  %357 = vrot.lane.b32.xlu0 %v241, 96
  %v358 = vpop.permute.xlu0 %357
  %v360 = vsel %vm243, %v354, 0
  %vm362 = vcmask 1043456
  %v364 = vsel %vm362, %v358, 0
  %366 = vmatprep.subr.bf16.mxu0 0
  %367 = vmatpush1.bf16.msra.mxu0 0
  %368 = vmatprep.subr.bf16.mxu0 0
  %369 = vmatpush1.bf16.msra.mxu0 0
  %370 = vmatprep.subr.bf16.mxu0 0
  %371 = vmatpush1.bf16.msra.mxu0 0
  %372 = vmatprep.subr.bf16.mxu0 0
  %373 = vmatpush1.bf16.msra.mxu0 0
  %374 = vmatprep.subr.bf16.mxu0 0
  %375 = vmatpush1.bf16.msra.mxu0 0
  %376 = vmatprep.subr.bf16.mxu0 0
  %377 = vmatpush1.bf16.msra.mxu0 0
  %378 = vmatprep.subr.bf16.mxu0 0
  %379 = vmatpush1.bf16.msra.mxu0 0
  %380 = vmatprep.subr.bf16.mxu0 0
  %381 = vmatpush1.bf16.msra.mxu0 %v364
  %382 = vmatprep.subr.bf16.mxu0 0
  %383 = vmatpush2.bf16.msra.mxu0 0
  %384 = vmatprep.subr.bf16.mxu0 0
  %385 = vmatpush2.bf16.msra.mxu0 0
  %386 = vmatprep.subr.bf16.mxu0 0
  %387 = vmatpush2.bf16.msra.mxu0 0
  %388 = vmatprep.subr.bf16.mxu0 0
  %389 = vmatpush2.bf16.msra.mxu0 0
  %390 = vmatprep.subr.bf16.mxu0 0
  %391 = vmatpush2.bf16.msra.mxu0 0
  %392 = vmatprep.subr.bf16.mxu0 0
  %393 = vmatpush2.bf16.msra.mxu0 0
  %394 = vmatprep.subr.bf16.mxu0 0
  %395 = vmatpush2.bf16.msra.mxu0 0
  %396 = vmatprep.subr.bf16.mxu0 0
  %397 = vmatpush2.bf16.msra.mxu0 0
  %398 = vmatprep.mubr.bf16.mxu0 0
  %399 = vmatmul.mubr.bf16.gmra.mxu0 %v360
  %v400 = vpop.f32.mrf.mxu0
  %v401 = vadd.f32 0.0, %v400
  %v402 = vpop.f32.mrf.mxu0
  %v403 = vpop.f32.mrf.mxu0
  %v404 = vpop.f32.mrf.mxu0
  %405 = vdwg.mxu0
  %407 = vrot.lane.b32.xlu0 %v242, 96
  %v408 = vpop.permute.xlu0 %407
  %v410 = vsel %vm243, %v355, 0
  %v413 = vsel %vm362, %v408, 0
  %415 = vmatprep.subr.bf16.mxu0 0
  %416 = vmatpush1.bf16.msra.mxu0 0
  %417 = vmatprep.subr.bf16.mxu0 0
  %418 = vmatpush1.bf16.msra.mxu0 0
  %419 = vmatprep.subr.bf16.mxu0 0
  %420 = vmatpush1.bf16.msra.mxu0 0
  %421 = vmatprep.subr.bf16.mxu0 0
  %422 = vmatpush1.bf16.msra.mxu0 0
  %423 = vmatprep.subr.bf16.mxu0 0
  %424 = vmatpush1.bf16.msra.mxu0 0
  %425 = vmatprep.subr.bf16.mxu0 0
  %426 = vmatpush1.bf16.msra.mxu0 0
  %427 = vmatprep.subr.bf16.mxu0 0
  %428 = vmatpush1.bf16.msra.mxu0 0
  %429 = vmatprep.subr.bf16.mxu0 0
  %430 = vmatpush1.bf16.msra.mxu0 %v413
  %431 = vmatprep.subr.bf16.mxu0 0
  %432 = vmatpush2.bf16.msra.mxu0 0
  %433 = vmatprep.subr.bf16.mxu0 0
  %434 = vmatpush2.bf16.msra.mxu0 0
  %435 = vmatprep.subr.bf16.mxu0 0
  %436 = vmatpush2.bf16.msra.mxu0 0
  %437 = vmatprep.subr.bf16.mxu0 0
  %438 = vmatpush2.bf16.msra.mxu0 0
  %439 = vmatprep.subr.bf16.mxu0 0
  %440 = vmatpush2.bf16.msra.mxu0 0
  %441 = vmatprep.subr.bf16.mxu0 0
  %442 = vmatpush2.bf16.msra.mxu0 0
  %443 = vmatprep.subr.bf16.mxu0 0
  %444 = vmatpush2.bf16.msra.mxu0 0
  %445 = vmatprep.subr.bf16.mxu0 0
  %446 = vmatpush2.bf16.msra.mxu0 0
  %447 = vmatprep.mubr.bf16.mxu0 0
  %448 = vmatmul.mubr.bf16.gmra.mxu0 %v410
  %v449 = vpop.f32.mrf.mxu0
  %v450 = vadd.f32 0.0, %v449
  %v451 = vpop.f32.mrf.mxu0
  %v452 = vpop.f32.mrf.mxu0
  %v453 = vpop.f32.mrf.mxu0
  %454 = vdwg.mxu0
  %v455 = vrcp.pop %v350
  %v456 = vrcp.pop %v353
  %v457 = vmul.f32 %v401, %v455
  %v458 = vmul.f32 %v450, %v456
  %v459 = vld [vmem:[%s9] sm:$0xff]
  %v460 = vpack.c.bf16 %v458, %v457
  %v461 = vpack.c.bf16 %v459, %v459
  %463 = vrot.lane.b32.xlu0 %v239, 120
  %v464 = vpop.permute.xlu0 %463
  %465 = vrot.lane.b32.xlu0 %v241, 120
  %v466 = vpop.permute.xlu0 %465
  %v468 = vsel %vm243, %v464, 0
  %v471 = vsel %vm243, %v466, 0
  %473 = vmatprep.subr.bf16.mxu0 0
  %474 = vmatpush1.bf16.xpose.msra.mxu0 0
  %475 = vmatprep.subr.bf16.mxu0 0
  %476 = vmatpush1.bf16.xpose.msra.mxu0 0
  %477 = vmatprep.subr.bf16.mxu0 0
  %478 = vmatpush1.bf16.xpose.msra.mxu0 0
  %479 = vmatprep.subr.bf16.mxu0 0
  %480 = vmatpush1.bf16.xpose.msra.mxu0 0
  %481 = vmatprep.subr.bf16.mxu0 0
  %482 = vmatpush1.bf16.xpose.msra.mxu0 0
  %483 = vmatprep.subr.bf16.mxu0 0
  %484 = vmatpush1.bf16.xpose.msra.mxu0 0
  %485 = vmatprep.subr.bf16.mxu0 0
  %486 = vmatpush1.bf16.xpose.msra.mxu0 0
  %487 = vmatprep.subr.bf16.mxu0 0
  %488 = vmatpush1.bf16.xpose.msra.mxu0 %v471
  %489 = vmatprep.subr.bf16.mxu0 0
  %490 = vmatpush2.bf16.xpose.msra.mxu0 0
  %491 = vmatprep.subr.bf16.mxu0 0
  %492 = vmatpush2.bf16.xpose.msra.mxu0 0
  %493 = vmatprep.subr.bf16.mxu0 0
  %494 = vmatpush2.bf16.xpose.msra.mxu0 0
  %495 = vmatprep.subr.bf16.mxu0 0
  %496 = vmatpush2.bf16.xpose.msra.mxu0 0
  %497 = vmatprep.subr.bf16.mxu0 0
  %498 = vmatpush2.bf16.xpose.msra.mxu0 0
  %499 = vmatprep.subr.bf16.mxu0 0
  %500 = vmatpush2.bf16.xpose.msra.mxu0 0
  %501 = vmatprep.subr.bf16.mxu0 0
  %502 = vmatpush2.bf16.xpose.msra.mxu0 0
  %503 = vmatprep.subr.bf16.mxu0 0
  %504 = vmatpush2.bf16.xpose.msra.mxu0 0
  %505 = vmatprep.mubr.bf16.mxu0 0
  %506 = vmatmul.mubr.bf16.gmra.mxu0 %v468
  %v507 = vpop.f32.mrf.mxu0
  %v508 = vadd.f32 %v232, %v507
  %v509 = vpop.f32.mrf.mxu0
  %v510 = vpop.f32.mrf.mxu0
  %v511 = vpop.f32.mrf.mxu0
  %512 = vdwg.mxu0
  %514 = vrot.lane.b32.xlu0 %v240, 120
  %v515 = vpop.permute.xlu0 %514
  %516 = vrot.lane.b32.xlu0 %v242, 120
  %v517 = vpop.permute.xlu0 %516
  %v519 = vsel %vm243, %v515, 0
  %v522 = vsel %vm243, %v517, 0
  %524 = vmatprep.subr.bf16.mxu0 0
  %525 = vmatpush1.bf16.xpose.msra.mxu0 0
  %526 = vmatprep.subr.bf16.mxu0 0
  %527 = vmatpush1.bf16.xpose.msra.mxu0 0
  %528 = vmatprep.subr.bf16.mxu0 0
  %529 = vmatpush1.bf16.xpose.msra.mxu0 0
  %530 = vmatprep.subr.bf16.mxu0 0
  %531 = vmatpush1.bf16.xpose.msra.mxu0 0
  %532 = vmatprep.subr.bf16.mxu0 0
  %533 = vmatpush1.bf16.xpose.msra.mxu0 0
  %534 = vmatprep.subr.bf16.mxu0 0
  %535 = vmatpush1.bf16.xpose.msra.mxu0 0
  %536 = vmatprep.subr.bf16.mxu0 0
  %537 = vmatpush1.bf16.xpose.msra.mxu0 0
  %538 = vmatprep.subr.bf16.mxu0 0
  %539 = vmatpush1.bf16.xpose.msra.mxu0 %v522
  %540 = vmatprep.subr.bf16.mxu0 0
  %541 = vmatpush2.bf16.xpose.msra.mxu0 0
  %542 = vmatprep.subr.bf16.mxu0 0
  %543 = vmatpush2.bf16.xpose.msra.mxu0 0
  %544 = vmatprep.subr.bf16.mxu0 0
  %545 = vmatpush2.bf16.xpose.msra.mxu0 0
  %546 = vmatprep.subr.bf16.mxu0 0
  %547 = vmatpush2.bf16.xpose.msra.mxu0 0
  %548 = vmatprep.subr.bf16.mxu0 0
  %549 = vmatpush2.bf16.xpose.msra.mxu0 0
  %550 = vmatprep.subr.bf16.mxu0 0
  %551 = vmatpush2.bf16.xpose.msra.mxu0 0
  %552 = vmatprep.subr.bf16.mxu0 0
  %553 = vmatpush2.bf16.xpose.msra.mxu0 0
  %554 = vmatprep.subr.bf16.mxu0 0
  %555 = vmatpush2.bf16.xpose.msra.mxu0 0
  %556 = vmatprep.mubr.bf16.mxu0 0
  %557 = vmatmul.mubr.bf16.gmra.mxu0 %v519
  %v558 = vpop.f32.mrf.mxu0
  %v559 = vadd.f32 %v236, %v558
  %v560 = vpop.f32.mrf.mxu0
  %v561 = vpop.f32.mrf.mxu0
  %v562 = vpop.f32.mrf.mxu0
  %563 = vdwg.mxu0
  %v564 = vsel %vm243, %v508, -inf
  %565 = vmax.xlane.f32.xlu0 %v564
  %v566 = vpop.xlane.xlu0 %565
  %v567 = vsel %vm243, %v559, -inf
  %568 = vmax.xlane.f32.xlu0 %v567
  %v569 = vpop.xlane.xlu0 %568
  %v570 = vsub.f32 %v508, %v566
  %v571 = vsub.f32 %v559, %v569
  %v572 = vmul.f32 %v570, 1.442695
  %v573 = vpow.pop %v572
  %v574 = vmul.f32 %v571, 1.442695
  %v575 = vpow.pop %v574
  %v576 = vsel %vm243, %v573, 0.0
  %577 = vadd.xlane.f32.xlu0 %v576
  %v578 = vpop.xlane.xlu0 %577
  %v579 = vsel %vm243, %v575, 0.0
  %580 = vadd.xlane.f32.xlu0 %v579
  %v581 = vpop.xlane.xlu0 %580
  %v582 = vpack.c.bf16 %v573, %v573
  %v583 = vpack.c.bf16 %v575, %v575
  %584 = vrot.lane.b32.xlu0 %v241, 88
  %v585 = vpop.permute.xlu0 %584
  %v587 = vsel %vm243, %v582, 0
  %v590 = vsel %vm362, %v585, 0
  %592 = vmatprep.subr.bf16.mxu0 0
  %593 = vmatpush1.bf16.msra.mxu0 0
  %594 = vmatprep.subr.bf16.mxu0 0
  %595 = vmatpush1.bf16.msra.mxu0 0
  %596 = vmatprep.subr.bf16.mxu0 0
  %597 = vmatpush1.bf16.msra.mxu0 0
  %598 = vmatprep.subr.bf16.mxu0 0
  %599 = vmatpush1.bf16.msra.mxu0 0
  %600 = vmatprep.subr.bf16.mxu0 0
  %601 = vmatpush1.bf16.msra.mxu0 0
  %602 = vmatprep.subr.bf16.mxu0 0
  %603 = vmatpush1.bf16.msra.mxu0 0
  %604 = vmatprep.subr.bf16.mxu0 0
  %605 = vmatpush1.bf16.msra.mxu0 0
  %606 = vmatprep.subr.bf16.mxu0 0
  %607 = vmatpush1.bf16.msra.mxu0 %v590
  %608 = vmatprep.subr.bf16.mxu0 0
  %609 = vmatpush2.bf16.msra.mxu0 0
  %610 = vmatprep.subr.bf16.mxu0 0
  %611 = vmatpush2.bf16.msra.mxu0 0
  %612 = vmatprep.subr.bf16.mxu0 0
  %613 = vmatpush2.bf16.msra.mxu0 0
  %614 = vmatprep.subr.bf16.mxu0 0
  %615 = vmatpush2.bf16.msra.mxu0 0
  %616 = vmatprep.subr.bf16.mxu0 0
  %617 = vmatpush2.bf16.msra.mxu0 0
  %618 = vmatprep.subr.bf16.mxu0 0
  %619 = vmatpush2.bf16.msra.mxu0 0
  %620 = vmatprep.subr.bf16.mxu0 0
  %621 = vmatpush2.bf16.msra.mxu0 0
  %622 = vmatprep.subr.bf16.mxu0 0
  %623 = vmatpush2.bf16.msra.mxu0 0
  %624 = vmatprep.mubr.bf16.mxu0 0
  %625 = vmatmul.mubr.bf16.gmra.mxu0 %v587
  %v626 = vpop.f32.mrf.mxu0
  %v627 = vadd.f32 0.0, %v626
  %v628 = vpop.f32.mrf.mxu0
  %v629 = vpop.f32.mrf.mxu0
  %v630 = vpop.f32.mrf.mxu0
  %631 = vdwg.mxu0
  %632 = vrot.lane.b32.xlu0 %v242, 88
  %v633 = vpop.permute.xlu0 %632
  %v635 = vsel %vm243, %v583, 0
  %v638 = vsel %vm362, %v633, 0
  %640 = vmatprep.subr.bf16.mxu0 0
  %641 = vmatpush1.bf16.msra.mxu0 0
  %642 = vmatprep.subr.bf16.mxu0 0
  %643 = vmatpush1.bf16.msra.mxu0 0
  %644 = vmatprep.subr.bf16.mxu0 0
  %645 = vmatpush1.bf16.msra.mxu0 0
  %646 = vmatprep.subr.bf16.mxu0 0
  %647 = vmatpush1.bf16.msra.mxu0 0
  %648 = vmatprep.subr.bf16.mxu0 0
  %649 = vmatpush1.bf16.msra.mxu0 0
  %650 = vmatprep.subr.bf16.mxu0 0
  %651 = vmatpush1.bf16.msra.mxu0 0
  %652 = vmatprep.subr.bf16.mxu0 0
  %653 = vmatpush1.bf16.msra.mxu0 0
  %654 = vmatprep.subr.bf16.mxu0 0
  %655 = vmatpush1.bf16.msra.mxu0 %v638
  %656 = vmatprep.subr.bf16.mxu0 0
  %657 = vmatpush2.bf16.msra.mxu0 0
  %658 = vmatprep.subr.bf16.mxu0 0
  %659 = vmatpush2.bf16.msra.mxu0 0
  %660 = vmatprep.subr.bf16.mxu0 0
  %661 = vmatpush2.bf16.msra.mxu0 0
  %662 = vmatprep.subr.bf16.mxu0 0
  %663 = vmatpush2.bf16.msra.mxu0 0
  %664 = vmatprep.subr.bf16.mxu0 0
  %665 = vmatpush2.bf16.msra.mxu0 0
  %666 = vmatprep.subr.bf16.mxu0 0
  %667 = vmatpush2.bf16.msra.mxu0 0
  %668 = vmatprep.subr.bf16.mxu0 0
  %669 = vmatpush2.bf16.msra.mxu0 0
  %670 = vmatprep.subr.bf16.mxu0 0
  %671 = vmatpush2.bf16.msra.mxu0 0
  %672 = vmatprep.mubr.bf16.mxu0 0
  %673 = vmatmul.mubr.bf16.gmra.mxu0 %v635
  %v674 = vpop.f32.mrf.mxu0
  %v675 = vadd.f32 0.0, %v674
  %v676 = vpop.f32.mrf.mxu0
  %v677 = vpop.f32.mrf.mxu0
  %v678 = vpop.f32.mrf.mxu0
  %679 = vdwg.mxu0
  %v680 = vrcp.pop %v578
  %v681 = vrcp.pop %v581
  %v682 = vmul.f32 %v627, %v680
  %v683 = vmul.f32 %v675, %v681
  %v684 = vld [vmem:[%s9 + $0x8] sm:$0xff]
  %v685 = vpack.c.bf16 %v683, %v682
  %v686 = vpack.c.bf16 %v684, %v684
  %v688 = vsel %vm243, %v685, 0
  %v691 = vsel %vm362, %v686, 0
  %693 = vmatprep.subr.bf16.mxu0 0
  %694 = vmatpush1.bf16.msra.mxu0 0
  %695 = vmatprep.subr.bf16.mxu0 0
  %696 = vmatpush1.bf16.msra.mxu0 0
  %697 = vmatprep.subr.bf16.mxu0 0
  %698 = vmatpush1.bf16.msra.mxu0 0
  %699 = vmatprep.subr.bf16.mxu0 0
  %700 = vmatpush1.bf16.msra.mxu0 0
  %701 = vmatprep.subr.bf16.mxu0 0
  %702 = vmatpush1.bf16.msra.mxu0 0
  %703 = vmatprep.subr.bf16.mxu0 0
  %704 = vmatpush1.bf16.msra.mxu0 0
  %705 = vmatprep.subr.bf16.mxu0 0
  %706 = vmatpush1.bf16.msra.mxu0 0
  %707 = vmatprep.subr.bf16.mxu0 0
  %708 = vmatpush1.bf16.msra.mxu0 %v691
  %709 = vmatprep.subr.bf16.mxu0 0
  %710 = vmatpush2.bf16.msra.mxu0 0
  %711 = vmatprep.subr.bf16.mxu0 0
  %712 = vmatpush2.bf16.msra.mxu0 0
  %713 = vmatprep.subr.bf16.mxu0 0
  %714 = vmatpush2.bf16.msra.mxu0 0
  %715 = vmatprep.subr.bf16.mxu0 0
  %716 = vmatpush2.bf16.msra.mxu0 0
  %717 = vmatprep.subr.bf16.mxu0 0
  %718 = vmatpush2.bf16.msra.mxu0 0
  %719 = vmatprep.subr.bf16.mxu0 0
  %720 = vmatpush2.bf16.msra.mxu0 0
  %721 = vmatprep.subr.bf16.mxu0 0
  %722 = vmatpush2.bf16.msra.mxu0 0
  %723 = vmatprep.subr.bf16.mxu0 0
  %724 = vmatpush2.bf16.msra.mxu0 0
  %725 = vmatprep.mubr.bf16.mxu0 0
  %726 = vmatmul.mubr.bf16.gmra.mxu0 %v688
  %v727 = vpop.f32.mrf.mxu0
  %v728 = vadd.f32 0.0, %v727
  %v729 = vpop.f32.mrf.mxu0
  %v730 = vpop.f32.mrf.mxu0
  %v731 = vadd.f32 0.0, %v730
  %v732 = vpop.f32.mrf.mxu0
  %733 = vdwg.mxu0
  %v735 = vsel %vm243, %v460, 0
  %v738 = vsel %vm362, %v461, 0
  %740 = vmatprep.subr.bf16.mxu0 0
  %741 = vmatpush1.bf16.msra.mxu0 0
  %742 = vmatprep.subr.bf16.mxu0 0
  %743 = vmatpush1.bf16.msra.mxu0 0
  %744 = vmatprep.subr.bf16.mxu0 0
  %745 = vmatpush1.bf16.msra.mxu0 0
  %746 = vmatprep.subr.bf16.mxu0 0
  %747 = vmatpush1.bf16.msra.mxu0 0
  %748 = vmatprep.subr.bf16.mxu0 0
  %749 = vmatpush1.bf16.msra.mxu0 0
  %750 = vmatprep.subr.bf16.mxu0 0
  %751 = vmatpush1.bf16.msra.mxu0 0
  %752 = vmatprep.subr.bf16.mxu0 0
  %753 = vmatpush1.bf16.msra.mxu0 0
  %754 = vmatprep.subr.bf16.mxu0 0
  %755 = vmatpush1.bf16.msra.mxu0 %v738
  %756 = vmatprep.subr.bf16.mxu0 0
  %757 = vmatpush2.bf16.msra.mxu0 0
  %758 = vmatprep.subr.bf16.mxu0 0
  %759 = vmatpush2.bf16.msra.mxu0 0
  %760 = vmatprep.subr.bf16.mxu0 0
  %761 = vmatpush2.bf16.msra.mxu0 0
  %762 = vmatprep.subr.bf16.mxu0 0
  %763 = vmatpush2.bf16.msra.mxu0 0
  %764 = vmatprep.subr.bf16.mxu0 0
  %765 = vmatpush2.bf16.msra.mxu0 0
  %766 = vmatprep.subr.bf16.mxu0 0
  %767 = vmatpush2.bf16.msra.mxu0 0
  %768 = vmatprep.subr.bf16.mxu0 0
  %769 = vmatpush2.bf16.msra.mxu0 0
  %770 = vmatprep.subr.bf16.mxu0 0
  %771 = vmatpush2.bf16.msra.mxu0 0
  %772 = vmatprep.mubr.bf16.mxu0 0
  %773 = vmatmul.mubr.bf16.gmra.mxu0 %v735
  %v774 = vpop.f32.mrf.mxu0
  %v775 = vadd.f32 %v728, %v774
  %v776 = vpop.f32.mrf.mxu0
  %v777 = vpop.f32.mrf.mxu0
  %v778 = vadd.f32 %v731, %v777
  %v779 = vpop.f32.mrf.mxu0
  %780 = vdwg.mxu0
  %781 = vrot.lane.b32.xlu0 %v239, 112
  %v782 = vpop.permute.xlu0 %781
  %783 = vrot.lane.b32.xlu0 %v241, 112
  %v784 = vpop.permute.xlu0 %783
  %v786 = vsel %vm243, %v782, 0
  %v789 = vsel %vm243, %v784, 0
  %791 = vmatprep.subr.bf16.mxu0 0
  %792 = vmatpush1.bf16.xpose.msra.mxu0 0
  %793 = vmatprep.subr.bf16.mxu0 0
  %794 = vmatpush1.bf16.xpose.msra.mxu0 0
  %795 = vmatprep.subr.bf16.mxu0 0
  %796 = vmatpush1.bf16.xpose.msra.mxu0 0
  %797 = vmatprep.subr.bf16.mxu0 0
  %798 = vmatpush1.bf16.xpose.msra.mxu0 0
  %799 = vmatprep.subr.bf16.mxu0 0
  %800 = vmatpush1.bf16.xpose.msra.mxu0 0
  %801 = vmatprep.subr.bf16.mxu0 0
  %802 = vmatpush1.bf16.xpose.msra.mxu0 0
  %803 = vmatprep.subr.bf16.mxu0 0
  %804 = vmatpush1.bf16.xpose.msra.mxu0 0
  %805 = vmatprep.subr.bf16.mxu0 0
  %806 = vmatpush1.bf16.xpose.msra.mxu0 %v789
  %807 = vmatprep.subr.bf16.mxu0 0
  %808 = vmatpush2.bf16.xpose.msra.mxu0 0
  %809 = vmatprep.subr.bf16.mxu0 0
  %810 = vmatpush2.bf16.xpose.msra.mxu0 0
  %811 = vmatprep.subr.bf16.mxu0 0
  %812 = vmatpush2.bf16.xpose.msra.mxu0 0
  %813 = vmatprep.subr.bf16.mxu0 0
  %814 = vmatpush2.bf16.xpose.msra.mxu0 0
  %815 = vmatprep.subr.bf16.mxu0 0
  %816 = vmatpush2.bf16.xpose.msra.mxu0 0
  %817 = vmatprep.subr.bf16.mxu0 0
  %818 = vmatpush2.bf16.xpose.msra.mxu0 0
  %819 = vmatprep.subr.bf16.mxu0 0
  %820 = vmatpush2.bf16.xpose.msra.mxu0 0
  %821 = vmatprep.subr.bf16.mxu0 0
  %822 = vmatpush2.bf16.xpose.msra.mxu0 0
  %823 = vmatprep.mubr.bf16.mxu0 0
  %824 = vmatmul.mubr.bf16.gmra.mxu0 %v786
  %v825 = vpop.f32.mrf.mxu0
  %v826 = vadd.f32 %v232, %v825
  %v827 = vpop.f32.mrf.mxu0
  %v828 = vpop.f32.mrf.mxu0
  %v829 = vpop.f32.mrf.mxu0
  %830 = vdwg.mxu0
  %831 = vrot.lane.b32.xlu0 %v240, 112
  %v832 = vpop.permute.xlu0 %831
  %833 = vrot.lane.b32.xlu0 %v242, 112
  %v834 = vpop.permute.xlu0 %833
  %v836 = vsel %vm243, %v832, 0
  %v839 = vsel %vm243, %v834, 0
  %841 = vmatprep.subr.bf16.mxu0 0
  %842 = vmatpush1.bf16.xpose.msra.mxu0 0
  %843 = vmatprep.subr.bf16.mxu0 0
  %844 = vmatpush1.bf16.xpose.msra.mxu0 0
  %845 = vmatprep.subr.bf16.mxu0 0
  %846 = vmatpush1.bf16.xpose.msra.mxu0 0
  %847 = vmatprep.subr.bf16.mxu0 0
  %848 = vmatpush1.bf16.xpose.msra.mxu0 0
  %849 = vmatprep.subr.bf16.mxu0 0
  %850 = vmatpush1.bf16.xpose.msra.mxu0 0
  %851 = vmatprep.subr.bf16.mxu0 0
  %852 = vmatpush1.bf16.xpose.msra.mxu0 0
  %853 = vmatprep.subr.bf16.mxu0 0
  %854 = vmatpush1.bf16.xpose.msra.mxu0 0
  %855 = vmatprep.subr.bf16.mxu0 0
  %856 = vmatpush1.bf16.xpose.msra.mxu0 %v839
  %857 = vmatprep.subr.bf16.mxu0 0
  %858 = vmatpush2.bf16.xpose.msra.mxu0 0
  %859 = vmatprep.subr.bf16.mxu0 0
  %860 = vmatpush2.bf16.xpose.msra.mxu0 0
  %861 = vmatprep.subr.bf16.mxu0 0
  %862 = vmatpush2.bf16.xpose.msra.mxu0 0
  %863 = vmatprep.subr.bf16.mxu0 0
  %864 = vmatpush2.bf16.xpose.msra.mxu0 0
  %865 = vmatprep.subr.bf16.mxu0 0
  %866 = vmatpush2.bf16.xpose.msra.mxu0 0
  %867 = vmatprep.subr.bf16.mxu0 0
  %868 = vmatpush2.bf16.xpose.msra.mxu0 0
  %869 = vmatprep.subr.bf16.mxu0 0
  %870 = vmatpush2.bf16.xpose.msra.mxu0 0
  %871 = vmatprep.subr.bf16.mxu0 0
  %872 = vmatpush2.bf16.xpose.msra.mxu0 0
  %873 = vmatprep.mubr.bf16.mxu0 0
  %874 = vmatmul.mubr.bf16.gmra.mxu0 %v836
  %v875 = vpop.f32.mrf.mxu0
  %v876 = vadd.f32 %v236, %v875
  %v877 = vpop.f32.mrf.mxu0
  %v878 = vpop.f32.mrf.mxu0
  %v879 = vpop.f32.mrf.mxu0
  %880 = vdwg.mxu0
  %v881 = vsel %vm243, %v826, -inf
  %882 = vmax.xlane.f32.xlu0 %v881
  %v883 = vpop.xlane.xlu0 %882
  %v884 = vsel %vm243, %v876, -inf
  %885 = vmax.xlane.f32.xlu0 %v884
  %v886 = vpop.xlane.xlu0 %885
  %v887 = vsub.f32 %v826, %v883
  %v888 = vsub.f32 %v876, %v886
  %v889 = vmul.f32 %v887, 1.442695
  %v890 = vpow.pop %v889
  %v891 = vmul.f32 %v888, 1.442695
  %v892 = vpow.pop %v891
  %v893 = vsel %vm243, %v890, 0.0
  %894 = vadd.xlane.f32.xlu0 %v893
  %v895 = vpop.xlane.xlu0 %894
  %v896 = vsel %vm243, %v892, 0.0
  %897 = vadd.xlane.f32.xlu0 %v896
  %v898 = vpop.xlane.xlu0 %897
  %v899 = vpack.c.bf16 %v890, %v890
  %v900 = vpack.c.bf16 %v892, %v892
  %901 = vrot.lane.b32.xlu0 %v241, 80
  %v902 = vpop.permute.xlu0 %901
  %v904 = vsel %vm243, %v899, 0
  %v907 = vsel %vm362, %v902, 0
  %909 = vmatprep.subr.bf16.mxu0 0
  %910 = vmatpush1.bf16.msra.mxu0 0
  %911 = vmatprep.subr.bf16.mxu0 0
  %912 = vmatpush1.bf16.msra.mxu0 0
  %913 = vmatprep.subr.bf16.mxu0 0
  %914 = vmatpush1.bf16.msra.mxu0 0
  %915 = vmatprep.subr.bf16.mxu0 0
  %916 = vmatpush1.bf16.msra.mxu0 0
  %917 = vmatprep.subr.bf16.mxu0 0
  %918 = vmatpush1.bf16.msra.mxu0 0
  %919 = vmatprep.subr.bf16.mxu0 0
  %920 = vmatpush1.bf16.msra.mxu0 0
  %921 = vmatprep.subr.bf16.mxu0 0
  %922 = vmatpush1.bf16.msra.mxu0 0
  %923 = vmatprep.subr.bf16.mxu0 0
  %924 = vmatpush1.bf16.msra.mxu0 %v907
  %925 = vmatprep.subr.bf16.mxu0 0
  %926 = vmatpush2.bf16.msra.mxu0 0
  %927 = vmatprep.subr.bf16.mxu0 0
  %928 = vmatpush2.bf16.msra.mxu0 0
  %929 = vmatprep.subr.bf16.mxu0 0
  %930 = vmatpush2.bf16.msra.mxu0 0
  %931 = vmatprep.subr.bf16.mxu0 0
  %932 = vmatpush2.bf16.msra.mxu0 0
  %933 = vmatprep.subr.bf16.mxu0 0
  %934 = vmatpush2.bf16.msra.mxu0 0
  %935 = vmatprep.subr.bf16.mxu0 0
  %936 = vmatpush2.bf16.msra.mxu0 0
  %937 = vmatprep.subr.bf16.mxu0 0
  %938 = vmatpush2.bf16.msra.mxu0 0
  %939 = vmatprep.subr.bf16.mxu0 0
  %940 = vmatpush2.bf16.msra.mxu0 0
  %941 = vmatprep.mubr.bf16.mxu0 0
  %942 = vmatmul.mubr.bf16.gmra.mxu0 %v904
  %v943 = vpop.f32.mrf.mxu0
  %v944 = vadd.f32 0.0, %v943
  %v945 = vpop.f32.mrf.mxu0
  %v946 = vpop.f32.mrf.mxu0
  %v947 = vpop.f32.mrf.mxu0
  %948 = vdwg.mxu0
  %949 = vrot.lane.b32.xlu0 %v242, 80
  %v950 = vpop.permute.xlu0 %949
  %v952 = vsel %vm243, %v900, 0
  %v955 = vsel %vm362, %v950, 0
  %957 = vmatprep.subr.bf16.mxu0 0
  %958 = vmatpush1.bf16.msra.mxu0 0
  %959 = vmatprep.subr.bf16.mxu0 0
  %960 = vmatpush1.bf16.msra.mxu0 0
  %961 = vmatprep.subr.bf16.mxu0 0
  %962 = vmatpush1.bf16.msra.mxu0 0
  %963 = vmatprep.subr.bf16.mxu0 0
  %964 = vmatpush1.bf16.msra.mxu0 0
  %965 = vmatprep.subr.bf16.mxu0 0
  %966 = vmatpush1.bf16.msra.mxu0 0
  %967 = vmatprep.subr.bf16.mxu0 0
  %968 = vmatpush1.bf16.msra.mxu0 0
  %969 = vmatprep.subr.bf16.mxu0 0
  %970 = vmatpush1.bf16.msra.mxu0 0
  %971 = vmatprep.subr.bf16.mxu0 0
  %972 = vmatpush1.bf16.msra.mxu0 %v955
  %973 = vmatprep.subr.bf16.mxu0 0
  %974 = vmatpush2.bf16.msra.mxu0 0
  %975 = vmatprep.subr.bf16.mxu0 0
  %976 = vmatpush2.bf16.msra.mxu0 0
  %977 = vmatprep.subr.bf16.mxu0 0
  %978 = vmatpush2.bf16.msra.mxu0 0
  %979 = vmatprep.subr.bf16.mxu0 0
  %980 = vmatpush2.bf16.msra.mxu0 0
  %981 = vmatprep.subr.bf16.mxu0 0
  %982 = vmatpush2.bf16.msra.mxu0 0
  %983 = vmatprep.subr.bf16.mxu0 0
  %984 = vmatpush2.bf16.msra.mxu0 0
  %985 = vmatprep.subr.bf16.mxu0 0
  %986 = vmatpush2.bf16.msra.mxu0 0
  %987 = vmatprep.subr.bf16.mxu0 0
  %988 = vmatpush2.bf16.msra.mxu0 0
  %989 = vmatprep.mubr.bf16.mxu0 0
  %990 = vmatmul.mubr.bf16.gmra.mxu0 %v952
  %v991 = vpop.f32.mrf.mxu0
  %v992 = vadd.f32 0.0, %v991
  %v993 = vpop.f32.mrf.mxu0
  %v994 = vpop.f32.mrf.mxu0
  %v995 = vpop.f32.mrf.mxu0
  %996 = vdwg.mxu0
  %v997 = vrcp.pop %v895
  %v998 = vrcp.pop %v898
  %v999 = vmul.f32 %v944, %v997
  %v1000 = vmul.f32 %v992, %v998
  %v1001 = vld [vmem:[%s9 + $0x10] sm:$0xff]
  %v1002 = vpack.c.bf16 %v1000, %v999
  %v1003 = vpack.c.bf16 %v1001, %v1001
  %v1005 = vsel %vm243, %v1002, 0
  %v1008 = vsel %vm362, %v1003, 0
  %1010 = vmatprep.subr.bf16.mxu0 0
  %1011 = vmatpush1.bf16.msra.mxu0 0
  %1012 = vmatprep.subr.bf16.mxu0 0
  %1013 = vmatpush1.bf16.msra.mxu0 0
  %1014 = vmatprep.subr.bf16.mxu0 0
  %1015 = vmatpush1.bf16.msra.mxu0 0
  %1016 = vmatprep.subr.bf16.mxu0 0
  %1017 = vmatpush1.bf16.msra.mxu0 0
  %1018 = vmatprep.subr.bf16.mxu0 0
  %1019 = vmatpush1.bf16.msra.mxu0 0
  %1020 = vmatprep.subr.bf16.mxu0 0
  %1021 = vmatpush1.bf16.msra.mxu0 0
  %1022 = vmatprep.subr.bf16.mxu0 0
  %1023 = vmatpush1.bf16.msra.mxu0 0
  %1024 = vmatprep.subr.bf16.mxu0 0
  %1025 = vmatpush1.bf16.msra.mxu0 %v1008
  %1026 = vmatprep.subr.bf16.mxu0 0
  %1027 = vmatpush2.bf16.msra.mxu0 0
  %1028 = vmatprep.subr.bf16.mxu0 0
  %1029 = vmatpush2.bf16.msra.mxu0 0
  %1030 = vmatprep.subr.bf16.mxu0 0
  %1031 = vmatpush2.bf16.msra.mxu0 0
  %1032 = vmatprep.subr.bf16.mxu0 0
  %1033 = vmatpush2.bf16.msra.mxu0 0
  %1034 = vmatprep.subr.bf16.mxu0 0
  %1035 = vmatpush2.bf16.msra.mxu0 0
  %1036 = vmatprep.subr.bf16.mxu0 0
  %1037 = vmatpush2.bf16.msra.mxu0 0
  %1038 = vmatprep.subr.bf16.mxu0 0
  %1039 = vmatpush2.bf16.msra.mxu0 0
  %1040 = vmatprep.subr.bf16.mxu0 0
  %1041 = vmatpush2.bf16.msra.mxu0 0
  %1042 = vmatprep.mubr.bf16.mxu0 0
  %1043 = vmatmul.mubr.bf16.gmra.mxu0 %v1005
  %v1044 = vpop.f32.mrf.mxu0
  %v1045 = vadd.f32 0.0, %v1044
  %v1046 = vpop.f32.mrf.mxu0
  %v1047 = vpop.f32.mrf.mxu0
  %v1048 = vadd.f32 0.0, %v1047
  %v1049 = vpop.f32.mrf.mxu0
  %1050 = vdwg.mxu0
  %v1051 = vadd.f32 %v775, %v1045
  %v1052 = vadd.f32 %v778, %v1048
  %1053 = vrot.lane.b32.xlu0 %v239, 104
  %v1054 = vpop.permute.xlu0 %1053
  %1055 = vrot.lane.b32.xlu0 %v241, 104
  %v1056 = vpop.permute.xlu0 %1055
  %v1058 = vsel %vm243, %v1054, 0
  %v1061 = vsel %vm243, %v1056, 0
  %1063 = vmatprep.subr.bf16.mxu0 0
  %1064 = vmatpush1.bf16.xpose.msra.mxu0 0
  %1065 = vmatprep.subr.bf16.mxu0 0
  %1066 = vmatpush1.bf16.xpose.msra.mxu0 0
  %1067 = vmatprep.subr.bf16.mxu0 0
  %1068 = vmatpush1.bf16.xpose.msra.mxu0 0
  %1069 = vmatprep.subr.bf16.mxu0 0
  %1070 = vmatpush1.bf16.xpose.msra.mxu0 0
  %1071 = vmatprep.subr.bf16.mxu0 0
  %1072 = vmatpush1.bf16.xpose.msra.mxu0 0
  %1073 = vmatprep.subr.bf16.mxu0 0
  %1074 = vmatpush1.bf16.xpose.msra.mxu0 0
  %1075 = vmatprep.subr.bf16.mxu0 0
  %1076 = vmatpush1.bf16.xpose.msra.mxu0 0
  %1077 = vmatprep.subr.bf16.mxu0 0
  %1078 = vmatpush1.bf16.xpose.msra.mxu0 %v1061
  %1079 = vmatprep.subr.bf16.mxu0 0
  %1080 = vmatpush2.bf16.xpose.msra.mxu0 0
  %1081 = vmatprep.subr.bf16.mxu0 0
  %1082 = vmatpush2.bf16.xpose.msra.mxu0 0
  %1083 = vmatprep.subr.bf16.mxu0 0
  %1084 = vmatpush2.bf16.xpose.msra.mxu0 0
  %1085 = vmatprep.subr.bf16.mxu0 0
  %1086 = vmatpush2.bf16.xpose.msra.mxu0 0
  %1087 = vmatprep.subr.bf16.mxu0 0
  %1088 = vmatpush2.bf16.xpose.msra.mxu0 0
  %1089 = vmatprep.subr.bf16.mxu0 0
  %1090 = vmatpush2.bf16.xpose.msra.mxu0 0
  %1091 = vmatprep.subr.bf16.mxu0 0
  %1092 = vmatpush2.bf16.xpose.msra.mxu0 0
  %1093 = vmatprep.subr.bf16.mxu0 0
  %1094 = vmatpush2.bf16.xpose.msra.mxu0 0
  %1095 = vmatprep.mubr.bf16.mxu0 0
  %1096 = vmatmul.mubr.bf16.gmra.mxu0 %v1058
  %v1097 = vpop.f32.mrf.mxu0
  %v1098 = vadd.f32 %v232, %v1097
  %v1099 = vpop.f32.mrf.mxu0
  %v1100 = vpop.f32.mrf.mxu0
  %v1101 = vpop.f32.mrf.mxu0
  %1102 = vdwg.mxu0
  %1103 = vrot.lane.b32.xlu0 %v240, 104
  %v1104 = vpop.permute.xlu0 %1103
  %1105 = vrot.lane.b32.xlu0 %v242, 104
  %v1106 = vpop.permute.xlu0 %1105
  %v1108 = vsel %vm243, %v1104, 0
  %v1111 = vsel %vm243, %v1106, 0
  %1113 = vmatprep.subr.bf16.mxu0 0
  %1114 = vmatpush1.bf16.xpose.msra.mxu0 0
  %1115 = vmatprep.subr.bf16.mxu0 0
  %1116 = vmatpush1.bf16.xpose.msra.mxu0 0
  %1117 = vmatprep.subr.bf16.mxu0 0
  %1118 = vmatpush1.bf16.xpose.msra.mxu0 0
  %1119 = vmatprep.subr.bf16.mxu0 0
  %1120 = vmatpush1.bf16.xpose.msra.mxu0 0
  %1121 = vmatprep.subr.bf16.mxu0 0
  %1122 = vmatpush1.bf16.xpose.msra.mxu0 0
  %1123 = vmatprep.subr.bf16.mxu0 0
  %1124 = vmatpush1.bf16.xpose.msra.mxu0 0
  %1125 = vmatprep.subr.bf16.mxu0 0
  %1126 = vmatpush1.bf16.xpose.msra.mxu0 0
  %1127 = vmatprep.subr.bf16.mxu0 0
  %1128 = vmatpush1.bf16.xpose.msra.mxu0 %v1111
  %1129 = vmatprep.subr.bf16.mxu0 0
  %1130 = vmatpush2.bf16.xpose.msra.mxu0 0
  %1131 = vmatprep.subr.bf16.mxu0 0
  %1132 = vmatpush2.bf16.xpose.msra.mxu0 0
  %1133 = vmatprep.subr.bf16.mxu0 0
  %1134 = vmatpush2.bf16.xpose.msra.mxu0 0
  %1135 = vmatprep.subr.bf16.mxu0 0
  %1136 = vmatpush2.bf16.xpose.msra.mxu0 0
  %1137 = vmatprep.subr.bf16.mxu0 0
  %1138 = vmatpush2.bf16.xpose.msra.mxu0 0
  %1139 = vmatprep.subr.bf16.mxu0 0
  %1140 = vmatpush2.bf16.xpose.msra.mxu0 0
  %1141 = vmatprep.subr.bf16.mxu0 0
  %1142 = vmatpush2.bf16.xpose.msra.mxu0 0
  %1143 = vmatprep.subr.bf16.mxu0 0
  %1144 = vmatpush2.bf16.xpose.msra.mxu0 0
  %1145 = vmatprep.mubr.bf16.mxu0 0
  %1146 = vmatmul.mubr.bf16.gmra.mxu0 %v1108
  %v1147 = vpop.f32.mrf.mxu0
  %v1148 = vadd.f32 %v236, %v1147
  %v1149 = vpop.f32.mrf.mxu0
  %v1150 = vpop.f32.mrf.mxu0
  %v1151 = vpop.f32.mrf.mxu0
  %1152 = vdwg.mxu0
  %v1153 = vsel %vm243, %v1098, -inf
  %1154 = vmax.xlane.f32.xlu0 %v1153
  %v1155 = vpop.xlane.xlu0 %1154
  %v1156 = vsel %vm243, %v1148, -inf
  %1157 = vmax.xlane.f32.xlu0 %v1156
  %v1158 = vpop.xlane.xlu0 %1157
  %v1159 = vsub.f32 %v1098, %v1155
  %v1160 = vsub.f32 %v1148, %v1158
  %v1161 = vmul.f32 %v1159, 1.442695
  %v1162 = vpow.pop %v1161
  %v1163 = vmul.f32 %v1160, 1.442695
  %v1164 = vpow.pop %v1163
  %v1165 = vsel %vm243, %v1162, 0.0
  %1166 = vadd.xlane.f32.xlu0 %v1165
  %v1167 = vpop.xlane.xlu0 %1166
  %v1168 = vsel %vm243, %v1164, 0.0
  %1169 = vadd.xlane.f32.xlu0 %v1168
  %v1170 = vpop.xlane.xlu0 %1169
  %v1171 = vpack.c.bf16 %v1162, %v1162
  %v1172 = vpack.c.bf16 %v1164, %v1164
  %1173 = vrot.lane.b32.xlu0 %v241, 72
  %v1174 = vpop.permute.xlu0 %1173
  %v1176 = vsel %vm243, %v1171, 0
  %v1179 = vsel %vm362, %v1174, 0
  %1181 = vmatprep.subr.bf16.mxu0 0
  %1182 = vmatpush1.bf16.msra.mxu0 0
  %1183 = vmatprep.subr.bf16.mxu0 0
  %1184 = vmatpush1.bf16.msra.mxu0 0
  %1185 = vmatprep.subr.bf16.mxu0 0
  %1186 = vmatpush1.bf16.msra.mxu0 0
  %1187 = vmatprep.subr.bf16.mxu0 0
  %1188 = vmatpush1.bf16.msra.mxu0 0
  %1189 = vmatprep.subr.bf16.mxu0 0
  %1190 = vmatpush1.bf16.msra.mxu0 0
  %1191 = vmatprep.subr.bf16.mxu0 0
  %1192 = vmatpush1.bf16.msra.mxu0 0
  %1193 = vmatprep.subr.bf16.mxu0 0
  %1194 = vmatpush1.bf16.msra.mxu0 0
  %1195 = vmatprep.subr.bf16.mxu0 0
  %1196 = vmatpush1.bf16.msra.mxu0 %v1179
  %1197 = vmatprep.subr.bf16.mxu0 0
  %1198 = vmatpush2.bf16.msra.mxu0 0
  %1199 = vmatprep.subr.bf16.mxu0 0
  %1200 = vmatpush2.bf16.msra.mxu0 0
  %1201 = vmatprep.subr.bf16.mxu0 0
  %1202 = vmatpush2.bf16.msra.mxu0 0
  %1203 = vmatprep.subr.bf16.mxu0 0
  %1204 = vmatpush2.bf16.msra.mxu0 0
  %1205 = vmatprep.subr.bf16.mxu0 0
  %1206 = vmatpush2.bf16.msra.mxu0 0
  %1207 = vmatprep.subr.bf16.mxu0 0
  %1208 = vmatpush2.bf16.msra.mxu0 0
  %1209 = vmatprep.subr.bf16.mxu0 0
  %1210 = vmatpush2.bf16.msra.mxu0 0
  %1211 = vmatprep.subr.bf16.mxu0 0
  %1212 = vmatpush2.bf16.msra.mxu0 0
  %1213 = vmatprep.mubr.bf16.mxu0 0
  %1214 = vmatmul.mubr.bf16.gmra.mxu0 %v1176
  %v1215 = vpop.f32.mrf.mxu0
  %v1216 = vadd.f32 0.0, %v1215
  %v1217 = vpop.f32.mrf.mxu0
  %v1218 = vpop.f32.mrf.mxu0
  %v1219 = vpop.f32.mrf.mxu0
  %1220 = vdwg.mxu0
  %1221 = vrot.lane.b32.xlu0 %v242, 72
  %v1222 = vpop.permute.xlu0 %1221
  %v1224 = vsel %vm243, %v1172, 0
  %v1227 = vsel %vm362, %v1222, 0
  %1229 = vmatprep.subr.bf16.mxu0 0
  %1230 = vmatpush1.bf16.msra.mxu0 0
  %1231 = vmatprep.subr.bf16.mxu0 0
  %1232 = vmatpush1.bf16.msra.mxu0 0
  %1233 = vmatprep.subr.bf16.mxu0 0
  %1234 = vmatpush1.bf16.msra.mxu0 0
  %1235 = vmatprep.subr.bf16.mxu0 0
  %1236 = vmatpush1.bf16.msra.mxu0 0
  %1237 = vmatprep.subr.bf16.mxu0 0
  %1238 = vmatpush1.bf16.msra.mxu0 0
  %1239 = vmatprep.subr.bf16.mxu0 0
  %1240 = vmatpush1.bf16.msra.mxu0 0
  %1241 = vmatprep.subr.bf16.mxu0 0
  %1242 = vmatpush1.bf16.msra.mxu0 0
  %1243 = vmatprep.subr.bf16.mxu0 0
  %1244 = vmatpush1.bf16.msra.mxu0 %v1227
  %1245 = vmatprep.subr.bf16.mxu0 0
  %1246 = vmatpush2.bf16.msra.mxu0 0
  %1247 = vmatprep.subr.bf16.mxu0 0
  %1248 = vmatpush2.bf16.msra.mxu0 0
  %1249 = vmatprep.subr.bf16.mxu0 0
  %1250 = vmatpush2.bf16.msra.mxu0 0
  %1251 = vmatprep.subr.bf16.mxu0 0
  %1252 = vmatpush2.bf16.msra.mxu0 0
  %1253 = vmatprep.subr.bf16.mxu0 0
  %1254 = vmatpush2.bf16.msra.mxu0 0
  %1255 = vmatprep.subr.bf16.mxu0 0
  %1256 = vmatpush2.bf16.msra.mxu0 0
  %1257 = vmatprep.subr.bf16.mxu0 0
  %1258 = vmatpush2.bf16.msra.mxu0 0
  %1259 = vmatprep.subr.bf16.mxu0 0
  %1260 = vmatpush2.bf16.msra.mxu0 0
  %1261 = vmatprep.mubr.bf16.mxu0 0
  %1262 = vmatmul.mubr.bf16.gmra.mxu0 %v1224
  %v1263 = vpop.f32.mrf.mxu0
  %v1264 = vadd.f32 0.0, %v1263
  %v1265 = vpop.f32.mrf.mxu0
  %v1266 = vpop.f32.mrf.mxu0
  %v1267 = vpop.f32.mrf.mxu0
  %1268 = vdwg.mxu0
  %v1269 = vrcp.pop %v1167
  %v1270 = vrcp.pop %v1170
  %v1271 = vmul.f32 %v1216, %v1269
  %v1272 = vmul.f32 %v1264, %v1270
  %v1273 = vld [vmem:[%s9 + $0x18] sm:$0xff]
  %v1274 = vpack.c.bf16 %v1272, %v1271
  %v1275 = vpack.c.bf16 %v1273, %v1273
  %v1277 = vsel %vm243, %v1274, 0
  %v1280 = vsel %vm362, %v1275, 0
  %1282 = vmatprep.subr.bf16.mxu0 0
  %1283 = vmatpush1.bf16.msra.mxu0 0
  %1284 = vmatprep.subr.bf16.mxu0 0
  %1285 = vmatpush1.bf16.msra.mxu0 0
  %1286 = vmatprep.subr.bf16.mxu0 0
  %1287 = vmatpush1.bf16.msra.mxu0 0
  %1288 = vmatprep.subr.bf16.mxu0 0
  %1289 = vmatpush1.bf16.msra.mxu0 0
  %1290 = vmatprep.subr.bf16.mxu0 0
  %1291 = vmatpush1.bf16.msra.mxu0 0
  %1292 = vmatprep.subr.bf16.mxu0 0
  %1293 = vmatpush1.bf16.msra.mxu0 0
  %1294 = vmatprep.subr.bf16.mxu0 0
  %1295 = vmatpush1.bf16.msra.mxu0 0
  %1296 = vmatprep.subr.bf16.mxu0 0
  %1297 = vmatpush1.bf16.msra.mxu0 %v1280
  %1298 = vmatprep.subr.bf16.mxu0 0
  %1299 = vmatpush2.bf16.msra.mxu0 0
  %1300 = vmatprep.subr.bf16.mxu0 0
  %1301 = vmatpush2.bf16.msra.mxu0 0
  %1302 = vmatprep.subr.bf16.mxu0 0
  %1303 = vmatpush2.bf16.msra.mxu0 0
  %1304 = vmatprep.subr.bf16.mxu0 0
  %1305 = vmatpush2.bf16.msra.mxu0 0
  %1306 = vmatprep.subr.bf16.mxu0 0
  %1307 = vmatpush2.bf16.msra.mxu0 0
  %1308 = vmatprep.subr.bf16.mxu0 0
  %1309 = vmatpush2.bf16.msra.mxu0 0
  %1310 = vmatprep.subr.bf16.mxu0 0
  %1311 = vmatpush2.bf16.msra.mxu0 0
  %1312 = vmatprep.subr.bf16.mxu0 0
  %1313 = vmatpush2.bf16.msra.mxu0 0
  %1314 = vmatprep.mubr.bf16.mxu0 0
  %1315 = vmatmul.mubr.bf16.gmra.mxu0 %v1277
  %v1316 = vpop.f32.mrf.mxu0
  %v1317 = vadd.f32 0.0, %v1316
  %v1318 = vpop.f32.mrf.mxu0
  %v1319 = vpop.f32.mrf.mxu0
  %v1320 = vadd.f32 0.0, %v1319
  %v1321 = vpop.f32.mrf.mxu0
  %1322 = vdwg.mxu0
  %v1323 = vadd.f32 %v1051, %v1317
  %v1324 = vadd.f32 %v1052, %v1320
  %v1325 = vld [vmem:[%s10] sm:$0x1]
  %v1327 = vlaneseq
  %v1328 = vshrl.u32 %v1327, 7
  %v1329 = vsub.s32 0, %v1328
  %v1330 = vrot.slane %v1325, %v1329
  %v1332 = vadd.f32 %v1323, %v1330
  %v1333 = vadd.f32 %v1324, %v1330
  %v1334 = vadd.f32 %v39, %v1332
  %v1335 = vadd.f32 %v40, %v1333
  %1336 = vst.msk [vmem:[%s11] sm:$0xff] %vm43, %v1334
  %1337 = vst.msk [vmem:[%s11 + $0x8] sm:$0xff] %vm43, %v1335
  // Predicated region
  $region46: #{encoder_decoder_forward.11} parent=0 // pred_check
    _
  $region47: #{encoder_decoder_forward.11} parent=0 // pred_check_branch
    %1339 = sbr.rel (0) target = $region49
  $region48: #{encoder_decoder_forward.11} parent=0 // pred_region
    _
  $region49: #{encoder_decoder_forward.11} parent=0 // pred_fallthru
    _
  // Predicated region
  $region50: #{encoder_decoder_forward.11} parent=0 // pred_check
    _
  $region51: #{encoder_decoder_forward.11} parent=0 // pred_check_branch
    %1341 = sbr.rel (0) target = $region53
  $region52: #{encoder_decoder_forward.11} parent=0 // pred_region
    _
  $region53: #{encoder_decoder_forward.11} parent=0 // pred_fallthru
    _

// kernel: encoder_decoder_forward.21
$region0: #{encoder_decoder_forward.21}
  #allocation0 [shape = 'u32[]', space=smem, size = 0x4, offset = 0x4, fixed_abs, tag = 'smem constant byte address 0x4 - core index']
  #allocation1 [shape = 'u32[144,128]{1,0:T(1,128)}', space=vmem, size = 0x12000, scoped, tag = 'internal scratch']
  %s0 = inlined_call_operand.vmem [shape: f32[16,32], index: 0, kind: input, shape index: {}]
  %s1 = inlined_call_operand.vmem [shape: f32[32,128], index: 1, kind: input, shape index: {}]
  %s2 = inlined_call_operand.vmem [shape: f32[1,128], index: 2, kind: input, shape index: {}]
  %s3 = inlined_call_operand.hbm [shape: f32[16,128], index: 3, kind: output, shape index: {}]
  %s4 = sld [smem:[#allocation0]]
  $region22: #{encoder_decoder_forward.21} parent=0
    _
  %s6 = ssub.s32 1, %s4
  %s7 = scalar_select 0, %s6, %s4
  $region1: #{encoder_decoder_forward.21} parent=0
    #allocation2 [shape = 'u8[8192]{0}', space=vmem, size = 0x2000, scoped, tag = 'output window, operand 0, single buffered']
    #allocation3 [shape = 's32[1]{0}', space=sflag, size = 0x4, scoped, tag = 'scoped memory for encoder_decoder_forward.21']
    %8 = vsyncpa [#allocation3], 0
    // Predicated region
    $region2: #{encoder_decoder_forward.21} parent=1 // pred_check
      _
    $region3: #{encoder_decoder_forward.21} parent=1 // pred_check_branch
      %10 = sbr.rel (0) target = $region5
    $region4: #{encoder_decoder_forward.21} parent=1 // pred_region
      _
    $region5: #{encoder_decoder_forward.21} parent=1 // pred_fallthru
      _
    // Predicated region
    $region6: #{encoder_decoder_forward.21} parent=1 // pred_check
      _
    $region7: #{encoder_decoder_forward.21} parent=1 // pred_check_branch
      %12 = sbr.rel (0) target = $region9
    $region8: #{encoder_decoder_forward.21} parent=1 // pred_region
      _
    $region9: #{encoder_decoder_forward.21} parent=1 // pred_fallthru
      _
    // Predicated region
    $region10: #{encoder_decoder_forward.21} parent=1 // pred_check
      _
    $region11: #{encoder_decoder_forward.21} parent=1 // pred_check_branch
      %14 = sbr.rel (0) target = $region13
    $region12: #{encoder_decoder_forward.21} parent=1 // pred_region
      _
    $region13: #{encoder_decoder_forward.21} parent=1 // pred_fallthru
      _
    %v16 = vld [vmem:[%s0] sm:$0xff]
    %v17 = vld [vmem:[%s0 + $0x8] sm:$0xff]
    %v18 = vld [vmem:[%s1] sm:$0xff]
    %v19 = vld [vmem:[%s1 + $0x8] sm:$0xff]
    %v20 = vld [vmem:[%s1 + $0x10] sm:$0xff]
    %v21 = vld [vmem:[%s1 + $0x18] sm:$0xff]
    %v22 = vpack.c.bf16 %v17, %v16
    %v23 = vpack.c.bf16 %v19, %v18
    %v24 = vpack.c.bf16 %v21, %v20
    %v25 = vld [vmem:[%s2] sm:$0x1]
    %v27 = vlaneseq
    %v28 = vshrl.u32 %v27, 7
    %v29 = vsub.s32 0, %v28
    %v30 = vrot.slane %v25, %v29
    %vm32 = vcmask 261120
    %v34 = vsel %vm32, %v22, 0
    %36 = vmatprep.subr.bf16.mxu0 0
    %37 = vmatpush1.bf16.msra.mxu0 0
    %38 = vmatprep.subr.bf16.mxu0 0
    %39 = vmatpush1.bf16.msra.mxu0 0
    %40 = vmatprep.subr.bf16.mxu0 0
    %41 = vmatpush1.bf16.msra.mxu0 0
    %42 = vmatprep.subr.bf16.mxu0 0
    %43 = vmatpush1.bf16.msra.mxu0 0
    %44 = vmatprep.subr.bf16.mxu0 0
    %45 = vmatpush1.bf16.msra.mxu0 0
    %46 = vmatprep.subr.bf16.mxu0 0
    %47 = vmatpush1.bf16.msra.mxu0 0
    %48 = vmatprep.subr.bf16.mxu0 0
    %49 = vmatpush1.bf16.msra.mxu0 %v24
    %50 = vmatprep.subr.bf16.mxu0 0
    %51 = vmatpush1.bf16.msra.mxu0 %v23
    %52 = vmatprep.subr.bf16.mxu0 0
    %53 = vmatpush2.bf16.msra.mxu0 0
    %54 = vmatprep.subr.bf16.mxu0 0
    %55 = vmatpush2.bf16.msra.mxu0 0
    %56 = vmatprep.subr.bf16.mxu0 0
    %57 = vmatpush2.bf16.msra.mxu0 0
    %58 = vmatprep.subr.bf16.mxu0 0
    %59 = vmatpush2.bf16.msra.mxu0 0
    %60 = vmatprep.subr.bf16.mxu0 0
    %61 = vmatpush2.bf16.msra.mxu0 0
    %62 = vmatprep.subr.bf16.mxu0 0
    %63 = vmatpush2.bf16.msra.mxu0 0
    %64 = vmatprep.subr.bf16.mxu0 0
    %65 = vmatpush2.bf16.msra.mxu0 0
    %66 = vmatprep.subr.bf16.mxu0 0
    %67 = vmatpush2.bf16.msra.mxu0 0
    %68 = vmatprep.mubr.bf16.mxu0 0
    %69 = vmatmul.mubr.bf16.gmra.mxu0 %v34
    %v70 = vpop.f32.mrf.mxu0
    %v71 = vadd.f32 %v30, %v70
    %v72 = vpop.f32.mrf.mxu0
    %v73 = vpop.f32.mrf.mxu0
    %v74 = vadd.f32 %v30, %v73
    %v75 = vpop.f32.mrf.mxu0
    %76 = vdwg.mxu0
    %77 = vst [vmem:[#allocation2] sm:$0xff] %v71
    %78 = vst [vmem:[#allocation2 + $0x8] sm:$0xff] %v74
    // Predicated region
    $region14: #{encoder_decoder_forward.21} parent=1 // pred_check
      _
    $region15: #{encoder_decoder_forward.21} parent=1 // pred_check_branch
      %80 = sbr.rel (0) target = $region17
    $region16: #{encoder_decoder_forward.21} parent=1 // pred_region
      %s82 = ssub.s32 256, 256
      %83 = vsyncadd [#allocation3], %s82
      %s84 = sshll.u32 [#allocation2], 4
      %s85 = int_to_ptr.vmem [resolvable:$true] %s84
      %90 = dma.vmem_to_hbm [thread:$0]  %s85, 256, %s3, [#allocation3], 128, 128, 8
    $region17: #{encoder_decoder_forward.21} parent=1 // pred_fallthru
      _
    // Predicated region
    $region18: #{encoder_decoder_forward.21} parent=1 // pred_check
      _
    $region19: #{encoder_decoder_forward.21} parent=1 // pred_check_branch
      %92 = sbr.rel (0) target = $region21
    $region20: #{encoder_decoder_forward.21} parent=1 // pred_region
      %93 = dma.done [#allocation3], 256
    $region21: #{encoder_decoder_forward.21} parent=1 // pred_fallthru
      _
    %94 = vsyncpa [#allocation3], 1

</llo_original>
